<compile_context>
chip_gen: v7x
topology: tpu7x:2x2x1
jax: 0.10.0
libtpu: 0.0.40
codegen_flags: <defaults>
</compile_context>

<pallas_src>
import math
import jax
import jax.numpy as jnp
from jax.experimental import pallas as pl
from jax.experimental.pallas import tpu as pltpu

# ---- small model dims consistent with the module's forward ----
B = 2            # batch
S = 8            # sequence length
D = 32           # bert_dim (scaled-down BERT hidden size)
H = 4            # attention heads
DH = D // H      # head dim
F = 4 * D        # FFN intermediate size
N_LAYERS = 12    # bert_rep[2][11] requires 12 attention layers
HIDDEN = 32      # SimpleHidden hidden_dim (config override of default 300)
N_CLASSES = 2
VOCAB = 64
LN_EPS = 1e-12
BS = B * S       # batch folded into the row (sublane) dimension


def _layernorm(x, g, b):
    mu = jnp.mean(x, axis=-1, keepdims=True)
    var = jnp.mean((x - mu) ** 2, axis=-1, keepdims=True)
    return (x - mu) * jax.lax.rsqrt(var + LN_EPS) * g + b


def _gelu(x):
    # tanh approximation of GELU (EUP-friendly)
    return 0.5 * x * (1.0 + jnp.tanh(0.7978845608028654 * (x + 0.044715 * x * x * x)))


# ----------------------------------------------------------------------------
# Single fused kernel: embedding LN + 12 encoder layers + head, grid=(N_LAYERS,)
# ----------------------------------------------------------------------------
def fused_bert_kernel(
    x_emb_ref, emb_g_ref, emb_b_ref,                      # embedding sum + LN params
    wqkv_ref, bqkv_ref, wo_ref, bo_ref, g1_ref, be1_ref,  # per-layer attention weights
    w1_ref, b1_ref, w2_ref, b2_ref, g2_ref, be2_ref,      # per-layer FFN / LN weights
    wh_ref, bh_ref, wc_ref, bc_ref,                       # head weights (SimpleHidden + output)
    yhat_ref, clsatt_ref,                                 # outputs
    x_scr,                                                # (B*S, D) resident activation
):
    layer = pl.program_id(0)

    # Layer 0: fold in the embedding LayerNorm; init tiny resident outputs.
    @pl.when(layer == 0)
    def _():
        x_scr[...] = _layernorm(x_emb_ref[...], emb_g_ref[...], emb_b_ref[...])
        yhat_ref[...] = jnp.zeros_like(yhat_ref)
        clsatt_ref[...] = jnp.zeros_like(clsatt_ref)

    x = x_scr[...]                                                        # (B*S, D)

    # Fused QKV projection: one MXU push for Q, K and V over all B*S rows.
    qkv = jnp.dot(x, wqkv_ref[0], preferred_element_type=jnp.float32) + bqkv_ref[0]
    q3 = qkv[:, 0 * D:1 * D].reshape(B, S, D)
    k3 = qkv[:, 1 * D:2 * D].reshape(B, S, D)
    v3 = qkv[:, 2 * D:3 * D].reshape(B, S, D)

    scale = 1.0 / math.sqrt(DH)
    ctx_parts = []
    cls_att = jnp.zeros((B, S), jnp.float32)
    for h in range(H):                                                    # static unroll over heads
        lo = h * DH
        qh = q3[:, :, lo:lo + DH]
        kh = k3[:, :, lo:lo + DH]
        vh = v3[:, :, lo:lo + DH]
        s = jnp.einsum('bqd,bkd->bqk', qh, kh,
                       preferred_element_type=jnp.float32) * scale        # (B, S, S)
        s = s - jnp.max(s, axis=-1, keepdims=True)
        e = jnp.exp(s)
        p = e * pl.reciprocal(jnp.sum(e, axis=-1, keepdims=True), approx=True)
        # torch.sum(attn[:, :, 0], 1): query row 0, summed over heads.
        cls_att = cls_att + p[:, 0, :]
        ctx_parts.append(jnp.einsum('bqk,bkd->bqd', p, vh,
                                    preferred_element_type=jnp.float32))  # (B, S, DH)
    ctx = jnp.concatenate(ctx_parts, axis=-1).reshape(BS, D)

    attn_out = jnp.dot(ctx, wo_ref[0], preferred_element_type=jnp.float32) + bo_ref[0]
    h1 = _layernorm(x + attn_out, g1_ref[0], be1_ref[0])
    ffn = jnp.dot(_gelu(jnp.dot(h1, w1_ref[0], preferred_element_type=jnp.float32)
                        + b1_ref[0]),
                  w2_ref[0], preferred_element_type=jnp.float32) + b2_ref[0]
    x_new = _layernorm(h1 + ffn, g2_ref[0], be2_ref[0])
    x_scr[...] = x_new

    # Last layer: classifier head + cls_att, fused (no second pallas_call, no
    # HBM round-trip of hidden states or (B,H,S,S) attention tensors).
    @pl.when(layer == N_LAYERS - 1)
    def _():
        cls = x_new.reshape(B, S, D)[:, 0, :]                             # bert_rep[:, 0]
        hdn = jnp.tanh(jnp.dot(cls, wh_ref[...], preferred_element_type=jnp.float32)
                       + bh_ref[...])
        yhat_ref[...] = (jnp.dot(hdn, wc_ref[...], preferred_element_type=jnp.float32)
                         + bc_ref[...])
        clsatt_ref[...] = cls_att


def run_fused_bert(x_emb, emb, p, head):
    def const_spec(shape):                                 # resident for whole grid
        return pl.BlockSpec(shape, lambda l: (0, 0))

    def layer_spec(shape):                                 # one layer's slice per grid step
        return pl.BlockSpec((1,) + shape, lambda l: (l, 0, 0))

    in_specs = [
        const_spec((BS, D)),                               # x_emb (pre-LN embedding sum)
        const_spec((1, D)), const_spec((1, D)),            # embedding LN gamma / beta
        layer_spec((D, 3 * D)), layer_spec((1, 3 * D)),    # wqkv, bqkv
        layer_spec((D, D)), layer_spec((1, D)),            # wo, bo
        layer_spec((1, D)), layer_spec((1, D)),            # ln1 gamma, beta
        layer_spec((D, F)), layer_spec((1, F)),            # w1, b1
        layer_spec((F, D)), layer_spec((1, D)),            # w2, b2
        layer_spec((1, D)), layer_spec((1, D)),            # ln2 gamma, beta
        const_spec((D, HIDDEN)), const_spec((1, HIDDEN)),          # wh, bh (SimpleHidden)
        const_spec((HIDDEN, N_CLASSES)), const_spec((1, N_CLASSES)),  # wc, bc (layer_output)
    ]
    out_specs = (
        pl.BlockSpec((B, N_CLASSES), lambda l: (0, 0)),
        pl.BlockSpec((B, S), lambda l: (0, 0)),
    )
    fn = pl.pallas_call(
        fused_bert_kernel,
        out_shape=(jax.ShapeDtypeStruct((B, N_CLASSES), jnp.float32),
                   jax.ShapeDtypeStruct((B, S), jnp.float32)),
        grid=(N_LAYERS,),
        in_specs=in_specs,
        out_specs=out_specs,
        scratch_shapes=[pltpu.VMEM((BS, D), jnp.float32)],
        compiler_params=pltpu.CompilerParams(dimension_semantics=("arbitrary",)),
    )
    return fn(x_emb, emb['ln_g'], emb['ln_b'],
              p['wqkv'], p['bqkv'], p['wo'], p['bo'], p['ln1_g'], p['ln1_b'],
              p['w1'], p['b1'], p['w2'], p['b2'], p['ln2_g'], p['ln2_b'],
              head['wh'], head['bh'], head['wc'], head['bc'])


# ----------------------------------------------------------------------------
# Deterministic parameter init (synthetic stand-in for pretrained BERT weights)
# Weights are pre-stacked along a leading layer dim; Q|K|V pre-concatenated.
# ----------------------------------------------------------------------------
def init_params(key):
    keys = jax.random.split(key, 8 + N_LAYERS)

    def norm(k, shape):
        return 0.02 * jax.random.normal(k, shape, jnp.float32)

    emb = {
        'word': norm(keys[0], (VOCAB, D)),
        'pos': norm(keys[1], (S, D)),
        'type': norm(keys[2], (2, D)),
        'ln_g': jnp.ones((1, D), jnp.float32),
        'ln_b': jnp.zeros((1, D), jnp.float32),
    }

    wqkv, bqkv, wo, bo = [], [], [], []
    g1, be1, w1, b1, w2, b2, g2, be2 = [], [], [], [], [], [], [], []
    for l in range(N_LAYERS):
        lk = jax.random.split(keys[8 + l], 6)
        wqkv.append(jnp.concatenate(
            [norm(lk[0], (D, D)), norm(lk[1], (D, D)), norm(lk[2], (D, D))], axis=1))
        bqkv.append(jnp.zeros((1, 3 * D), jnp.float32))
        wo.append(norm(lk[3], (D, D)))
        bo.append(jnp.zeros((1, D), jnp.float32))
        g1.append(jnp.ones((1, D), jnp.float32))
        be1.append(jnp.zeros((1, D), jnp.float32))
        w1.append(norm(lk[4], (D, F)))
        b1.append(jnp.zeros((1, F), jnp.float32))
        w2.append(norm(lk[5], (F, D)))
        b2.append(jnp.zeros((1, D), jnp.float32))
        g2.append(jnp.ones((1, D), jnp.float32))
        be2.append(jnp.zeros((1, D), jnp.float32))

    stacked = {
        'wqkv': jnp.stack(wqkv), 'bqkv': jnp.stack(bqkv),
        'wo': jnp.stack(wo), 'bo': jnp.stack(bo),
        'ln1_g': jnp.stack(g1), 'ln1_b': jnp.stack(be1),
        'w1': jnp.stack(w1), 'b1': jnp.stack(b1),
        'w2': jnp.stack(w2), 'b2': jnp.stack(b2),
        'ln2_g': jnp.stack(g2), 'ln2_b': jnp.stack(be2),
    }

    head = {
        'wh': norm(keys[3], (D, HIDDEN)),
        'bh': jnp.zeros((1, HIDDEN), jnp.float32),
        'wc': norm(keys[4], (HIDDEN, N_CLASSES)),
        'bc': jnp.zeros((1, N_CLASSES), jnp.float32),
    }
    return emb, stacked, head


# ----------------------------------------------------------------------------
# Full forward: BERT_Rel_Simple.forward(batchItem, mask=None)
# ----------------------------------------------------------------------------
def bert_rel_simple_forward(token_ids, emb, stacked, head):
    # BERT_Embedding: word + position + type embeddings (data-dependent gather
    # kept in plain JAX); the embedding LayerNorm is fused into layer 0 of the
    # Pallas kernel.
    pos_ids = jnp.arange(S)
    x = (emb['word'][token_ids]
         + emb['pos'][pos_ids][None, :, :]
         + emb['type'][0][None, None, :])
    x = x.reshape(BS, D)

    # module semantics:
    #   cls_att = torch.sum(bert_rep[2][11][:, :, 0], 1)
    #   bert_rep = bert_rep[0][:, 0]; hidden = SimpleHidden(bert_rep); out = layer_output(hidden)
    y_hat, cls_att = run_fused_bert(x, emb, stacked, head)
    return {'y_hat': y_hat, 'cls_att': cls_att}


if __name__ == "__main__":
    key = jax.random.PRNGKey(0)
    pkey, dkey = jax.random.split(key)
    emb, stacked, head = init_params(pkey)
    token_ids = jax.random.randint(dkey, (B, S), 0, VOCAB)

    fwd = jax.jit(bert_rel_simple_forward)
    out = fwd(token_ids, emb, stacked, head)
    out = jax.block_until_ready(out)

    assert out['y_hat'].shape == (B, N_CLASSES)
    assert out['cls_att'].shape == (B, S)
    assert bool(jnp.all(jnp.isfinite(out['y_hat'])))
    assert bool(jnp.all(jnp.isfinite(out['cls_att'])))
    print("KERNEL_OK")
</pallas_src>

<mosaic_0001>
module attributes {stable_mosaic.version = 11 : i64} {
  func.func @fused_bert_kernel(%arg0: i32, %arg1: memref<16x32xf32, #tpu.memory_space<vmem>>, %arg2: memref<1x32xf32, #tpu.memory_space<vmem>>, %arg3: memref<1x32xf32, #tpu.memory_space<vmem>>, %arg4: memref<1x32x96xf32, #tpu.memory_space<vmem>>, %arg5: memref<1x1x96xf32, #tpu.memory_space<vmem>>, %arg6: memref<1x32x32xf32, #tpu.memory_space<vmem>>, %arg7: memref<1x1x32xf32, #tpu.memory_space<vmem>>, %arg8: memref<1x1x32xf32, #tpu.memory_space<vmem>>, %arg9: memref<1x1x32xf32, #tpu.memory_space<vmem>>, %arg10: memref<1x32x128xf32, #tpu.memory_space<vmem>>, %arg11: memref<1x1x128xf32, #tpu.memory_space<vmem>>, %arg12: memref<1x128x32xf32, #tpu.memory_space<vmem>>, %arg13: memref<1x1x32xf32, #tpu.memory_space<vmem>>, %arg14: memref<1x1x32xf32, #tpu.memory_space<vmem>>, %arg15: memref<1x1x32xf32, #tpu.memory_space<vmem>>, %arg16: memref<32x32xf32, #tpu.memory_space<vmem>>, %arg17: memref<1x32xf32, #tpu.memory_space<vmem>>, %arg18: memref<32x2xf32, #tpu.memory_space<vmem>>, %arg19: memref<1x2xf32, #tpu.memory_space<vmem>>, %arg20: memref<2x2xf32, #tpu.memory_space<vmem>>, %arg21: memref<2x8xf32, #tpu.memory_space<vmem>>, %arg22: memref<16x32xf32, #tpu.memory_space<vmem>>) attributes {dimension_semantics = [#tpu.dimension_semantics<arbitrary>], iteration_bounds = array<i64: 12>, scalar_prefetch = 0 : i64, scratch_operands = 1 : i64, tpu.core_type = #tpu.core_type<tc>, window_params = [{pipeline_mode = #tpu.pipeline_mode<synchronous>, transform_indices = @transform_0, window_bounds = array<i64: 16, 32>}, {pipeline_mode = #tpu.pipeline_mode<synchronous>, transform_indices = @transform_1, window_bounds = array<i64: 1, 32>}, {pipeline_mode = #tpu.pipeline_mode<synchronous>, transform_indices = @transform_2, window_bounds = array<i64: 1, 32>}, {transform_indices = @transform_3, window_bounds = array<i64: 1, 32, 96>}, {transform_indices = @transform_4, window_bounds = array<i64: 1, 1, 96>}, {transform_indices = @transform_5, window_bounds = array<i64: 1, 32, 32>}, {transform_indices = @transform_6, window_bounds = array<i64: 1, 1, 32>}, {transform_indices = @transform_7, window_bounds = array<i64: 1, 1, 32>}, {transform_indices = @transform_8, window_bounds = array<i64: 1, 1, 32>}, {transform_indices = @transform_9, window_bounds = array<i64: 1, 32, 128>}, {transform_indices = @transform_10, window_bounds = array<i64: 1, 1, 128>}, {transform_indices = @transform_11, window_bounds = array<i64: 1, 128, 32>}, {transform_indices = @transform_12, window_bounds = array<i64: 1, 1, 32>}, {transform_indices = @transform_13, window_bounds = array<i64: 1, 1, 32>}, {transform_indices = @transform_14, window_bounds = array<i64: 1, 1, 32>}, {pipeline_mode = #tpu.pipeline_mode<synchronous>, transform_indices = @transform_15, window_bounds = array<i64: 32, 32>}, {pipeline_mode = #tpu.pipeline_mode<synchronous>, transform_indices = @transform_16, window_bounds = array<i64: 1, 32>}, {pipeline_mode = #tpu.pipeline_mode<synchronous>, transform_indices = @transform_17, window_bounds = array<i64: 32, 2>}, {pipeline_mode = #tpu.pipeline_mode<synchronous>, transform_indices = @transform_18, window_bounds = array<i64: 1, 2>}, {pipeline_mode = #tpu.pipeline_mode<synchronous>, transform_indices = @transform_19, window_bounds = array<i64: 2, 2>}, {pipeline_mode = #tpu.pipeline_mode<synchronous>, transform_indices = @transform_20, window_bounds = array<i64: 2, 8>}]} {
    %c0_i32 = arith.constant 0 : i32
    %0 = arith.cmpi eq, %arg0, %c0_i32 : i32
    %1 = arith.extui %0 : i1 to i32
    %c0_i32_0 = arith.constant 0 : i32
    %2 = arith.cmpi ne, %1, %c0_i32_0 : i32
    scf.if %2 {
      %c0_79 = arith.constant 0 : index
      %c0_80 = arith.constant 0 : index
      %192 = vector.load %arg1[%c0_79, %c0_80] : memref<16x32xf32, #tpu.memory_space<vmem>>, vector<16x32xf32>
      %c0_81 = arith.constant 0 : index
      %c0_82 = arith.constant 0 : index
      %193 = vector.load %arg2[%c0_81, %c0_82] : memref<1x32xf32, #tpu.memory_space<vmem>>, vector<1x32xf32>
      %c0_83 = arith.constant 0 : index
      %c0_84 = arith.constant 0 : index
      %194 = vector.load %arg3[%c0_83, %c0_84] : memref<1x32xf32, #tpu.memory_space<vmem>>, vector<1x32xf32>
      %cst_85 = arith.constant dense<0.000000e+00> : vector<16xf32>
      %195 = vector.multi_reduction <add>, %192, %cst_85 [1] : vector<16x32xf32> to vector<16xf32>
      %196 = vector.shape_cast %195 : vector<16xf32> to vector<16x1xf32>
      %cst_86 = arith.constant 3.200000e+01 : f32
      %197 = vector.broadcast %cst_86 : f32 to vector<16x1xf32>
      %198 = arith.divf %196, %197 : vector<16x1xf32>
      %199 = vector.broadcast %198 : vector<16x1xf32> to vector<16x32xf32>
      %200 = arith.subf %192, %199 : vector<16x32xf32>
      %201 = arith.mulf %200, %200 : vector<16x32xf32>
      %cst_87 = arith.constant dense<0.000000e+00> : vector<16xf32>
      %202 = vector.multi_reduction <add>, %201, %cst_87 [1] : vector<16x32xf32> to vector<16xf32>
      %203 = vector.shape_cast %202 : vector<16xf32> to vector<16x1xf32>
      %cst_88 = arith.constant 3.200000e+01 : f32
      %204 = vector.broadcast %cst_88 : f32 to vector<16x1xf32>
      %205 = arith.divf %203, %204 : vector<16x1xf32>
      %206 = vector.broadcast %198 : vector<16x1xf32> to vector<16x32xf32>
      %207 = arith.subf %192, %206 : vector<16x32xf32>
      %cst_89 = arith.constant 9.99999996E-13 : f32
      %208 = vector.broadcast %cst_89 : f32 to vector<16x1xf32>
      %209 = arith.addf %205, %208 : vector<16x1xf32>
      %210 = math.rsqrt %209 : vector<16x1xf32>
      %211 = vector.broadcast %210 : vector<16x1xf32> to vector<16x32xf32>
      %212 = arith.mulf %207, %211 : vector<16x32xf32>
      %213 = vector.broadcast %193 : vector<1x32xf32> to vector<16x32xf32>
      %214 = arith.mulf %212, %213 : vector<16x32xf32>
      %215 = vector.broadcast %194 : vector<1x32xf32> to vector<16x32xf32>
      %216 = arith.addf %214, %215 : vector<16x32xf32>
      %c0_90 = arith.constant 0 : index
      %c0_91 = arith.constant 0 : index
      %217 = vector.load %arg22[%c0_90, %c0_91] : memref<16x32xf32, #tpu.memory_space<vmem>>, vector<16x32xf32>
      tpu.vector_store %arg22[%c0_90, %c0_91], %216 {strides = array<i32>} : memref<16x32xf32, #tpu.memory_space<vmem>>, vector<16x32xf32>,
      %cst_92 = arith.constant 0.000000e+00 : f32
      %218 = vector.broadcast %cst_92 : f32 to vector<2x2xf32>
      %c0_93 = arith.constant 0 : index
      %c0_94 = arith.constant 0 : index
      %219 = vector.load %arg20[%c0_93, %c0_94] : memref<2x2xf32, #tpu.memory_space<vmem>>, vector<2x2xf32>
      tpu.vector_store %arg20[%c0_93, %c0_94], %218 {strides = array<i32>} : memref<2x2xf32, #tpu.memory_space<vmem>>, vector<2x2xf32>,
      %cst_95 = arith.constant 0.000000e+00 : f32
      %220 = vector.broadcast %cst_95 : f32 to vector<2x8xf32>
      %c0_96 = arith.constant 0 : index
      %c0_97 = arith.constant 0 : index
      %221 = vector.load %arg21[%c0_96, %c0_97] : memref<2x8xf32, #tpu.memory_space<vmem>>, vector<2x8xf32>
      tpu.vector_store %arg21[%c0_96, %c0_97], %220 {strides = array<i32>} : memref<2x8xf32, #tpu.memory_space<vmem>>, vector<2x8xf32>,
    } else {
    }
    %c0 = arith.constant 0 : index
    %c0_1 = arith.constant 0 : index
    %3 = vector.load %arg22[%c0, %c0_1] : memref<16x32xf32, #tpu.memory_space<vmem>>, vector<16x32xf32>
    %c0_2 = arith.constant 0 : index
    %c0_3 = arith.constant 0 : index
    %c0_4 = arith.constant 0 : index
    %4 = vector.load %arg4[%c0_2, %c0_3, %c0_4] : memref<1x32x96xf32, #tpu.memory_space<vmem>>, vector<1x32x96xf32>
    %5 = vector.shape_cast %4 : vector<1x32x96xf32> to vector<32x96xf32>
    %cst = arith.constant dense<0.000000e+00> : vector<16x96xf32>
    %6 = tpu.matmul %3, %5, %cst {dimension_numbers = #tpu.dot_dimension_numbers<[1], [0], [0], [1], [0, 0, 1, 1], [], []>} : vector<16x32xf32>, vector<32x96xf32>, vector<16x96xf32> -> vector<16x96xf32>
    %c0_5 = arith.constant 0 : index
    %c0_6 = arith.constant 0 : index
    %c0_7 = arith.constant 0 : index
    %7 = vector.load %arg5[%c0_5, %c0_6, %c0_7] : memref<1x1x96xf32, #tpu.memory_space<vmem>>, vector<1x1x96xf32>
    %8 = vector.shape_cast %7 : vector<1x1x96xf32> to vector<1x96xf32>
    %9 = vector.broadcast %8 : vector<1x96xf32> to vector<16x96xf32>
    %10 = arith.addf %6, %9 : vector<16x96xf32>
    %11 = vector.extract_strided_slice %10 {offsets = [0, 0], sizes = [16, 32], strides = [1, 1]} : vector<16x96xf32> to vector<16x32xf32>
    %12 = vector.shape_cast %11 : vector<16x32xf32> to vector<2x8x32xf32>
    %13 = vector.extract_strided_slice %10 {offsets = [0, 32], sizes = [16, 32], strides = [1, 1]} : vector<16x96xf32> to vector<16x32xf32>
    %14 = vector.shape_cast %13 : vector<16x32xf32> to vector<2x8x32xf32>
    %15 = vector.extract_strided_slice %10 {offsets = [0, 64], sizes = [16, 32], strides = [1, 1]} : vector<16x96xf32> to vector<16x32xf32>
    %16 = vector.shape_cast %15 : vector<16x32xf32> to vector<2x8x32xf32>
    %cst_8 = arith.constant 0.000000e+00 : f32
    %17 = vector.broadcast %cst_8 : f32 to vector<2x8xf32>
    %18 = vector.extract_strided_slice %12 {offsets = [0, 0, 0], sizes = [2, 8, 8], strides = [1, 1, 1]} : vector<2x8x32xf32> to vector<2x8x8xf32>
    %19 = vector.extract_strided_slice %14 {offsets = [0, 0, 0], sizes = [2, 8, 8], strides = [1, 1, 1]} : vector<2x8x32xf32> to vector<2x8x8xf32>
    %20 = vector.extract_strided_slice %16 {offsets = [0, 0, 0], sizes = [2, 8, 8], strides = [1, 1, 1]} : vector<2x8x32xf32> to vector<2x8x8xf32>
    "tpu.trace_start"() <{level = 10 : i32, message = "bqd,bkd->bqk"}> : () -> ()
    %cst_9 = arith.constant dense<0.000000e+00> : vector<2x8x8xf32>
    %21 = tpu.matmul %18, %19, %cst_9 {dimension_numbers = #tpu.dot_dimension_numbers<[2], [2], [1], [1], [0, 0, 0, 1, 1, 1], [0], [0]>} : vector<2x8x8xf32>, vector<2x8x8xf32>, vector<2x8x8xf32> -> vector<2x8x8xf32>
    "tpu.trace_stop"() : () -> ()
    %cst_10 = arith.constant 0.353553385 : f32
    %22 = vector.broadcast %cst_10 : f32 to vector<2x8x8xf32>
    %23 = arith.mulf %21, %22 : vector<2x8x8xf32>
    %cst_11 = arith.constant dense<0xFF800000> : vector<2x8xf32>
    %24 = vector.multi_reduction <maximumf>, %23, %cst_11 [2] : vector<2x8x8xf32> to vector<2x8xf32>
    %25 = vector.shape_cast %24 : vector<2x8xf32> to vector<2x8x1xf32>
    %26 = vector.broadcast %25 : vector<2x8x1xf32> to vector<2x8x8xf32>
    %27 = arith.subf %23, %26 : vector<2x8x8xf32>
    %28 = math.exp %27 : vector<2x8x8xf32>
    %cst_12 = arith.constant dense<0.000000e+00> : vector<2x8xf32>
    %29 = vector.multi_reduction <add>, %28, %cst_12 [2] : vector<2x8x8xf32> to vector<2x8xf32>
    %30 = vector.shape_cast %29 : vector<2x8xf32> to vector<2x8x1xf32>
    %31 = tpu.reciprocal %30 {approx = true} : vector<2x8x1xf32> -> vector<2x8x1xf32>
    %32 = vector.broadcast %31 : vector<2x8x1xf32> to vector<2x8x8xf32>
    %33 = arith.mulf %28, %32 : vector<2x8x8xf32>
    %34 = vector.extract_strided_slice %33 {offsets = [0, 0, 0], sizes = [2, 1, 8], strides = [1, 1, 1]} : vector<2x8x8xf32> to vector<2x1x8xf32>
    %35 = vector.shape_cast %34 : vector<2x1x8xf32> to vector<2x8xf32>
    %36 = arith.addf %17, %35 : vector<2x8xf32>
    "tpu.trace_start"() <{level = 10 : i32, message = "bqk,bkd->bqd"}> : () -> ()
    %cst_13 = arith.constant dense<0.000000e+00> : vector<2x8x8xf32>
    %37 = tpu.matmul %33, %20, %cst_13 {dimension_numbers = #tpu.dot_dimension_numbers<[2], [1], [1], [2], [0, 0, 0, 1, 1, 2], [0], [0]>} : vector<2x8x8xf32>, vector<2x8x8xf32>, vector<2x8x8xf32> -> vector<2x8x8xf32>
    "tpu.trace_stop"() : () -> ()
    %38 = vector.extract_strided_slice %12 {offsets = [0, 0, 8], sizes = [2, 8, 8], strides = [1, 1, 1]} : vector<2x8x32xf32> to vector<2x8x8xf32>
    %39 = vector.extract_strided_slice %14 {offsets = [0, 0, 8], sizes = [2, 8, 8], strides = [1, 1, 1]} : vector<2x8x32xf32> to vector<2x8x8xf32>
    %40 = vector.extract_strided_slice %16 {offsets = [0, 0, 8], sizes = [2, 8, 8], strides = [1, 1, 1]} : vector<2x8x32xf32> to vector<2x8x8xf32>
    "tpu.trace_start"() <{level = 10 : i32, message = "bqd,bkd->bqk"}> : () -> ()
    %cst_14 = arith.constant dense<0.000000e+00> : vector<2x8x8xf32>
    %41 = tpu.matmul %38, %39, %cst_14 {dimension_numbers = #tpu.dot_dimension_numbers<[2], [2], [1], [1], [0, 0, 0, 1, 1, 1], [0], [0]>} : vector<2x8x8xf32>, vector<2x8x8xf32>, vector<2x8x8xf32> -> vector<2x8x8xf32>
    "tpu.trace_stop"() : () -> ()
    %cst_15 = arith.constant 0.353553385 : f32
    %42 = vector.broadcast %cst_15 : f32 to vector<2x8x8xf32>
    %43 = arith.mulf %41, %42 : vector<2x8x8xf32>
    %cst_16 = arith.constant dense<0xFF800000> : vector<2x8xf32>
    %44 = vector.multi_reduction <maximumf>, %43, %cst_16 [2] : vector<2x8x8xf32> to vector<2x8xf32>
    %45 = vector.shape_cast %44 : vector<2x8xf32> to vector<2x8x1xf32>
    %46 = vector.broadcast %45 : vector<2x8x1xf32> to vector<2x8x8xf32>
    %47 = arith.subf %43, %46 : vector<2x8x8xf32>
    %48 = math.exp %47 : vector<2x8x8xf32>
    %cst_17 = arith.constant dense<0.000000e+00> : vector<2x8xf32>
    %49 = vector.multi_reduction <add>, %48, %cst_17 [2] : vector<2x8x8xf32> to vector<2x8xf32>
    %50 = vector.shape_cast %49 : vector<2x8xf32> to vector<2x8x1xf32>
    %51 = tpu.reciprocal %50 {approx = true} : vector<2x8x1xf32> -> vector<2x8x1xf32>
    %52 = vector.broadcast %51 : vector<2x8x1xf32> to vector<2x8x8xf32>
    %53 = arith.mulf %48, %52 : vector<2x8x8xf32>
    %54 = vector.extract_strided_slice %53 {offsets = [0, 0, 0], sizes = [2, 1, 8], strides = [1, 1, 1]} : vector<2x8x8xf32> to vector<2x1x8xf32>
    %55 = vector.shape_cast %54 : vector<2x1x8xf32> to vector<2x8xf32>
    %56 = arith.addf %36, %55 : vector<2x8xf32>
    "tpu.trace_start"() <{level = 10 : i32, message = "bqk,bkd->bqd"}> : () -> ()
    %cst_18 = arith.constant dense<0.000000e+00> : vector<2x8x8xf32>
    %57 = tpu.matmul %53, %40, %cst_18 {dimension_numbers = #tpu.dot_dimension_numbers<[2], [1], [1], [2], [0, 0, 0, 1, 1, 2], [0], [0]>} : vector<2x8x8xf32>, vector<2x8x8xf32>, vector<2x8x8xf32> -> vector<2x8x8xf32>
    "tpu.trace_stop"() : () -> ()
    %58 = vector.extract_strided_slice %12 {offsets = [0, 0, 16], sizes = [2, 8, 8], strides = [1, 1, 1]} : vector<2x8x32xf32> to vector<2x8x8xf32>
    %59 = vector.extract_strided_slice %14 {offsets = [0, 0, 16], sizes = [2, 8, 8], strides = [1, 1, 1]} : vector<2x8x32xf32> to vector<2x8x8xf32>
    %60 = vector.extract_strided_slice %16 {offsets = [0, 0, 16], sizes = [2, 8, 8], strides = [1, 1, 1]} : vector<2x8x32xf32> to vector<2x8x8xf32>
    "tpu.trace_start"() <{level = 10 : i32, message = "bqd,bkd->bqk"}> : () -> ()
    %cst_19 = arith.constant dense<0.000000e+00> : vector<2x8x8xf32>
    %61 = tpu.matmul %58, %59, %cst_19 {dimension_numbers = #tpu.dot_dimension_numbers<[2], [2], [1], [1], [0, 0, 0, 1, 1, 1], [0], [0]>} : vector<2x8x8xf32>, vector<2x8x8xf32>, vector<2x8x8xf32> -> vector<2x8x8xf32>
    "tpu.trace_stop"() : () -> ()
    %cst_20 = arith.constant 0.353553385 : f32
    %62 = vector.broadcast %cst_20 : f32 to vector<2x8x8xf32>
    %63 = arith.mulf %61, %62 : vector<2x8x8xf32>
    %cst_21 = arith.constant dense<0xFF800000> : vector<2x8xf32>
    %64 = vector.multi_reduction <maximumf>, %63, %cst_21 [2] : vector<2x8x8xf32> to vector<2x8xf32>
    %65 = vector.shape_cast %64 : vector<2x8xf32> to vector<2x8x1xf32>
    %66 = vector.broadcast %65 : vector<2x8x1xf32> to vector<2x8x8xf32>
    %67 = arith.subf %63, %66 : vector<2x8x8xf32>
    %68 = math.exp %67 : vector<2x8x8xf32>
    %cst_22 = arith.constant dense<0.000000e+00> : vector<2x8xf32>
    %69 = vector.multi_reduction <add>, %68, %cst_22 [2] : vector<2x8x8xf32> to vector<2x8xf32>
    %70 = vector.shape_cast %69 : vector<2x8xf32> to vector<2x8x1xf32>
    %71 = tpu.reciprocal %70 {approx = true} : vector<2x8x1xf32> -> vector<2x8x1xf32>
    %72 = vector.broadcast %71 : vector<2x8x1xf32> to vector<2x8x8xf32>
    %73 = arith.mulf %68, %72 : vector<2x8x8xf32>
    %74 = vector.extract_strided_slice %73 {offsets = [0, 0, 0], sizes = [2, 1, 8], strides = [1, 1, 1]} : vector<2x8x8xf32> to vector<2x1x8xf32>
    %75 = vector.shape_cast %74 : vector<2x1x8xf32> to vector<2x8xf32>
    %76 = arith.addf %56, %75 : vector<2x8xf32>
    "tpu.trace_start"() <{level = 10 : i32, message = "bqk,bkd->bqd"}> : () -> ()
    %cst_23 = arith.constant dense<0.000000e+00> : vector<2x8x8xf32>
    %77 = tpu.matmul %73, %60, %cst_23 {dimension_numbers = #tpu.dot_dimension_numbers<[2], [1], [1], [2], [0, 0, 0, 1, 1, 2], [0], [0]>} : vector<2x8x8xf32>, vector<2x8x8xf32>, vector<2x8x8xf32> -> vector<2x8x8xf32>
    "tpu.trace_stop"() : () -> ()
    %78 = vector.extract_strided_slice %12 {offsets = [0, 0, 24], sizes = [2, 8, 8], strides = [1, 1, 1]} : vector<2x8x32xf32> to vector<2x8x8xf32>
    %79 = vector.extract_strided_slice %14 {offsets = [0, 0, 24], sizes = [2, 8, 8], strides = [1, 1, 1]} : vector<2x8x32xf32> to vector<2x8x8xf32>
    %80 = vector.extract_strided_slice %16 {offsets = [0, 0, 24], sizes = [2, 8, 8], strides = [1, 1, 1]} : vector<2x8x32xf32> to vector<2x8x8xf32>
    "tpu.trace_start"() <{level = 10 : i32, message = "bqd,bkd->bqk"}> : () -> ()
    %cst_24 = arith.constant dense<0.000000e+00> : vector<2x8x8xf32>
    %81 = tpu.matmul %78, %79, %cst_24 {dimension_numbers = #tpu.dot_dimension_numbers<[2], [2], [1], [1], [0, 0, 0, 1, 1, 1], [0], [0]>} : vector<2x8x8xf32>, vector<2x8x8xf32>, vector<2x8x8xf32> -> vector<2x8x8xf32>
    "tpu.trace_stop"() : () -> ()
    %cst_25 = arith.constant 0.353553385 : f32
    %82 = vector.broadcast %cst_25 : f32 to vector<2x8x8xf32>
    %83 = arith.mulf %81, %82 : vector<2x8x8xf32>
    %cst_26 = arith.constant dense<0xFF800000> : vector<2x8xf32>
    %84 = vector.multi_reduction <maximumf>, %83, %cst_26 [2] : vector<2x8x8xf32> to vector<2x8xf32>
    %85 = vector.shape_cast %84 : vector<2x8xf32> to vector<2x8x1xf32>
    %86 = vector.broadcast %85 : vector<2x8x1xf32> to vector<2x8x8xf32>
    %87 = arith.subf %83, %86 : vector<2x8x8xf32>
    %88 = math.exp %87 : vector<2x8x8xf32>
    %cst_27 = arith.constant dense<0.000000e+00> : vector<2x8xf32>
    %89 = vector.multi_reduction <add>, %88, %cst_27 [2] : vector<2x8x8xf32> to vector<2x8xf32>
    %90 = vector.shape_cast %89 : vector<2x8xf32> to vector<2x8x1xf32>
    %91 = tpu.reciprocal %90 {approx = true} : vector<2x8x1xf32> -> vector<2x8x1xf32>
    %92 = vector.broadcast %91 : vector<2x8x1xf32> to vector<2x8x8xf32>
    %93 = arith.mulf %88, %92 : vector<2x8x8xf32>
    %94 = vector.extract_strided_slice %93 {offsets = [0, 0, 0], sizes = [2, 1, 8], strides = [1, 1, 1]} : vector<2x8x8xf32> to vector<2x1x8xf32>
    %95 = vector.shape_cast %94 : vector<2x1x8xf32> to vector<2x8xf32>
    %96 = arith.addf %76, %95 : vector<2x8xf32>
    "tpu.trace_start"() <{level = 10 : i32, message = "bqk,bkd->bqd"}> : () -> ()
    %cst_28 = arith.constant dense<0.000000e+00> : vector<2x8x8xf32>
    %97 = tpu.matmul %93, %80, %cst_28 {dimension_numbers = #tpu.dot_dimension_numbers<[2], [1], [1], [2], [0, 0, 0, 1, 1, 2], [0], [0]>} : vector<2x8x8xf32>, vector<2x8x8xf32>, vector<2x8x8xf32> -> vector<2x8x8xf32>
    "tpu.trace_stop"() : () -> ()
    %98 = tpu.concatenate %37, %57, %77, %97 in 2 : vector<2x8x8xf32>, vector<2x8x8xf32>, vector<2x8x8xf32>, vector<2x8x8xf32> -> vector<2x8x32xf32>
    %99 = vector.shape_cast %98 : vector<2x8x32xf32> to vector<16x32xf32>
    %c0_29 = arith.constant 0 : index
    %c0_30 = arith.constant 0 : index
    %c0_31 = arith.constant 0 : index
    %100 = vector.load %arg6[%c0_29, %c0_30, %c0_31] : memref<1x32x32xf32, #tpu.memory_space<vmem>>, vector<1x32x32xf32>
    %101 = vector.shape_cast %100 : vector<1x32x32xf32> to vector<32x32xf32>
    %cst_32 = arith.constant dense<0.000000e+00> : vector<16x32xf32>
    %102 = tpu.matmul %99, %101, %cst_32 {dimension_numbers = #tpu.dot_dimension_numbers<[1], [0], [0], [1], [0, 0, 1, 1], [], []>} : vector<16x32xf32>, vector<32x32xf32>, vector<16x32xf32> -> vector<16x32xf32>
    %c0_33 = arith.constant 0 : index
    %c0_34 = arith.constant 0 : index
    %c0_35 = arith.constant 0 : index
    %103 = vector.load %arg7[%c0_33, %c0_34, %c0_35] : memref<1x1x32xf32, #tpu.memory_space<vmem>>, vector<1x1x32xf32>
    %104 = vector.shape_cast %103 : vector<1x1x32xf32> to vector<1x32xf32>
    %105 = vector.broadcast %104 : vector<1x32xf32> to vector<16x32xf32>
    %106 = arith.addf %102, %105 : vector<16x32xf32>
    %107 = arith.addf %3, %106 : vector<16x32xf32>
    %c0_36 = arith.constant 0 : index
    %c0_37 = arith.constant 0 : index
    %c0_38 = arith.constant 0 : index
    %108 = vector.load %arg8[%c0_36, %c0_37, %c0_38] : memref<1x1x32xf32, #tpu.memory_space<vmem>>, vector<1x1x32xf32>
    %109 = vector.shape_cast %108 : vector<1x1x32xf32> to vector<1x32xf32>
    %c0_39 = arith.constant 0 : index
    %c0_40 = arith.constant 0 : index
    %c0_41 = arith.constant 0 : index
    %110 = vector.load %arg9[%c0_39, %c0_40, %c0_41] : memref<1x1x32xf32, #tpu.memory_space<vmem>>, vector<1x1x32xf32>
    %111 = vector.shape_cast %110 : vector<1x1x32xf32> to vector<1x32xf32>
    %cst_42 = arith.constant dense<0.000000e+00> : vector<16xf32>
    %112 = vector.multi_reduction <add>, %107, %cst_42 [1] : vector<16x32xf32> to vector<16xf32>
    %113 = vector.shape_cast %112 : vector<16xf32> to vector<16x1xf32>
    %cst_43 = arith.constant 3.200000e+01 : f32
    %114 = vector.broadcast %cst_43 : f32 to vector<16x1xf32>
    %115 = arith.divf %113, %114 : vector<16x1xf32>
    %116 = vector.broadcast %115 : vector<16x1xf32> to vector<16x32xf32>
    %117 = arith.subf %107, %116 : vector<16x32xf32>
    %118 = arith.mulf %117, %117 : vector<16x32xf32>
    %cst_44 = arith.constant dense<0.000000e+00> : vector<16xf32>
    %119 = vector.multi_reduction <add>, %118, %cst_44 [1] : vector<16x32xf32> to vector<16xf32>
    %120 = vector.shape_cast %119 : vector<16xf32> to vector<16x1xf32>
    %cst_45 = arith.constant 3.200000e+01 : f32
    %121 = vector.broadcast %cst_45 : f32 to vector<16x1xf32>
    %122 = arith.divf %120, %121 : vector<16x1xf32>
    %123 = vector.broadcast %115 : vector<16x1xf32> to vector<16x32xf32>
    %124 = arith.subf %107, %123 : vector<16x32xf32>
    %cst_46 = arith.constant 9.99999996E-13 : f32
    %125 = vector.broadcast %cst_46 : f32 to vector<16x1xf32>
    %126 = arith.addf %122, %125 : vector<16x1xf32>
    %127 = math.rsqrt %126 : vector<16x1xf32>
    %128 = vector.broadcast %127 : vector<16x1xf32> to vector<16x32xf32>
    %129 = arith.mulf %124, %128 : vector<16x32xf32>
    %130 = vector.broadcast %109 : vector<1x32xf32> to vector<16x32xf32>
    %131 = arith.mulf %129, %130 : vector<16x32xf32>
    %132 = vector.broadcast %111 : vector<1x32xf32> to vector<16x32xf32>
    %133 = arith.addf %131, %132 : vector<16x32xf32>
    %c0_47 = arith.constant 0 : index
    %c0_48 = arith.constant 0 : index
    %c0_49 = arith.constant 0 : index
    %134 = vector.load %arg10[%c0_47, %c0_48, %c0_49] : memref<1x32x128xf32, #tpu.memory_space<vmem>>, vector<1x32x128xf32>
    %135 = vector.shape_cast %134 : vector<1x32x128xf32> to vector<32x128xf32>
    %cst_50 = arith.constant dense<0.000000e+00> : vector<16x128xf32>
    %136 = tpu.matmul %133, %135, %cst_50 {dimension_numbers = #tpu.dot_dimension_numbers<[1], [0], [0], [1], [0, 0, 1, 1], [], []>} : vector<16x32xf32>, vector<32x128xf32>, vector<16x128xf32> -> vector<16x128xf32>
    %c0_51 = arith.constant 0 : index
    %c0_52 = arith.constant 0 : index
    %c0_53 = arith.constant 0 : index
    %137 = vector.load %arg11[%c0_51, %c0_52, %c0_53] : memref<1x1x128xf32, #tpu.memory_space<vmem>>, vector<1x1x128xf32>
    %138 = vector.shape_cast %137 : vector<1x1x128xf32> to vector<1x128xf32>
    %139 = vector.broadcast %138 : vector<1x128xf32> to vector<16x128xf32>
    %140 = arith.addf %136, %139 : vector<16x128xf32>
    %cst_54 = arith.constant 5.000000e-01 : f32
    %141 = vector.broadcast %cst_54 : f32 to vector<16x128xf32>
    %142 = arith.mulf %141, %140 : vector<16x128xf32>
    %cst_55 = arith.constant 4.471500e-02 : f32
    %143 = vector.broadcast %cst_55 : f32 to vector<16x128xf32>
    %144 = arith.mulf %143, %140 : vector<16x128xf32>
    %145 = arith.mulf %144, %140 : vector<16x128xf32>
    %146 = arith.mulf %145, %140 : vector<16x128xf32>
    %147 = arith.addf %140, %146 : vector<16x128xf32>
    %cst_56 = arith.constant 0.797884583 : f32
    %148 = vector.broadcast %cst_56 : f32 to vector<16x128xf32>
    %149 = arith.mulf %148, %147 : vector<16x128xf32>
    %150 = math.tanh %149 : vector<16x128xf32>
    %cst_57 = arith.constant 1.000000e+00 : f32
    %151 = vector.broadcast %cst_57 : f32 to vector<16x128xf32>
    %152 = arith.addf %151, %150 : vector<16x128xf32>
    %153 = arith.mulf %142, %152 : vector<16x128xf32>
    %c0_58 = arith.constant 0 : index
    %c0_59 = arith.constant 0 : index
    %c0_60 = arith.constant 0 : index
    %154 = vector.load %arg12[%c0_58, %c0_59, %c0_60] : memref<1x128x32xf32, #tpu.memory_space<vmem>>, vector<1x128x32xf32>
    %155 = vector.shape_cast %154 : vector<1x128x32xf32> to vector<128x32xf32>
    %cst_61 = arith.constant dense<0.000000e+00> : vector<16x32xf32>
    %156 = tpu.matmul %153, %155, %cst_61 {dimension_numbers = #tpu.dot_dimension_numbers<[1], [0], [0], [1], [0, 0, 1, 1], [], []>} : vector<16x128xf32>, vector<128x32xf32>, vector<16x32xf32> -> vector<16x32xf32>
    %c0_62 = arith.constant 0 : index
    %c0_63 = arith.constant 0 : index
    %c0_64 = arith.constant 0 : index
    %157 = vector.load %arg13[%c0_62, %c0_63, %c0_64] : memref<1x1x32xf32, #tpu.memory_space<vmem>>, vector<1x1x32xf32>
    %158 = vector.shape_cast %157 : vector<1x1x32xf32> to vector<1x32xf32>
    %159 = vector.broadcast %158 : vector<1x32xf32> to vector<16x32xf32>
    %160 = arith.addf %156, %159 : vector<16x32xf32>
    %161 = arith.addf %133, %160 : vector<16x32xf32>
    %c0_65 = arith.constant 0 : index
    %c0_66 = arith.constant 0 : index
    %c0_67 = arith.constant 0 : index
    %162 = vector.load %arg14[%c0_65, %c0_66, %c0_67] : memref<1x1x32xf32, #tpu.memory_space<vmem>>, vector<1x1x32xf32>
    %163 = vector.shape_cast %162 : vector<1x1x32xf32> to vector<1x32xf32>
    %c0_68 = arith.constant 0 : index
    %c0_69 = arith.constant 0 : index
    %c0_70 = arith.constant 0 : index
    %164 = vector.load %arg15[%c0_68, %c0_69, %c0_70] : memref<1x1x32xf32, #tpu.memory_space<vmem>>, vector<1x1x32xf32>
    %165 = vector.shape_cast %164 : vector<1x1x32xf32> to vector<1x32xf32>
    %cst_71 = arith.constant dense<0.000000e+00> : vector<16xf32>
    %166 = vector.multi_reduction <add>, %161, %cst_71 [1] : vector<16x32xf32> to vector<16xf32>
    %167 = vector.shape_cast %166 : vector<16xf32> to vector<16x1xf32>
    %cst_72 = arith.constant 3.200000e+01 : f32
    %168 = vector.broadcast %cst_72 : f32 to vector<16x1xf32>
    %169 = arith.divf %167, %168 : vector<16x1xf32>
    %170 = vector.broadcast %169 : vector<16x1xf32> to vector<16x32xf32>
    %171 = arith.subf %161, %170 : vector<16x32xf32>
    %172 = arith.mulf %171, %171 : vector<16x32xf32>
    %cst_73 = arith.constant dense<0.000000e+00> : vector<16xf32>
    %173 = vector.multi_reduction <add>, %172, %cst_73 [1] : vector<16x32xf32> to vector<16xf32>
    %174 = vector.shape_cast %173 : vector<16xf32> to vector<16x1xf32>
    %cst_74 = arith.constant 3.200000e+01 : f32
    %175 = vector.broadcast %cst_74 : f32 to vector<16x1xf32>
    %176 = arith.divf %174, %175 : vector<16x1xf32>
    %177 = vector.broadcast %169 : vector<16x1xf32> to vector<16x32xf32>
    %178 = arith.subf %161, %177 : vector<16x32xf32>
    %cst_75 = arith.constant 9.99999996E-13 : f32
    %179 = vector.broadcast %cst_75 : f32 to vector<16x1xf32>
    %180 = arith.addf %176, %179 : vector<16x1xf32>
    %181 = math.rsqrt %180 : vector<16x1xf32>
    %182 = vector.broadcast %181 : vector<16x1xf32> to vector<16x32xf32>
    %183 = arith.mulf %178, %182 : vector<16x32xf32>
    %184 = vector.broadcast %163 : vector<1x32xf32> to vector<16x32xf32>
    %185 = arith.mulf %183, %184 : vector<16x32xf32>
    %186 = vector.broadcast %165 : vector<1x32xf32> to vector<16x32xf32>
    %187 = arith.addf %185, %186 : vector<16x32xf32>
    %c0_76 = arith.constant 0 : index
    %c0_77 = arith.constant 0 : index
    %188 = vector.load %arg22[%c0_76, %c0_77] : memref<16x32xf32, #tpu.memory_space<vmem>>, vector<16x32xf32>
    tpu.vector_store %arg22[%c0_76, %c0_77], %187 {strides = array<i32>} : memref<16x32xf32, #tpu.memory_space<vmem>>, vector<16x32xf32>,
    %c11_i32 = arith.constant 11 : i32
    %189 = arith.cmpi eq, %arg0, %c11_i32 : i32
    %190 = arith.extui %189 : i1 to i32
    %c0_i32_78 = arith.constant 0 : i32
    %191 = arith.cmpi ne, %190, %c0_i32_78 : i32
    scf.if %191 {
      %192 = vector.shape_cast %187 : vector<16x32xf32> to vector<2x8x32xf32>
      %193 = vector.extract_strided_slice %192 {offsets = [0, 0, 0], sizes = [2, 1, 32], strides = [1, 1, 1]} : vector<2x8x32xf32> to vector<2x1x32xf32>
      %194 = vector.shape_cast %193 : vector<2x1x32xf32> to vector<2x32xf32>
      %c0_79 = arith.constant 0 : index
      %c0_80 = arith.constant 0 : index
      %195 = vector.load %arg16[%c0_79, %c0_80] : memref<32x32xf32, #tpu.memory_space<vmem>>, vector<32x32xf32>
      %cst_81 = arith.constant dense<0.000000e+00> : vector<2x32xf32>
      %196 = tpu.matmul %194, %195, %cst_81 {dimension_numbers = #tpu.dot_dimension_numbers<[1], [0], [0], [1], [0, 0, 1, 1], [], []>} : vector<2x32xf32>, vector<32x32xf32>, vector<2x32xf32> -> vector<2x32xf32>
      %c0_82 = arith.constant 0 : index
      %c0_83 = arith.constant 0 : index
      %197 = vector.load %arg17[%c0_82, %c0_83] : memref<1x32xf32, #tpu.memory_space<vmem>>, vector<1x32xf32>
      %198 = vector.broadcast %197 : vector<1x32xf32> to vector<2x32xf32>
      %199 = arith.addf %196, %198 : vector<2x32xf32>
      %200 = math.tanh %199 : vector<2x32xf32>
      %c0_84 = arith.constant 0 : index
      %c0_85 = arith.constant 0 : index
      %201 = vector.load %arg18[%c0_84, %c0_85] : memref<32x2xf32, #tpu.memory_space<vmem>>, vector<32x2xf32>
      %cst_86 = arith.constant dense<0.000000e+00> : vector<2x2xf32>
      %202 = tpu.matmul %200, %201, %cst_86 {dimension_numbers = #tpu.dot_dimension_numbers<[1], [0], [0], [1], [0, 0, 1, 1], [], []>} : vector<2x32xf32>, vector<32x2xf32>, vector<2x2xf32> -> vector<2x2xf32>
      %c0_87 = arith.constant 0 : index
      %c0_88 = arith.constant 0 : index
      %203 = vector.load %arg19[%c0_87, %c0_88] : memref<1x2xf32, #tpu.memory_space<vmem>>, vector<1x2xf32>
      %204 = vector.broadcast %203 : vector<1x2xf32> to vector<2x2xf32>
      %205 = arith.addf %202, %204 : vector<2x2xf32>
      %c0_89 = arith.constant 0 : index
      %c0_90 = arith.constant 0 : index
      %206 = vector.load %arg20[%c0_89, %c0_90] : memref<2x2xf32, #tpu.memory_space<vmem>>, vector<2x2xf32>
      tpu.vector_store %arg20[%c0_89, %c0_90], %205 {strides = array<i32>} : memref<2x2xf32, #tpu.memory_space<vmem>>, vector<2x2xf32>,
      %c0_91 = arith.constant 0 : index
      %c0_92 = arith.constant 0 : index
      %207 = vector.load %arg21[%c0_91, %c0_92] : memref<2x8xf32, #tpu.memory_space<vmem>>, vector<2x8xf32>
      tpu.vector_store %arg21[%c0_91, %c0_92], %96 {strides = array<i32>} : memref<2x8xf32, #tpu.memory_space<vmem>>, vector<2x8xf32>,
    } else {
    }
    return
  }
  func.func @transform_0(%arg0: i32) -> (i32, i32) {
    %c0_i32 = arith.constant 0 : i32
    %c0_i32_0 = arith.constant 0 : i32
    %c0_i32_1 = arith.constant 0 : i32
    return %c0_i32, %c0_i32_0 : i32, i32
  }
  func.func @transform_1(%arg0: i32) -> (i32, i32) {
    %c0_i32 = arith.constant 0 : i32
    %c0_i32_0 = arith.constant 0 : i32
    %c0_i32_1 = arith.constant 0 : i32
    return %c0_i32, %c0_i32_0 : i32, i32
  }
  func.func @transform_2(%arg0: i32) -> (i32, i32) {
    %c0_i32 = arith.constant 0 : i32
    %c0_i32_0 = arith.constant 0 : i32
    %c0_i32_1 = arith.constant 0 : i32
    return %c0_i32, %c0_i32_0 : i32, i32
  }
  func.func @transform_3(%arg0: i32) -> (i32, i32, i32) {
    %c0_i32 = arith.constant 0 : i32
    %c0_i32_0 = arith.constant 0 : i32
    %c0_i32_1 = arith.constant 0 : i32
    return %arg0, %c0_i32, %c0_i32_0 : i32, i32, i32
  }
  func.func @transform_4(%arg0: i32) -> (i32, i32, i32) {
    %c0_i32 = arith.constant 0 : i32
    %c0_i32_0 = arith.constant 0 : i32
    %c0_i32_1 = arith.constant 0 : i32
    return %arg0, %c0_i32, %c0_i32_0 : i32, i32, i32
  }
  func.func @transform_5(%arg0: i32) -> (i32, i32, i32) {
    %c0_i32 = arith.constant 0 : i32
    %c0_i32_0 = arith.constant 0 : i32
    %c0_i32_1 = arith.constant 0 : i32
    return %arg0, %c0_i32, %c0_i32_0 : i32, i32, i32
  }
  func.func @transform_6(%arg0: i32) -> (i32, i32, i32) {
    %c0_i32 = arith.constant 0 : i32
    %c0_i32_0 = arith.constant 0 : i32
    %c0_i32_1 = arith.constant 0 : i32
    return %arg0, %c0_i32, %c0_i32_0 : i32, i32, i32
  }
  func.func @transform_7(%arg0: i32) -> (i32, i32, i32) {
    %c0_i32 = arith.constant 0 : i32
    %c0_i32_0 = arith.constant 0 : i32
    %c0_i32_1 = arith.constant 0 : i32
    return %arg0, %c0_i32, %c0_i32_0 : i32, i32, i32
  }
  func.func @transform_8(%arg0: i32) -> (i32, i32, i32) {
    %c0_i32 = arith.constant 0 : i32
    %c0_i32_0 = arith.constant 0 : i32
    %c0_i32_1 = arith.constant 0 : i32
    return %arg0, %c0_i32, %c0_i32_0 : i32, i32, i32
  }
  func.func @transform_9(%arg0: i32) -> (i32, i32, i32) {
    %c0_i32 = arith.constant 0 : i32
    %c0_i32_0 = arith.constant 0 : i32
    %c0_i32_1 = arith.constant 0 : i32
    return %arg0, %c0_i32, %c0_i32_0 : i32, i32, i32
  }
  func.func @transform_10(%arg0: i32) -> (i32, i32, i32) {
    %c0_i32 = arith.constant 0 : i32
    %c0_i32_0 = arith.constant 0 : i32
    %c0_i32_1 = arith.constant 0 : i32
    return %arg0, %c0_i32, %c0_i32_0 : i32, i32, i32
  }
  func.func @transform_11(%arg0: i32) -> (i32, i32, i32) {
    %c0_i32 = arith.constant 0 : i32
    %c0_i32_0 = arith.constant 0 : i32
    %c0_i32_1 = arith.constant 0 : i32
    return %arg0, %c0_i32, %c0_i32_0 : i32, i32, i32
  }
  func.func @transform_12(%arg0: i32) -> (i32, i32, i32) {
    %c0_i32 = arith.constant 0 : i32
    %c0_i32_0 = arith.constant 0 : i32
    %c0_i32_1 = arith.constant 0 : i32
    return %arg0, %c0_i32, %c0_i32_0 : i32, i32, i32
  }
  func.func @transform_13(%arg0: i32) -> (i32, i32, i32) {
    %c0_i32 = arith.constant 0 : i32
    %c0_i32_0 = arith.constant 0 : i32
    %c0_i32_1 = arith.constant 0 : i32
    return %arg0, %c0_i32, %c0_i32_0 : i32, i32, i32
  }
  func.func @transform_14(%arg0: i32) -> (i32, i32, i32) {
    %c0_i32 = arith.constant 0 : i32
    %c0_i32_0 = arith.constant 0 : i32
    %c0_i32_1 = arith.constant 0 : i32
    return %arg0, %c0_i32, %c0_i32_0 : i32, i32, i32
  }
  func.func @transform_15(%arg0: i32) -> (i32, i32) {
    %c0_i32 = arith.constant 0 : i32
    %c0_i32_0 = arith.constant 0 : i32
    %c0_i32_1 = arith.constant 0 : i32
    return %c0_i32, %c0_i32_0 : i32, i32
  }
  func.func @transform_16(%arg0: i32) -> (i32, i32) {
    %c0_i32 = arith.constant 0 : i32
    %c0_i32_0 = arith.constant 0 : i32
    %c0_i32_1 = arith.constant 0 : i32
    return %c0_i32, %c0_i32_0 : i32, i32
  }
  func.func @transform_17(%arg0: i32) -> (i32, i32) {
    %c0_i32 = arith.constant 0 : i32
    %c0_i32_0 = arith.constant 0 : i32
    %c0_i32_1 = arith.constant 0 : i32
    return %c0_i32, %c0_i32_0 : i32, i32
  }
  func.func @transform_18(%arg0: i32) -> (i32, i32) {
    %c0_i32 = arith.constant 0 : i32
    %c0_i32_0 = arith.constant 0 : i32
    %c0_i32_1 = arith.constant 0 : i32
    return %c0_i32, %c0_i32_0 : i32, i32
  }
  func.func @transform_19(%arg0: i32) -> (i32, i32) {
    %c0_i32 = arith.constant 0 : i32
    %c0_i32_0 = arith.constant 0 : i32
    %c0_i32_1 = arith.constant 0 : i32
    return %c0_i32, %c0_i32_0 : i32, i32
  }
  func.func @transform_20(%arg0: i32) -> (i32, i32) {
    %c0_i32 = arith.constant 0 : i32
    %c0_i32_0 = arith.constant 0 : i32
    %c0_i32_1 = arith.constant 0 : i32
    return %c0_i32, %c0_i32_0 : i32, i32
  }
}

</mosaic_0001>

<llo_original>
// kernel: bert_rel_simple_forward.1
$region0: #{bert_rel_simple_forward.1}
  #allocation0 [shape = 'u32[]', space=smem, size = 0x4, offset = 0x4, fixed_abs, tag = 'smem constant byte address 0x4 - core index']
  #allocation1 [shape = 'u32[144,128]{1,0:T(1,128)}', space=vmem, size = 0x12000, scoped, tag = 'internal scratch']
  #allocation2 [shape = 'f32[16,32]{1,0:T(8,128)}', space=vmem, size = 0x2000, scoped, tag = 'scratch operand']
  %s0 = inlined_call_operand.vmem [shape: f32[16,32], index: 0, kind: input, shape index: {}]
  %s1 = inlined_call_operand.vmem [shape: f32[1,32], index: 1, kind: input, shape index: {}]
  %s2 = inlined_call_operand.vmem [shape: f32[1,32], index: 2, kind: input, shape index: {}]
  %s3 = inlined_call_operand.vmem [shape: f32[12,32,96], index: 3, kind: input, shape index: {}]
  %s4 = inlined_call_operand.vmem [shape: f32[12,1,96], index: 4, kind: input, shape index: {}]
  %s5 = inlined_call_operand.vmem [shape: f32[12,32,32], index: 5, kind: input, shape index: {}]
  %s6 = inlined_call_operand.vmem [shape: f32[12,1,32], index: 6, kind: input, shape index: {}]
  %s7 = inlined_call_operand.vmem [shape: f32[12,1,32], index: 7, kind: input, shape index: {}]
  %s8 = inlined_call_operand.vmem [shape: f32[12,1,32], index: 8, kind: input, shape index: {}]
  %s9 = inlined_call_operand.vmem [shape: f32[12,32,128], index: 9, kind: input, shape index: {}]
  %s10 = inlined_call_operand.vmem [shape: f32[12,1,128], index: 10, kind: input, shape index: {}]
  %s11 = inlined_call_operand.vmem [shape: f32[12,128,32], index: 11, kind: input, shape index: {}]
  %s12 = inlined_call_operand.vmem [shape: f32[12,1,32], index: 12, kind: input, shape index: {}]
  %s13 = inlined_call_operand.vmem [shape: f32[12,1,32], index: 13, kind: input, shape index: {}]
  %s14 = inlined_call_operand.vmem [shape: f32[12,1,32], index: 14, kind: input, shape index: {}]
  %s15 = inlined_call_operand.vmem [shape: f32[32,32], index: 15, kind: input, shape index: {}]
  %s16 = inlined_call_operand.vmem [shape: f32[1,32], index: 16, kind: input, shape index: {}]
  %s17 = inlined_call_operand.vmem [shape: f32[32,2], index: 17, kind: input, shape index: {}]
  %s18 = inlined_call_operand.vmem [shape: f32[1,2], index: 18, kind: input, shape index: {}]
  %s19 = inlined_call_operand.hbm [shape: f32[2,2], index: 19, kind: output, shape index: {0}]
  %s20 = inlined_call_operand.hbm [shape: f32[2,8], index: 20, kind: output, shape index: {1}]
  %21 = xla_tuple %s19, %s20
  %s22 = sld [smem:[#allocation0]]
  $region125: #{bert_rel_simple_forward.1} parent=0
    _
  %s24 = ssub.s32 1, %s22
  %s25 = scalar_select 0, %s24, %s22
  $region1: #{bert_rel_simple_forward.1} parent=0
    #allocation3 [shape = 'u8[1024]{0}', space=vmem, size = 0x400, scoped, tag = 'output window, operand 0, single buffered']
    #allocation4 [shape = 's32[2]{0}', space=sflag, size = 0x8, scoped, tag = 'scoped memory for bert_rel_simple_forward.1']
    #allocation5 [shape = 'u8[1024]{0}', space=vmem, size = 0x400, scoped, tag = 'output window, operand 1, single buffered']
    #allocation6 [shape = 's32[1]{0}', space=sflag, size = 0x4, scoped, tag = 'scoped memory for bert_rel_simple_forward.1']
    %26 = vsyncpa [#allocation4], 0
    %27 = vsyncpa [#allocation6], 0
    loop: start=0, step=1, limit=14
    $region2: #{bert_rel_simple_forward.1} parent=1 // loop_pre_header
      _
    $region3: #{bert_rel_simple_forward.1} parent=1 // loop_header
      %s29 = sphi 0, %s33
      %p30 = scmp.ge.s32.totalorder %s29, 14
      %s37 = sphi 0, %s37
      %s39 = sphi 0, %s37
      %s40 = sphi 0, %s39
      %s54 = sphi 0, %s40
      %s58 = sphi 0, %s58
      %s60 = sphi 0, %s58
      %s61 = sphi 0, %s60
      %s75 = sphi 0, %s61
      %s79 = sphi 0, %s79
      %s81 = sphi 0, %s79
      %s82 = sphi 0, %s81
      %s96 = sphi 0, %s82
      %s102 = sphi 0, %s104
      %s105 = sphi 0, %s102
      %s106 = sphi 0, %s105
      %s122 = sphi 0, %s106
      %s128 = sphi 0, %s130
      %s131 = sphi 0, %s128
      %s132 = sphi 0, %s131
      %s148 = sphi 0, %s132
      %s154 = sphi 0, %s156
      %s157 = sphi 0, %s154
      %s158 = sphi 0, %s157
      %s174 = sphi 0, %s158
      %s180 = sphi 0, %s182
      %s183 = sphi 0, %s180
      %s184 = sphi 0, %s183
      %s200 = sphi 0, %s184
      %s206 = sphi 0, %s208
      %s209 = sphi 0, %s206
      %s210 = sphi 0, %s209
      %s226 = sphi 0, %s210
      %s232 = sphi 0, %s234
      %s235 = sphi 0, %s232
      %s236 = sphi 0, %s235
      %s252 = sphi 0, %s236
      %s258 = sphi 0, %s260
      %s261 = sphi 0, %s258
      %s262 = sphi 0, %s261
      %s278 = sphi 0, %s262
      %s284 = sphi 0, %s286
      %s287 = sphi 0, %s284
      %s288 = sphi 0, %s287
      %s304 = sphi 0, %s288
      %s310 = sphi 0, %s312
      %s313 = sphi 0, %s310
      %s314 = sphi 0, %s313
      %s330 = sphi 0, %s314
      %s336 = sphi 0, %s338
      %s339 = sphi 0, %s336
      %s340 = sphi 0, %s339
      %s356 = sphi 0, %s340
      %s362 = sphi 0, %s364
      %s365 = sphi 0, %s362
      %s366 = sphi 0, %s365
      %s382 = sphi 0, %s366
      %s388 = sphi 0, %s390
      %s391 = sphi 0, %s388
      %s392 = sphi 0, %s391
      %s408 = sphi 0, %s392
      %s412 = sphi 0, %s412
      %s414 = sphi 0, %s412
      %s415 = sphi 0, %s414
      %s429 = sphi 0, %s415
      %s433 = sphi 0, %s433
      %s435 = sphi 0, %s433
      %s436 = sphi 0, %s435
      %s450 = sphi 0, %s436
      %s454 = sphi 0, %s454
      %s456 = sphi 0, %s454
      %s457 = sphi 0, %s456
      %s471 = sphi 0, %s457
      %s475 = sphi 0, %s475
      %s477 = sphi 0, %s475
      %s478 = sphi 0, %s477
      %s492 = sphi 0, %s478
      %s496 = sphi 0, %s496
      %s498 = sphi 0, %s496
      %s499 = sphi 0, %s498
      %s513 = sphi 0, %s499
      %s517 = sphi 0, %s517
      %s519 = sphi 0, %s517
      %s520 = sphi 0, %s519
      %s534 = sphi 0, %s520
    $region4: #{bert_rel_simple_forward.1} parent=1 // loop_header_branch
      %32 = sbr.rel (%p30) target = $region8
    $region5: #{bert_rel_simple_forward.1} parent=1 // loop_body
      %s34 = ssub.s32 %s29, 1
      %s35 = ssub.s32 %s29, 2
      %s36 = sadd.s32 %s29, 1
      %s38 = sadd.s32 %s37, 1
      %p41 = scmp.eq.s32.totalorder %s29, 11
      %p42 = scmp.ne.s32.totalorder %s37, %s39
      %p43 = scmp.eq.s32.totalorder %s29, 0
      %p44 = por %p42, %p43
      %p45 = scmp.ne.s32.totalorder %s37, %s39
      %p46 = scmp.eq.s32.totalorder %s34, 11
      %p47 = por %p45, %p46
      %p48 = scmp.ne.s32.totalorder %s39, %s40
      %p49 = scmp.eq.s32.totalorder %s34, 0
      %p50 = por %p48, %p49
      %p51 = scmp.ne.s32.totalorder %s39, %s40
      %p52 = scmp.eq.s32.totalorder %s35, 11
      %p53 = por %p51, %p52
      %p55 = scmp.ne.s32.totalorder %s40, %s54
      %p56 = scmp.eq.s32.totalorder %s35, 0
      %p57 = por %p55, %p56
      %s59 = sadd.s32 %s58, 1
      %p62 = scmp.eq.s32.totalorder %s29, 11
      %p63 = scmp.ne.s32.totalorder %s58, %s60
      %p64 = scmp.eq.s32.totalorder %s29, 0
      %p65 = por %p63, %p64
      %p66 = scmp.ne.s32.totalorder %s58, %s60
      %p67 = scmp.eq.s32.totalorder %s34, 11
      %p68 = por %p66, %p67
      %p69 = scmp.ne.s32.totalorder %s60, %s61
      %p70 = scmp.eq.s32.totalorder %s34, 0
      %p71 = por %p69, %p70
      %p72 = scmp.ne.s32.totalorder %s60, %s61
      %p73 = scmp.eq.s32.totalorder %s35, 11
      %p74 = por %p72, %p73
      %p76 = scmp.ne.s32.totalorder %s61, %s75
      %p77 = scmp.eq.s32.totalorder %s35, 0
      %p78 = por %p76, %p77
      %s80 = sadd.s32 %s79, 1
      %p83 = scmp.eq.s32.totalorder %s29, 11
      %p84 = scmp.ne.s32.totalorder %s79, %s81
      %p85 = scmp.eq.s32.totalorder %s29, 0
      %p86 = por %p84, %p85
      %p87 = scmp.ne.s32.totalorder %s79, %s81
      %p88 = scmp.eq.s32.totalorder %s34, 11
      %p89 = por %p87, %p88
      %p90 = scmp.ne.s32.totalorder %s81, %s82
      %p91 = scmp.eq.s32.totalorder %s34, 0
      %p92 = por %p90, %p91
      %p93 = scmp.ne.s32.totalorder %s81, %s82
      %p94 = scmp.eq.s32.totalorder %s35, 11
      %p95 = por %p93, %p94
      %p97 = scmp.ne.s32.totalorder %s82, %s96
      %p98 = scmp.eq.s32.totalorder %s35, 0
      %p99 = por %p97, %p98
      %s100 = ssub.s32 %s29, %s36
      %p101 = scmp.eq.s32.totalorder %s100, 0
      %s103 = sadd.s32 %s102, 1
      %s104 = scalar_select %p101, %s102, %s103
      %p107 = pneg %p101
      %p108 = scmp.eq.s32.totalorder %s29, 11
      %p109 = por %p107, %p108
      %p110 = scmp.ne.s32.totalorder %s102, %s105
      %p111 = scmp.eq.s32.totalorder %s29, 0
      %p112 = por %p110, %p111
      %p113 = scmp.ne.s32.totalorder %s102, %s105
      %p114 = scmp.eq.s32.totalorder %s34, 11
      %p115 = por %p113, %p114
      %p116 = scmp.ne.s32.totalorder %s105, %s106
      %p117 = scmp.eq.s32.totalorder %s34, 0
      %p118 = por %p116, %p117
      %p119 = scmp.ne.s32.totalorder %s105, %s106
      %p120 = scmp.eq.s32.totalorder %s35, 11
      %p121 = por %p119, %p120
      %p123 = scmp.ne.s32.totalorder %s106, %s122
      %p124 = scmp.eq.s32.totalorder %s35, 0
      %p125 = por %p123, %p124
      %s126 = ssub.s32 %s29, %s36
      %p127 = scmp.eq.s32.totalorder %s126, 0
      %s129 = sadd.s32 %s128, 1
      %s130 = scalar_select %p127, %s128, %s129
      %p133 = pneg %p127
      %p134 = scmp.eq.s32.totalorder %s29, 11
      %p135 = por %p133, %p134
      %p136 = scmp.ne.s32.totalorder %s128, %s131
      %p137 = scmp.eq.s32.totalorder %s29, 0
      %p138 = por %p136, %p137
      %p139 = scmp.ne.s32.totalorder %s128, %s131
      %p140 = scmp.eq.s32.totalorder %s34, 11
      %p141 = por %p139, %p140
      %p142 = scmp.ne.s32.totalorder %s131, %s132
      %p143 = scmp.eq.s32.totalorder %s34, 0
      %p144 = por %p142, %p143
      %p145 = scmp.ne.s32.totalorder %s131, %s132
      %p146 = scmp.eq.s32.totalorder %s35, 11
      %p147 = por %p145, %p146
      %p149 = scmp.ne.s32.totalorder %s132, %s148
      %p150 = scmp.eq.s32.totalorder %s35, 0
      %p151 = por %p149, %p150
      %s152 = ssub.s32 %s29, %s36
      %p153 = scmp.eq.s32.totalorder %s152, 0
      %s155 = sadd.s32 %s154, 1
      %s156 = scalar_select %p153, %s154, %s155
      %p159 = pneg %p153
      %p160 = scmp.eq.s32.totalorder %s29, 11
      %p161 = por %p159, %p160
      %p162 = scmp.ne.s32.totalorder %s154, %s157
      %p163 = scmp.eq.s32.totalorder %s29, 0
      %p164 = por %p162, %p163
      %p165 = scmp.ne.s32.totalorder %s154, %s157
      %p166 = scmp.eq.s32.totalorder %s34, 11
      %p167 = por %p165, %p166
      %p168 = scmp.ne.s32.totalorder %s157, %s158
      %p169 = scmp.eq.s32.totalorder %s34, 0
      %p170 = por %p168, %p169
      %p171 = scmp.ne.s32.totalorder %s157, %s158
      %p172 = scmp.eq.s32.totalorder %s35, 11
      %p173 = por %p171, %p172
      %p175 = scmp.ne.s32.totalorder %s158, %s174
      %p176 = scmp.eq.s32.totalorder %s35, 0
      %p177 = por %p175, %p176
      %s178 = ssub.s32 %s29, %s36
      %p179 = scmp.eq.s32.totalorder %s178, 0
      %s181 = sadd.s32 %s180, 1
      %s182 = scalar_select %p179, %s180, %s181
      %p185 = pneg %p179
      %p186 = scmp.eq.s32.totalorder %s29, 11
      %p187 = por %p185, %p186
      %p188 = scmp.ne.s32.totalorder %s180, %s183
      %p189 = scmp.eq.s32.totalorder %s29, 0
      %p190 = por %p188, %p189
      %p191 = scmp.ne.s32.totalorder %s180, %s183
      %p192 = scmp.eq.s32.totalorder %s34, 11
      %p193 = por %p191, %p192
      %p194 = scmp.ne.s32.totalorder %s183, %s184
      %p195 = scmp.eq.s32.totalorder %s34, 0
      %p196 = por %p194, %p195
      %p197 = scmp.ne.s32.totalorder %s183, %s184
      %p198 = scmp.eq.s32.totalorder %s35, 11
      %p199 = por %p197, %p198
      %p201 = scmp.ne.s32.totalorder %s184, %s200
      %p202 = scmp.eq.s32.totalorder %s35, 0
      %p203 = por %p201, %p202
      %s204 = ssub.s32 %s29, %s36
      %p205 = scmp.eq.s32.totalorder %s204, 0
      %s207 = sadd.s32 %s206, 1
      %s208 = scalar_select %p205, %s206, %s207
      %p211 = pneg %p205
      %p212 = scmp.eq.s32.totalorder %s29, 11
      %p213 = por %p211, %p212
      %p214 = scmp.ne.s32.totalorder %s206, %s209
      %p215 = scmp.eq.s32.totalorder %s29, 0
      %p216 = por %p214, %p215
      %p217 = scmp.ne.s32.totalorder %s206, %s209
      %p218 = scmp.eq.s32.totalorder %s34, 11
      %p219 = por %p217, %p218
      %p220 = scmp.ne.s32.totalorder %s209, %s210
      %p221 = scmp.eq.s32.totalorder %s34, 0
      %p222 = por %p220, %p221
      %p223 = scmp.ne.s32.totalorder %s209, %s210
      %p224 = scmp.eq.s32.totalorder %s35, 11
      %p225 = por %p223, %p224
      %p227 = scmp.ne.s32.totalorder %s210, %s226
      %p228 = scmp.eq.s32.totalorder %s35, 0
      %p229 = por %p227, %p228
      %s230 = ssub.s32 %s29, %s36
      %p231 = scmp.eq.s32.totalorder %s230, 0
      %s233 = sadd.s32 %s232, 1
      %s234 = scalar_select %p231, %s232, %s233
      %p237 = pneg %p231
      %p238 = scmp.eq.s32.totalorder %s29, 11
      %p239 = por %p237, %p238
      %p240 = scmp.ne.s32.totalorder %s232, %s235
      %p241 = scmp.eq.s32.totalorder %s29, 0
      %p242 = por %p240, %p241
      %p243 = scmp.ne.s32.totalorder %s232, %s235
      %p244 = scmp.eq.s32.totalorder %s34, 11
      %p245 = por %p243, %p244
      %p246 = scmp.ne.s32.totalorder %s235, %s236
      %p247 = scmp.eq.s32.totalorder %s34, 0
      %p248 = por %p246, %p247
      %p249 = scmp.ne.s32.totalorder %s235, %s236
      %p250 = scmp.eq.s32.totalorder %s35, 11
      %p251 = por %p249, %p250
      %p253 = scmp.ne.s32.totalorder %s236, %s252
      %p254 = scmp.eq.s32.totalorder %s35, 0
      %p255 = por %p253, %p254
      %s256 = ssub.s32 %s29, %s36
      %p257 = scmp.eq.s32.totalorder %s256, 0
      %s259 = sadd.s32 %s258, 1
      %s260 = scalar_select %p257, %s258, %s259
      %p263 = pneg %p257
      %p264 = scmp.eq.s32.totalorder %s29, 11
      %p265 = por %p263, %p264
      %p266 = scmp.ne.s32.totalorder %s258, %s261
      %p267 = scmp.eq.s32.totalorder %s29, 0
      %p268 = por %p266, %p267
      %p269 = scmp.ne.s32.totalorder %s258, %s261
      %p270 = scmp.eq.s32.totalorder %s34, 11
      %p271 = por %p269, %p270
      %p272 = scmp.ne.s32.totalorder %s261, %s262
      %p273 = scmp.eq.s32.totalorder %s34, 0
      %p274 = por %p272, %p273
      %p275 = scmp.ne.s32.totalorder %s261, %s262
      %p276 = scmp.eq.s32.totalorder %s35, 11
      %p277 = por %p275, %p276
      %p279 = scmp.ne.s32.totalorder %s262, %s278
      %p280 = scmp.eq.s32.totalorder %s35, 0
      %p281 = por %p279, %p280
      %s282 = ssub.s32 %s29, %s36
      %p283 = scmp.eq.s32.totalorder %s282, 0
      %s285 = sadd.s32 %s284, 1
      %s286 = scalar_select %p283, %s284, %s285
      %p289 = pneg %p283
      %p290 = scmp.eq.s32.totalorder %s29, 11
      %p291 = por %p289, %p290
      %p292 = scmp.ne.s32.totalorder %s284, %s287
      %p293 = scmp.eq.s32.totalorder %s29, 0
      %p294 = por %p292, %p293
      %p295 = scmp.ne.s32.totalorder %s284, %s287
      %p296 = scmp.eq.s32.totalorder %s34, 11
      %p297 = por %p295, %p296
      %p298 = scmp.ne.s32.totalorder %s287, %s288
      %p299 = scmp.eq.s32.totalorder %s34, 0
      %p300 = por %p298, %p299
      %p301 = scmp.ne.s32.totalorder %s287, %s288
      %p302 = scmp.eq.s32.totalorder %s35, 11
      %p303 = por %p301, %p302
      %p305 = scmp.ne.s32.totalorder %s288, %s304
      %p306 = scmp.eq.s32.totalorder %s35, 0
      %p307 = por %p305, %p306
      %s308 = ssub.s32 %s29, %s36
      %p309 = scmp.eq.s32.totalorder %s308, 0
      %s311 = sadd.s32 %s310, 1
      %s312 = scalar_select %p309, %s310, %s311
      %p315 = pneg %p309
      %p316 = scmp.eq.s32.totalorder %s29, 11
      %p317 = por %p315, %p316
      %p318 = scmp.ne.s32.totalorder %s310, %s313
      %p319 = scmp.eq.s32.totalorder %s29, 0
      %p320 = por %p318, %p319
      %p321 = scmp.ne.s32.totalorder %s310, %s313
      %p322 = scmp.eq.s32.totalorder %s34, 11
      %p323 = por %p321, %p322
      %p324 = scmp.ne.s32.totalorder %s313, %s314
      %p325 = scmp.eq.s32.totalorder %s34, 0
      %p326 = por %p324, %p325
      %p327 = scmp.ne.s32.totalorder %s313, %s314
      %p328 = scmp.eq.s32.totalorder %s35, 11
      %p329 = por %p327, %p328
      %p331 = scmp.ne.s32.totalorder %s314, %s330
      %p332 = scmp.eq.s32.totalorder %s35, 0
      %p333 = por %p331, %p332
      %s334 = ssub.s32 %s29, %s36
      %p335 = scmp.eq.s32.totalorder %s334, 0
      %s337 = sadd.s32 %s336, 1
      %s338 = scalar_select %p335, %s336, %s337
      %p341 = pneg %p335
      %p342 = scmp.eq.s32.totalorder %s29, 11
      %p343 = por %p341, %p342
      %p344 = scmp.ne.s32.totalorder %s336, %s339
      %p345 = scmp.eq.s32.totalorder %s29, 0
      %p346 = por %p344, %p345
      %p347 = scmp.ne.s32.totalorder %s336, %s339
      %p348 = scmp.eq.s32.totalorder %s34, 11
      %p349 = por %p347, %p348
      %p350 = scmp.ne.s32.totalorder %s339, %s340
      %p351 = scmp.eq.s32.totalorder %s34, 0
      %p352 = por %p350, %p351
      %p353 = scmp.ne.s32.totalorder %s339, %s340
      %p354 = scmp.eq.s32.totalorder %s35, 11
      %p355 = por %p353, %p354
      %p357 = scmp.ne.s32.totalorder %s340, %s356
      %p358 = scmp.eq.s32.totalorder %s35, 0
      %p359 = por %p357, %p358
      %s360 = ssub.s32 %s29, %s36
      %p361 = scmp.eq.s32.totalorder %s360, 0
      %s363 = sadd.s32 %s362, 1
      %s364 = scalar_select %p361, %s362, %s363
      %p367 = pneg %p361
      %p368 = scmp.eq.s32.totalorder %s29, 11
      %p369 = por %p367, %p368
      %p370 = scmp.ne.s32.totalorder %s362, %s365
      %p371 = scmp.eq.s32.totalorder %s29, 0
      %p372 = por %p370, %p371
      %p373 = scmp.ne.s32.totalorder %s362, %s365
      %p374 = scmp.eq.s32.totalorder %s34, 11
      %p375 = por %p373, %p374
      %p376 = scmp.ne.s32.totalorder %s365, %s366
      %p377 = scmp.eq.s32.totalorder %s34, 0
      %p378 = por %p376, %p377
      %p379 = scmp.ne.s32.totalorder %s365, %s366
      %p380 = scmp.eq.s32.totalorder %s35, 11
      %p381 = por %p379, %p380
      %p383 = scmp.ne.s32.totalorder %s366, %s382
      %p384 = scmp.eq.s32.totalorder %s35, 0
      %p385 = por %p383, %p384
      %s386 = ssub.s32 %s29, %s36
      %p387 = scmp.eq.s32.totalorder %s386, 0
      %s389 = sadd.s32 %s388, 1
      %s390 = scalar_select %p387, %s388, %s389
      %p393 = pneg %p387
      %p394 = scmp.eq.s32.totalorder %s29, 11
      %p395 = por %p393, %p394
      %p396 = scmp.ne.s32.totalorder %s388, %s391
      %p397 = scmp.eq.s32.totalorder %s29, 0
      %p398 = por %p396, %p397
      %p399 = scmp.ne.s32.totalorder %s388, %s391
      %p400 = scmp.eq.s32.totalorder %s34, 11
      %p401 = por %p399, %p400
      %p402 = scmp.ne.s32.totalorder %s391, %s392
      %p403 = scmp.eq.s32.totalorder %s34, 0
      %p404 = por %p402, %p403
      %p405 = scmp.ne.s32.totalorder %s391, %s392
      %p406 = scmp.eq.s32.totalorder %s35, 11
      %p407 = por %p405, %p406
      %p409 = scmp.ne.s32.totalorder %s392, %s408
      %p410 = scmp.eq.s32.totalorder %s35, 0
      %p411 = por %p409, %p410
      %s413 = sadd.s32 %s412, 1
      %p416 = scmp.eq.s32.totalorder %s29, 11
      %p417 = scmp.ne.s32.totalorder %s412, %s414
      %p418 = scmp.eq.s32.totalorder %s29, 0
      %p419 = por %p417, %p418
      %p420 = scmp.ne.s32.totalorder %s412, %s414
      %p421 = scmp.eq.s32.totalorder %s34, 11
      %p422 = por %p420, %p421
      %p423 = scmp.ne.s32.totalorder %s414, %s415
      %p424 = scmp.eq.s32.totalorder %s34, 0
      %p425 = por %p423, %p424
      %p426 = scmp.ne.s32.totalorder %s414, %s415
      %p427 = scmp.eq.s32.totalorder %s35, 11
      %p428 = por %p426, %p427
      %p430 = scmp.ne.s32.totalorder %s415, %s429
      %p431 = scmp.eq.s32.totalorder %s35, 0
      %p432 = por %p430, %p431
      %s434 = sadd.s32 %s433, 1
      %p437 = scmp.eq.s32.totalorder %s29, 11
      %p438 = scmp.ne.s32.totalorder %s433, %s435
      %p439 = scmp.eq.s32.totalorder %s29, 0
      %p440 = por %p438, %p439
      %p441 = scmp.ne.s32.totalorder %s433, %s435
      %p442 = scmp.eq.s32.totalorder %s34, 11
      %p443 = por %p441, %p442
      %p444 = scmp.ne.s32.totalorder %s435, %s436
      %p445 = scmp.eq.s32.totalorder %s34, 0
      %p446 = por %p444, %p445
      %p447 = scmp.ne.s32.totalorder %s435, %s436
      %p448 = scmp.eq.s32.totalorder %s35, 11
      %p449 = por %p447, %p448
      %p451 = scmp.ne.s32.totalorder %s436, %s450
      %p452 = scmp.eq.s32.totalorder %s35, 0
      %p453 = por %p451, %p452
      %s455 = sadd.s32 %s454, 1
      %p458 = scmp.eq.s32.totalorder %s29, 11
      %p459 = scmp.ne.s32.totalorder %s454, %s456
      %p460 = scmp.eq.s32.totalorder %s29, 0
      %p461 = por %p459, %p460
      %p462 = scmp.ne.s32.totalorder %s454, %s456
      %p463 = scmp.eq.s32.totalorder %s34, 11
      %p464 = por %p462, %p463
      %p465 = scmp.ne.s32.totalorder %s456, %s457
      %p466 = scmp.eq.s32.totalorder %s34, 0
      %p467 = por %p465, %p466
      %p468 = scmp.ne.s32.totalorder %s456, %s457
      %p469 = scmp.eq.s32.totalorder %s35, 11
      %p470 = por %p468, %p469
      %p472 = scmp.ne.s32.totalorder %s457, %s471
      %p473 = scmp.eq.s32.totalorder %s35, 0
      %p474 = por %p472, %p473
      %s476 = sadd.s32 %s475, 1
      %p479 = scmp.eq.s32.totalorder %s29, 11
      %p480 = scmp.ne.s32.totalorder %s475, %s477
      %p481 = scmp.eq.s32.totalorder %s29, 0
      %p482 = por %p480, %p481
      %p483 = scmp.ne.s32.totalorder %s475, %s477
      %p484 = scmp.eq.s32.totalorder %s34, 11
      %p485 = por %p483, %p484
      %p486 = scmp.ne.s32.totalorder %s477, %s478
      %p487 = scmp.eq.s32.totalorder %s34, 0
      %p488 = por %p486, %p487
      %p489 = scmp.ne.s32.totalorder %s477, %s478
      %p490 = scmp.eq.s32.totalorder %s35, 11
      %p491 = por %p489, %p490
      %p493 = scmp.ne.s32.totalorder %s478, %s492
      %p494 = scmp.eq.s32.totalorder %s35, 0
      %p495 = por %p493, %p494
      %s497 = sadd.s32 %s496, 1
      %p500 = scmp.eq.s32.totalorder %s29, 11
      %p501 = scmp.ne.s32.totalorder %s496, %s498
      %p502 = scmp.eq.s32.totalorder %s29, 0
      %p503 = por %p501, %p502
      %p504 = scmp.ne.s32.totalorder %s496, %s498
      %p505 = scmp.eq.s32.totalorder %s34, 11
      %p506 = por %p504, %p505
      %p507 = scmp.ne.s32.totalorder %s498, %s499
      %p508 = scmp.eq.s32.totalorder %s34, 0
      %p509 = por %p507, %p508
      %p510 = scmp.ne.s32.totalorder %s498, %s499
      %p511 = scmp.eq.s32.totalorder %s35, 11
      %p512 = por %p510, %p511
      %p514 = scmp.ne.s32.totalorder %s499, %s513
      %p515 = scmp.eq.s32.totalorder %s35, 0
      %p516 = por %p514, %p515
      %s518 = sadd.s32 %s517, 1
      %p521 = scmp.eq.s32.totalorder %s29, 11
      %p522 = scmp.ne.s32.totalorder %s517, %s519
      %p523 = scmp.eq.s32.totalorder %s29, 0
      %p524 = por %p522, %p523
      %p525 = scmp.ne.s32.totalorder %s517, %s519
      %p526 = scmp.eq.s32.totalorder %s34, 11
      %p527 = por %p525, %p526
      %p528 = scmp.ne.s32.totalorder %s519, %s520
      %p529 = scmp.eq.s32.totalorder %s34, 0
      %p530 = por %p528, %p529
      %p531 = scmp.ne.s32.totalorder %s519, %s520
      %p532 = scmp.eq.s32.totalorder %s35, 11
      %p533 = por %p531, %p532
      %p535 = scmp.ne.s32.totalorder %s520, %s534
      %p536 = scmp.eq.s32.totalorder %s35, 0
      %p537 = por %p535, %p536
      %p538 = scmp.le.s32.totalorder 1, %s29
      %p539 = scmp.lt.s32.totalorder %s29, 13
      %p540 = pnand %p538, %p539
      %p541 = pneg %p540
      // Predicated region
      $region9: #{bert_rel_simple_forward.1} parent=5 // pred_check
        _
      $region10: #{bert_rel_simple_forward.1} parent=5 // pred_check_branch
        %543 = sbr.rel (%p540) target = $region12
      $region11: #{bert_rel_simple_forward.1} parent=5 // pred_region
        %s544 = ssub.s32 %s29, 1
        // Predicated region
        $region13: #{bert_rel_simple_forward.1} parent=11 // pred_check
          %p545 = pneg %p50
        $region14: #{bert_rel_simple_forward.1} parent=11 // pred_check_branch
          %547 = sbr.rel (%p545) target = $region16
        $region15: #{bert_rel_simple_forward.1} parent=11 // pred_region
          _
        $region16: #{bert_rel_simple_forward.1} parent=11 // pred_fallthru
          _
        // Predicated region
        $region17: #{bert_rel_simple_forward.1} parent=11 // pred_check
          %p548 = pneg %p71
        $region18: #{bert_rel_simple_forward.1} parent=11 // pred_check_branch
          %550 = sbr.rel (%p548) target = $region20
        $region19: #{bert_rel_simple_forward.1} parent=11 // pred_region
          _
        $region20: #{bert_rel_simple_forward.1} parent=11 // pred_fallthru
          _
        // Predicated region
        $region21: #{bert_rel_simple_forward.1} parent=11 // pred_check
          %p551 = pneg %p92
        $region22: #{bert_rel_simple_forward.1} parent=11 // pred_check_branch
          %553 = sbr.rel (%p551) target = $region24
        $region23: #{bert_rel_simple_forward.1} parent=11 // pred_region
          _
        $region24: #{bert_rel_simple_forward.1} parent=11 // pred_fallthru
          _
        // Predicated region
        $region25: #{bert_rel_simple_forward.1} parent=11 // pred_check
          %p554 = pneg %p425
        $region26: #{bert_rel_simple_forward.1} parent=11 // pred_check_branch
          %556 = sbr.rel (%p554) target = $region28
        $region27: #{bert_rel_simple_forward.1} parent=11 // pred_region
          _
        $region28: #{bert_rel_simple_forward.1} parent=11 // pred_fallthru
          _
        // Predicated region
        $region29: #{bert_rel_simple_forward.1} parent=11 // pred_check
          %p557 = pneg %p446
        $region30: #{bert_rel_simple_forward.1} parent=11 // pred_check_branch
          %559 = sbr.rel (%p557) target = $region32
        $region31: #{bert_rel_simple_forward.1} parent=11 // pred_region
          _
        $region32: #{bert_rel_simple_forward.1} parent=11 // pred_fallthru
          _
        // Predicated region
        $region33: #{bert_rel_simple_forward.1} parent=11 // pred_check
          %p560 = pneg %p467
        $region34: #{bert_rel_simple_forward.1} parent=11 // pred_check_branch
          %562 = sbr.rel (%p560) target = $region36
        $region35: #{bert_rel_simple_forward.1} parent=11 // pred_region
          _
        $region36: #{bert_rel_simple_forward.1} parent=11 // pred_fallthru
          _
        // Predicated region
        $region37: #{bert_rel_simple_forward.1} parent=11 // pred_check
          %p563 = pneg %p488
        $region38: #{bert_rel_simple_forward.1} parent=11 // pred_check_branch
          %565 = sbr.rel (%p563) target = $region40
        $region39: #{bert_rel_simple_forward.1} parent=11 // pred_region
          _
        $region40: #{bert_rel_simple_forward.1} parent=11 // pred_fallthru
          _
      $region12: #{bert_rel_simple_forward.1} parent=5 // pred_fallthru
        _
      %p566 = scmp.lt.s32.totalorder %s29, 12
      // Predicated region
      $region41: #{bert_rel_simple_forward.1} parent=5 // pred_check
        %p567 = pneg %p566
      $region42: #{bert_rel_simple_forward.1} parent=5 // pred_check_branch
        %569 = sbr.rel (%p567) target = $region44
      $region43: #{bert_rel_simple_forward.1} parent=5 // pred_region
        // Predicated region
        $region45: #{bert_rel_simple_forward.1} parent=43 // pred_check
          %p570 = pneg %p112
        $region46: #{bert_rel_simple_forward.1} parent=43 // pred_check_branch
          %572 = sbr.rel (%p570) target = $region48
        $region47: #{bert_rel_simple_forward.1} parent=43 // pred_region
          %p573 = scmp.lt.s32.totalorder %s29, 11
          %s574 = scalar_select %p573, %s29, 11
          %s575 = smul.addr %s574, 4
          %s576 = smul.addr %s575, 8
          %s577 = scalar_lea.vmem %s3, %s576
        $region48: #{bert_rel_simple_forward.1} parent=43 // pred_fallthru
          _
        // Predicated region
        $region49: #{bert_rel_simple_forward.1} parent=43 // pred_check
          %p578 = pneg %p138
        $region50: #{bert_rel_simple_forward.1} parent=43 // pred_check_branch
          %580 = sbr.rel (%p578) target = $region52
        $region51: #{bert_rel_simple_forward.1} parent=43 // pred_region
          %p581 = scmp.lt.s32.totalorder %s29, 11
          %s582 = scalar_select %p581, %s29, 11
          %s583 = scalar_lea.vmem %s4, %s582
        $region52: #{bert_rel_simple_forward.1} parent=43 // pred_fallthru
          _
        // Predicated region
        $region53: #{bert_rel_simple_forward.1} parent=43 // pred_check
          %p584 = pneg %p164
        $region54: #{bert_rel_simple_forward.1} parent=43 // pred_check_branch
          %586 = sbr.rel (%p584) target = $region56
        $region55: #{bert_rel_simple_forward.1} parent=43 // pred_region
          %p587 = scmp.lt.s32.totalorder %s29, 11
          %s588 = scalar_select %p587, %s29, 11
          %s589 = smul.addr %s588, 4
          %s590 = smul.addr %s589, 8
          %s591 = scalar_lea.vmem %s5, %s590
        $region56: #{bert_rel_simple_forward.1} parent=43 // pred_fallthru
          _
        // Predicated region
        $region57: #{bert_rel_simple_forward.1} parent=43 // pred_check
          %p592 = pneg %p190
        $region58: #{bert_rel_simple_forward.1} parent=43 // pred_check_branch
          %594 = sbr.rel (%p592) target = $region60
        $region59: #{bert_rel_simple_forward.1} parent=43 // pred_region
          %p595 = scmp.lt.s32.totalorder %s29, 11
          %s596 = scalar_select %p595, %s29, 11
          %s597 = scalar_lea.vmem %s6, %s596
        $region60: #{bert_rel_simple_forward.1} parent=43 // pred_fallthru
          _
        // Predicated region
        $region61: #{bert_rel_simple_forward.1} parent=43 // pred_check
          %p598 = pneg %p216
        $region62: #{bert_rel_simple_forward.1} parent=43 // pred_check_branch
          %600 = sbr.rel (%p598) target = $region64
        $region63: #{bert_rel_simple_forward.1} parent=43 // pred_region
          %p601 = scmp.lt.s32.totalorder %s29, 11
          %s602 = scalar_select %p601, %s29, 11
          %s603 = scalar_lea.vmem %s7, %s602
        $region64: #{bert_rel_simple_forward.1} parent=43 // pred_fallthru
          _
        // Predicated region
        $region65: #{bert_rel_simple_forward.1} parent=43 // pred_check
          %p604 = pneg %p242
        $region66: #{bert_rel_simple_forward.1} parent=43 // pred_check_branch
          %606 = sbr.rel (%p604) target = $region68
        $region67: #{bert_rel_simple_forward.1} parent=43 // pred_region
          %p607 = scmp.lt.s32.totalorder %s29, 11
          %s608 = scalar_select %p607, %s29, 11
          %s609 = scalar_lea.vmem %s8, %s608
        $region68: #{bert_rel_simple_forward.1} parent=43 // pred_fallthru
          _
        // Predicated region
        $region69: #{bert_rel_simple_forward.1} parent=43 // pred_check
          %p610 = pneg %p268
        $region70: #{bert_rel_simple_forward.1} parent=43 // pred_check_branch
          %612 = sbr.rel (%p610) target = $region72
        $region71: #{bert_rel_simple_forward.1} parent=43 // pred_region
          %p613 = scmp.lt.s32.totalorder %s29, 11
          %s614 = scalar_select %p613, %s29, 11
          %s615 = smul.addr %s614, 4
          %s616 = smul.addr %s615, 8
          %s617 = scalar_lea.vmem %s9, %s616
        $region72: #{bert_rel_simple_forward.1} parent=43 // pred_fallthru
          _
        // Predicated region
        $region73: #{bert_rel_simple_forward.1} parent=43 // pred_check
          %p618 = pneg %p294
        $region74: #{bert_rel_simple_forward.1} parent=43 // pred_check_branch
          %620 = sbr.rel (%p618) target = $region76
        $region75: #{bert_rel_simple_forward.1} parent=43 // pred_region
          %p621 = scmp.lt.s32.totalorder %s29, 11
          %s622 = scalar_select %p621, %s29, 11
          %s623 = scalar_lea.vmem %s10, %s622
        $region76: #{bert_rel_simple_forward.1} parent=43 // pred_fallthru
          _
        // Predicated region
        $region77: #{bert_rel_simple_forward.1} parent=43 // pred_check
          %p624 = pneg %p320
        $region78: #{bert_rel_simple_forward.1} parent=43 // pred_check_branch
          %626 = sbr.rel (%p624) target = $region80
        $region79: #{bert_rel_simple_forward.1} parent=43 // pred_region
          %p627 = scmp.lt.s32.totalorder %s29, 11
          %s628 = scalar_select %p627, %s29, 11
          %s629 = smul.addr %s628, 16
          %s630 = smul.addr %s629, 8
          %s631 = scalar_lea.vmem %s11, %s630
        $region80: #{bert_rel_simple_forward.1} parent=43 // pred_fallthru
          _
        // Predicated region
        $region81: #{bert_rel_simple_forward.1} parent=43 // pred_check
          %p632 = pneg %p346
        $region82: #{bert_rel_simple_forward.1} parent=43 // pred_check_branch
          %634 = sbr.rel (%p632) target = $region84
        $region83: #{bert_rel_simple_forward.1} parent=43 // pred_region
          %p635 = scmp.lt.s32.totalorder %s29, 11
          %s636 = scalar_select %p635, %s29, 11
          %s637 = scalar_lea.vmem %s12, %s636
        $region84: #{bert_rel_simple_forward.1} parent=43 // pred_fallthru
          _
        // Predicated region
        $region85: #{bert_rel_simple_forward.1} parent=43 // pred_check
          %p638 = pneg %p372
        $region86: #{bert_rel_simple_forward.1} parent=43 // pred_check_branch
          %640 = sbr.rel (%p638) target = $region88
        $region87: #{bert_rel_simple_forward.1} parent=43 // pred_region
          %p641 = scmp.lt.s32.totalorder %s29, 11
          %s642 = scalar_select %p641, %s29, 11
          %s643 = scalar_lea.vmem %s13, %s642
        $region88: #{bert_rel_simple_forward.1} parent=43 // pred_fallthru
          _
        // Predicated region
        $region89: #{bert_rel_simple_forward.1} parent=43 // pred_check
          %p644 = pneg %p398
        $region90: #{bert_rel_simple_forward.1} parent=43 // pred_check_branch
          %646 = sbr.rel (%p644) target = $region92
        $region91: #{bert_rel_simple_forward.1} parent=43 // pred_region
          %p647 = scmp.lt.s32.totalorder %s29, 11
          %s648 = scalar_select %p647, %s29, 11
          %s649 = scalar_lea.vmem %s14, %s648
        $region92: #{bert_rel_simple_forward.1} parent=43 // pred_fallthru
          _
      $region44: #{bert_rel_simple_forward.1} parent=5 // pred_fallthru
        _
      %p650 = scmp.le.s32.totalorder 1, %s29
      %p651 = scmp.lt.s32.totalorder %s29, 13
      %p652 = pnand %p650, %p651
      %p653 = pneg %p652
      // Predicated region
      $region93: #{bert_rel_simple_forward.1} parent=5 // pred_check
        _
      $region94: #{bert_rel_simple_forward.1} parent=5 // pred_check_branch
        %655 = sbr.rel (%p652) target = $region96
      $region95: #{bert_rel_simple_forward.1} parent=5 // pred_region
        %s656 = ssub.s32 %s29, 1
        %p657 = pneg %p50
        %p658 = pneg %p47
        %p659 = pneg %p71
        %p660 = pneg %p68
        %p661 = pneg %p92
        %p662 = pneg %p89
        %p663 = scmp.lt.s32.totalorder %s34, 11
        %s664 = scalar_select %p663, %s34, 11
        %s665 = smul.addr %s664, 4
        %s666 = smul.addr %s665, 8
        %s667 = scalar_lea.vmem %s3, %s666
        %p668 = pneg %p118
        %p669 = pneg %p115
        %p670 = scmp.lt.s32.totalorder %s34, 11
        %s671 = scalar_select %p670, %s34, 11
        %s672 = scalar_lea.vmem %s4, %s671
        %p673 = pneg %p144
        %p674 = pneg %p141
        %p675 = scmp.lt.s32.totalorder %s34, 11
        %s676 = scalar_select %p675, %s34, 11
        %s677 = smul.addr %s676, 4
        %s678 = smul.addr %s677, 8
        %s679 = scalar_lea.vmem %s5, %s678
        %p680 = pneg %p170
        %p681 = pneg %p167
        %p682 = scmp.lt.s32.totalorder %s34, 11
        %s683 = scalar_select %p682, %s34, 11
        %s684 = scalar_lea.vmem %s6, %s683
        %p685 = pneg %p196
        %p686 = pneg %p193
        %p687 = scmp.lt.s32.totalorder %s34, 11
        %s688 = scalar_select %p687, %s34, 11
        %s689 = scalar_lea.vmem %s7, %s688
        %p690 = pneg %p222
        %p691 = pneg %p219
        %p692 = scmp.lt.s32.totalorder %s34, 11
        %s693 = scalar_select %p692, %s34, 11
        %s694 = scalar_lea.vmem %s8, %s693
        %p695 = pneg %p248
        %p696 = pneg %p245
        %p697 = scmp.lt.s32.totalorder %s34, 11
        %s698 = scalar_select %p697, %s34, 11
        %s699 = smul.addr %s698, 4
        %s700 = smul.addr %s699, 8
        %s701 = scalar_lea.vmem %s9, %s700
        %p702 = pneg %p274
        %p703 = pneg %p271
        %p704 = scmp.lt.s32.totalorder %s34, 11
        %s705 = scalar_select %p704, %s34, 11
        %s706 = scalar_lea.vmem %s10, %s705
        %p707 = pneg %p300
        %p708 = pneg %p297
        %p709 = scmp.lt.s32.totalorder %s34, 11
        %s710 = scalar_select %p709, %s34, 11
        %s711 = smul.addr %s710, 16
        %s712 = smul.addr %s711, 8
        %s713 = scalar_lea.vmem %s11, %s712
        %p714 = pneg %p326
        %p715 = pneg %p323
        %p716 = scmp.lt.s32.totalorder %s34, 11
        %s717 = scalar_select %p716, %s34, 11
        %s718 = scalar_lea.vmem %s12, %s717
        %p719 = pneg %p352
        %p720 = pneg %p349
        %p721 = scmp.lt.s32.totalorder %s34, 11
        %s722 = scalar_select %p721, %s34, 11
        %s723 = scalar_lea.vmem %s13, %s722
        %p724 = pneg %p378
        %p725 = pneg %p375
        %p726 = scmp.lt.s32.totalorder %s34, 11
        %s727 = scalar_select %p726, %s34, 11
        %s728 = scalar_lea.vmem %s14, %s727
        %p729 = pneg %p404
        %p730 = pneg %p401
        %p731 = pneg %p425
        %p732 = pneg %p422
        %p733 = pneg %p446
        %p734 = pneg %p443
        %p735 = pneg %p467
        %p736 = pneg %p464
        %p737 = pneg %p488
        %p738 = pneg %p485
        %p739 = pneg %p509
        %p740 = pneg %p506
        %p741 = pneg %p530
        %p742 = pneg %p527
        %p743 = scmp.lt.s32.totalorder %s34, 11
        %s744 = scalar_select %p743, %s34, 11
        %s745 = smul.addr %s744, 4
        %s746 = smul.addr %s745, 8
        %s747 = scalar_lea.vmem %s3, %s746
        %p748 = scmp.lt.s32.totalorder %s34, 11
        %s749 = scalar_select %p748, %s34, 11
        %s750 = scalar_lea.vmem %s4, %s749
        %p751 = scmp.lt.s32.totalorder %s34, 11
        %s752 = scalar_select %p751, %s34, 11
        %s753 = smul.addr %s752, 4
        %s754 = smul.addr %s753, 8
        %s755 = scalar_lea.vmem %s5, %s754
        %p756 = scmp.lt.s32.totalorder %s34, 11
        %s757 = scalar_select %p756, %s34, 11
        %s758 = scalar_lea.vmem %s6, %s757
        %p759 = scmp.lt.s32.totalorder %s34, 11
        %s760 = scalar_select %p759, %s34, 11
        %s761 = scalar_lea.vmem %s7, %s760
        %p762 = scmp.lt.s32.totalorder %s34, 11
        %s763 = scalar_select %p762, %s34, 11
        %s764 = scalar_lea.vmem %s8, %s763
        %p765 = scmp.lt.s32.totalorder %s34, 11
        %s766 = scalar_select %p765, %s34, 11
        %s767 = smul.addr %s766, 4
        %s768 = smul.addr %s767, 8
        %s769 = scalar_lea.vmem %s9, %s768
        %p770 = scmp.lt.s32.totalorder %s34, 11
        %s771 = scalar_select %p770, %s34, 11
        %s772 = scalar_lea.vmem %s10, %s771
        %p773 = scmp.lt.s32.totalorder %s34, 11
        %s774 = scalar_select %p773, %s34, 11
        %s775 = smul.addr %s774, 16
        %s776 = smul.addr %s775, 8
        %s777 = scalar_lea.vmem %s11, %s776
        %p778 = scmp.lt.s32.totalorder %s34, 11
        %s779 = scalar_select %p778, %s34, 11
        %s780 = scalar_lea.vmem %s12, %s779
        %p781 = scmp.lt.s32.totalorder %s34, 11
        %s782 = scalar_select %p781, %s34, 11
        %s783 = scalar_lea.vmem %s13, %s782
        %p784 = scmp.lt.s32.totalorder %s34, 11
        %s785 = scalar_select %p784, %s34, 11
        %s786 = scalar_lea.vmem %s14, %s785
        %p787 = scmp.eq.s32.totalorder %s34, 0
        // Predicated region
        $region97: #{bert_rel_simple_forward.1} parent=95 // pred_check
          %p788 = pneg %p787
        $region98: #{bert_rel_simple_forward.1} parent=95 // pred_check_branch
          %790 = sbr.rel (%p788) target = $region100
        $region99: #{bert_rel_simple_forward.1} parent=95 // pred_region
          %v791 = vld [vmem:[%s0] sm:$0xff]
          %v792 = vld [vmem:[%s0 + $0x8] sm:$0xff]
          %v793 = vld [vmem:[%s1] sm:$0x1]
          %v794 = vld [vmem:[%s2] sm:$0x1]
          %vm795 = vcmask 261120
          %v796 = vsel %vm795, %v791, 0.0
          %797 = vadd.xlane.f32.xlu0 %v796
          %v798 = vpop.xlane.xlu0 %797
          %v799 = vsel %vm795, %v792, 0.0
          %800 = vadd.xlane.f32.xlu0 %v799
          %v801 = vpop.xlane.xlu0 %800
          %v802 = vrcp.pop 32.0
          %v803 = vmul.f32 %v798, %v802
          %v804 = vmul.f32 %v801, %v802
          %v805 = vsub.f32 %v791, %v803
          %v806 = vsub.f32 %v792, %v804
          %v807 = vmul.f32 %v805, %v805
          %v808 = vmul.f32 %v806, %v806
          %v809 = vsel %vm795, %v807, 0.0
          %810 = vadd.xlane.f32.xlu0 %v809
          %v811 = vpop.xlane.xlu0 %810
          %v812 = vsel %vm795, %v808, 0.0
          %813 = vadd.xlane.f32.xlu0 %v812
          %v814 = vpop.xlane.xlu0 %813
          %v815 = vmul.f32 %v811, %v802
          %v816 = vmul.f32 %v814, %v802
          %v817 = vadd.f32 %v815, 1e-12
          %v818 = vadd.f32 %v816, 1e-12
          %v819 = vrsqrt.pop %v817
          %v820 = vrsqrt.pop %v818
          %v821 = vmul.f32 %v805, %v819
          %v822 = vmul.f32 %v806, %v820
          %v824 = vlaneseq
          %v825 = vshrl.u32 %v824, 7
          %v826 = vsub.s32 0, %v825
          %v827 = vrot.slane %v793, %v826
          %v829 = vmul.f32 %v821, %v827
          %v830 = vmul.f32 %v822, %v827
          %v832 = vlaneseq
          %v833 = vshrl.u32 %v832, 7
          %v834 = vsub.s32 0, %v833
          %v835 = vrot.slane %v794, %v834
          %v837 = vadd.f32 %v829, %v835
          %v838 = vadd.f32 %v830, %v835
          %839 = vst.msk [vmem:[#allocation2] sm:$0xff] %vm795, %v837
          %840 = vst.msk [vmem:[#allocation2 + $0x8] sm:$0xff] %vm795, %v838
          %vm841 = vcmask 9216
          %842 = vst.msk [vmem:[#allocation3] sm:$0x3] %vm841, 0.0
          %vm843 = vcmask 58368
          %844 = vst.msk [vmem:[#allocation5] sm:$0x3] %vm843, 0.0
        $region100: #{bert_rel_simple_forward.1} parent=95 // pred_fallthru
          _
        %v845 = vld [vmem:[#allocation2] sm:$0xff]
        %v846 = vld [vmem:[#allocation2 + $0x8] sm:$0xff]
        %v847 = vld [vmem:[%s747] sm:$0xff]
        %v848 = vld [vmem:[%s747 + $0x8] sm:$0xff]
        %v849 = vld [vmem:[%s747 + $0x10] sm:$0xff]
        %v850 = vld [vmem:[%s747 + $0x18] sm:$0xff]
        %v851 = vld [vmem:[%s750] sm:$0x1]
        %v853 = vlaneseq
        %v854 = vshrl.u32 %v853, 7
        %v855 = vsub.s32 0, %v854
        %v856 = vrot.slane %v851, %v855
        %vm858 = vcmask 261120
        %v860 = vsel %vm858, %v845, 0
        %v863 = vsel %vm858, %v846, 0
        %865 = vmatprep.subr.mxu0 0.0
        %866 = vmatpush1.msra.mxu0 %v847
        %867 = vmatprep.subr.mxu0 0.0
        %868 = vmatpush1.msra.mxu0 %v848
        %869 = vmatprep.subr.mxu0 0.0
        %870 = vmatpush1.msra.mxu0 %v849
        %871 = vmatprep.subr.mxu0 0.0
        %872 = vmatpush1.msra.mxu0 %v850
        %873 = vmatprep.subr.mxu0 0.0
        %874 = vmatpush1.msra.mxu0 0.0
        %875 = vmatprep.subr.mxu0 0.0
        %876 = vmatpush1.msra.mxu0 0.0
        %877 = vmatprep.subr.mxu0 0.0
        %878 = vmatpush1.msra.mxu0 0.0
        %879 = vmatprep.subr.mxu0 0.0
        %880 = vmatpush1.msra.mxu0 0.0
        %881 = vmatprep.subr.mxu0 0.0
        %882 = vmatpush1.msra.mxu0 0.0
        %883 = vmatprep.subr.mxu0 0.0
        %884 = vmatpush1.msra.mxu0 0.0
        %885 = vmatprep.subr.mxu0 0.0
        %886 = vmatpush1.msra.mxu0 0.0
        %887 = vmatprep.subr.mxu0 0.0
        %888 = vmatpush1.msra.mxu0 0.0
        %889 = vmatprep.subr.mxu0 0.0
        %890 = vmatpush1.msra.mxu0 0.0
        %891 = vmatprep.subr.mxu0 0.0
        %892 = vmatpush1.msra.mxu0 0.0
        %893 = vmatprep.subr.mxu0 0.0
        %894 = vmatpush1.msra.mxu0 0.0
        %895 = vmatprep.subr.mxu0 0.0
        %896 = vmatpush1.msra.mxu0 0.0
        %897 = vmatprep.subr.mxu0 0.0
        %898 = vmatpush1.msra.mxu0 0.0
        %899 = vmatprep.subr.mxu0 0.0
        %900 = vmatpush1.msra.mxu0 0.0
        %901 = vmatprep.subr.mxu0 0.0
        %902 = vmatpush1.msra.mxu0 0.0
        %903 = vmatprep.subr.mxu0 0.0
        %904 = vmatpush1.msra.mxu0 0.0
        %905 = vmatprep.subr.mxu0 0.0
        %906 = vmatpush1.msra.mxu0 0.0
        %907 = vmatprep.subr.mxu0 0.0
        %908 = vmatpush1.msra.mxu0 0.0
        %909 = vmatprep.subr.mxu0 0.0
        %910 = vmatpush1.msra.mxu0 0.0
        %911 = vmatprep.subr.mxu0 0.0
        %912 = vmatpush1.msra.mxu0 0.0
        %913 = vmatprep.subr.mxu0 0.0
        %914 = vmatpush1.msra.mxu0 0.0
        %915 = vmatprep.subr.mxu0 0.0
        %916 = vmatpush1.msra.mxu0 0.0
        %917 = vmatprep.subr.mxu0 0.0
        %918 = vmatpush1.msra.mxu0 0.0
        %919 = vmatprep.subr.mxu0 0.0
        %920 = vmatpush1.msra.mxu0 0.0
        %921 = vmatprep.subr.mxu0 0.0
        %922 = vmatpush1.msra.mxu0 0.0
        %923 = vmatprep.subr.mxu0 0.0
        %924 = vmatpush1.msra.mxu0 0.0
        %925 = vmatprep.subr.mxu0 0.0
        %926 = vmatpush1.msra.mxu0 0.0
        %927 = vmatprep.subr.mxu0 0.0
        %928 = vmatpush1.msra.mxu0 0.0
        %929 = vmatprep.mubr.f32.mxu0 0.0
        %930 = vmatmul.mubr.f32.gmra.mrb[0].mxu0 %v860
        %v931 = vpop.f32.mrb[0].mxu0
        %v932 = vadd.f32 %v856, %v931
        %v933 = vpop.f32.mrb[0].mxu0
        %934 = vmatprep.mubr.f32.mxu0 0.0
        %935 = vmatmul.mubr.f32.gmra.mrb[0].mxu0 %v863
        %v936 = vpop.f32.mrb[0].mxu0
        %v937 = vadd.f32 %v856, %v936
        %v938 = vpop.f32.mrb[0].mxu0
        %939 = vdwg.mxu0
        %941 = vrot.lane.b32.xlu0 %v932, 96
        %v942 = vpop.permute.xlu0 %941
        %vm943 = vcmask 64512
        %v944 = vsel %vm943, %v932, 0
        %v946 = vsel %vm943, %v942, 0
        %948 = vmatprep.subr.mxu0 0.0
        %949 = vmatpush1.xpose.msra.mxu0 %v946
        %950 = vmatprep.subr.mxu0 0.0
        %951 = vmatpush1.xpose.msra.mxu0 0.0
        %952 = vmatprep.subr.mxu0 0.0
        %953 = vmatpush1.xpose.msra.mxu0 0.0
        %954 = vmatprep.subr.mxu0 0.0
        %955 = vmatpush1.xpose.msra.mxu0 0.0
        %956 = vmatprep.subr.mxu0 0.0
        %957 = vmatpush1.xpose.msra.mxu0 0.0
        %958 = vmatprep.subr.mxu0 0.0
        %959 = vmatpush1.xpose.msra.mxu0 0.0
        %960 = vmatprep.subr.mxu0 0.0
        %961 = vmatpush1.xpose.msra.mxu0 0.0
        %962 = vmatprep.subr.mxu0 0.0
        %963 = vmatpush1.xpose.msra.mxu0 0.0
        %964 = vmatprep.subr.mxu0 0.0
        %965 = vmatpush1.xpose.msra.mxu0 0.0
        %966 = vmatprep.subr.mxu0 0.0
        %967 = vmatpush1.xpose.msra.mxu0 0.0
        %968 = vmatprep.subr.mxu0 0.0
        %969 = vmatpush1.xpose.msra.mxu0 0.0
        %970 = vmatprep.subr.mxu0 0.0
        %971 = vmatpush1.xpose.msra.mxu0 0.0
        %972 = vmatprep.subr.mxu0 0.0
        %973 = vmatpush1.xpose.msra.mxu0 0.0
        %974 = vmatprep.subr.mxu0 0.0
        %975 = vmatpush1.xpose.msra.mxu0 0.0
        %976 = vmatprep.subr.mxu0 0.0
        %977 = vmatpush1.xpose.msra.mxu0 0.0
        %978 = vmatprep.subr.mxu0 0.0
        %979 = vmatpush1.xpose.msra.mxu0 0.0
        %980 = vmatprep.subr.mxu0 0.0
        %981 = vmatpush1.xpose.msra.mxu0 0.0
        %982 = vmatprep.subr.mxu0 0.0
        %983 = vmatpush1.xpose.msra.mxu0 0.0
        %984 = vmatprep.subr.mxu0 0.0
        %985 = vmatpush1.xpose.msra.mxu0 0.0
        %986 = vmatprep.subr.mxu0 0.0
        %987 = vmatpush1.xpose.msra.mxu0 0.0
        %988 = vmatprep.subr.mxu0 0.0
        %989 = vmatpush1.xpose.msra.mxu0 0.0
        %990 = vmatprep.subr.mxu0 0.0
        %991 = vmatpush1.xpose.msra.mxu0 0.0
        %992 = vmatprep.subr.mxu0 0.0
        %993 = vmatpush1.xpose.msra.mxu0 0.0
        %994 = vmatprep.subr.mxu0 0.0
        %995 = vmatpush1.xpose.msra.mxu0 0.0
        %996 = vmatprep.subr.mxu0 0.0
        %997 = vmatpush1.xpose.msra.mxu0 0.0
        %998 = vmatprep.subr.mxu0 0.0
        %999 = vmatpush1.xpose.msra.mxu0 0.0
        %1000 = vmatprep.subr.mxu0 0.0
        %1001 = vmatpush1.xpose.msra.mxu0 0.0
        %1002 = vmatprep.subr.mxu0 0.0
        %1003 = vmatpush1.xpose.msra.mxu0 0.0
        %1004 = vmatprep.subr.mxu0 0.0
        %1005 = vmatpush1.xpose.msra.mxu0 0.0
        %1006 = vmatprep.subr.mxu0 0.0
        %1007 = vmatpush1.xpose.msra.mxu0 0.0
        %1008 = vmatprep.subr.mxu0 0.0
        %1009 = vmatpush1.xpose.msra.mxu0 0.0
        %1010 = vmatprep.subr.mxu0 0.0
        %1011 = vmatpush1.xpose.msra.mxu0 0.0
        %1012 = vmatprep.mubr.f32.mxu0 0.0
        %1013 = vmatmul.mubr.f32.gmra.mrb[0].mxu0 %v944
        %v1014 = vpop.f32.mrb[0].mxu0
        %v1015 = vadd.f32 0.0, %v1014
        %v1016 = vpop.f32.mrb[0].mxu0
        %1017 = vdwg.mxu0
        %1019 = vrot.lane.b32.xlu0 %v937, 96
        %v1020 = vpop.permute.xlu0 %1019
        %v1021 = vsel %vm943, %v937, 0
        %v1023 = vsel %vm943, %v1020, 0
        %1025 = vmatprep.subr.mxu0 0.0
        %1026 = vmatpush1.xpose.msra.mxu0 %v1023
        %1027 = vmatprep.subr.mxu0 0.0
        %1028 = vmatpush1.xpose.msra.mxu0 0.0
        %1029 = vmatprep.subr.mxu0 0.0
        %1030 = vmatpush1.xpose.msra.mxu0 0.0
        %1031 = vmatprep.subr.mxu0 0.0
        %1032 = vmatpush1.xpose.msra.mxu0 0.0
        %1033 = vmatprep.subr.mxu0 0.0
        %1034 = vmatpush1.xpose.msra.mxu0 0.0
        %1035 = vmatprep.subr.mxu0 0.0
        %1036 = vmatpush1.xpose.msra.mxu0 0.0
        %1037 = vmatprep.subr.mxu0 0.0
        %1038 = vmatpush1.xpose.msra.mxu0 0.0
        %1039 = vmatprep.subr.mxu0 0.0
        %1040 = vmatpush1.xpose.msra.mxu0 0.0
        %1041 = vmatprep.subr.mxu0 0.0
        %1042 = vmatpush1.xpose.msra.mxu0 0.0
        %1043 = vmatprep.subr.mxu0 0.0
        %1044 = vmatpush1.xpose.msra.mxu0 0.0
        %1045 = vmatprep.subr.mxu0 0.0
        %1046 = vmatpush1.xpose.msra.mxu0 0.0
        %1047 = vmatprep.subr.mxu0 0.0
        %1048 = vmatpush1.xpose.msra.mxu0 0.0
        %1049 = vmatprep.subr.mxu0 0.0
        %1050 = vmatpush1.xpose.msra.mxu0 0.0
        %1051 = vmatprep.subr.mxu0 0.0
        %1052 = vmatpush1.xpose.msra.mxu0 0.0
        %1053 = vmatprep.subr.mxu0 0.0
        %1054 = vmatpush1.xpose.msra.mxu0 0.0
        %1055 = vmatprep.subr.mxu0 0.0
        %1056 = vmatpush1.xpose.msra.mxu0 0.0
        %1057 = vmatprep.subr.mxu0 0.0
        %1058 = vmatpush1.xpose.msra.mxu0 0.0
        %1059 = vmatprep.subr.mxu0 0.0
        %1060 = vmatpush1.xpose.msra.mxu0 0.0
        %1061 = vmatprep.subr.mxu0 0.0
        %1062 = vmatpush1.xpose.msra.mxu0 0.0
        %1063 = vmatprep.subr.mxu0 0.0
        %1064 = vmatpush1.xpose.msra.mxu0 0.0
        %1065 = vmatprep.subr.mxu0 0.0
        %1066 = vmatpush1.xpose.msra.mxu0 0.0
        %1067 = vmatprep.subr.mxu0 0.0
        %1068 = vmatpush1.xpose.msra.mxu0 0.0
        %1069 = vmatprep.subr.mxu0 0.0
        %1070 = vmatpush1.xpose.msra.mxu0 0.0
        %1071 = vmatprep.subr.mxu0 0.0
        %1072 = vmatpush1.xpose.msra.mxu0 0.0
        %1073 = vmatprep.subr.mxu0 0.0
        %1074 = vmatpush1.xpose.msra.mxu0 0.0
        %1075 = vmatprep.subr.mxu0 0.0
        %1076 = vmatpush1.xpose.msra.mxu0 0.0
        %1077 = vmatprep.subr.mxu0 0.0
        %1078 = vmatpush1.xpose.msra.mxu0 0.0
        %1079 = vmatprep.subr.mxu0 0.0
        %1080 = vmatpush1.xpose.msra.mxu0 0.0
        %1081 = vmatprep.subr.mxu0 0.0
        %1082 = vmatpush1.xpose.msra.mxu0 0.0
        %1083 = vmatprep.subr.mxu0 0.0
        %1084 = vmatpush1.xpose.msra.mxu0 0.0
        %1085 = vmatprep.subr.mxu0 0.0
        %1086 = vmatpush1.xpose.msra.mxu0 0.0
        %1087 = vmatprep.subr.mxu0 0.0
        %1088 = vmatpush1.xpose.msra.mxu0 0.0
        %1089 = vmatprep.mubr.f32.mxu0 0.0
        %1090 = vmatmul.mubr.f32.gmra.mrb[0].mxu0 %v1021
        %v1091 = vpop.f32.mrb[0].mxu0
        %v1092 = vadd.f32 0.0, %v1091
        %v1093 = vpop.f32.mrb[0].mxu0
        %1094 = vdwg.mxu0
        %v1095 = vmul.f32 %v1015, 0.35355338
        %v1096 = vmul.f32 %v1092, 0.35355338
        %v1097 = vsel %vm943, %v1095, -inf
        %1098 = vmax.xlane.f32.xlu0 %v1097
        %v1099 = vpop.xlane.xlu0 %1098
        %v1100 = vsel %vm943, %v1096, -inf
        %1101 = vmax.xlane.f32.xlu0 %v1100
        %v1102 = vpop.xlane.xlu0 %1101
        %v1103 = vsub.f32 %v1095, %v1099
        %v1104 = vsub.f32 %v1096, %v1102
        %v1105 = vmul.f32 %v1103, 1.442695
        %v1106 = vpow.pop %v1105
        %v1107 = vmul.f32 %v1104, 1.442695
        %v1108 = vpow.pop %v1107
        %v1109 = vsel %vm943, %v1106, 0.0
        %1110 = vadd.xlane.f32.xlu0 %v1109
        %v1111 = vpop.xlane.xlu0 %1110
        %v1112 = vsel %vm943, %v1108, 0.0
        %1113 = vadd.xlane.f32.xlu0 %v1112
        %v1114 = vpop.xlane.xlu0 %1113
        %v1115 = vrcp.pop %v1111
        %v1116 = vrcp.pop %v1114
        %v1117 = vmul.f32 %v1106, %v1115
        %v1118 = vmul.f32 %v1108, %v1116
        %v1119 = vadd.f32 %v1117, 0.0
        %v1120 = vadd.f32 %v1118, 0.0
        %1121 = vrot.lane.b32.xlu0 %v932, 64
        %v1122 = vpop.permute.xlu0 %1121
        %v1125 = vsel %vm943, %v1117, 0
        %1127 = vmatprep.subr.mxu0 0.0
        %1128 = vmatpush1.msra.mxu0 %v1122
        %1129 = vmatprep.subr.mxu0 0.0
        %1130 = vmatpush1.msra.mxu0 0.0
        %1131 = vmatprep.subr.mxu0 0.0
        %1132 = vmatpush1.msra.mxu0 0.0
        %1133 = vmatprep.subr.mxu0 0.0
        %1134 = vmatpush1.msra.mxu0 0.0
        %1135 = vmatprep.subr.mxu0 0.0
        %1136 = vmatpush1.msra.mxu0 0.0
        %1137 = vmatprep.subr.mxu0 0.0
        %1138 = vmatpush1.msra.mxu0 0.0
        %1139 = vmatprep.subr.mxu0 0.0
        %1140 = vmatpush1.msra.mxu0 0.0
        %1141 = vmatprep.subr.mxu0 0.0
        %1142 = vmatpush1.msra.mxu0 0.0
        %1143 = vmatprep.subr.mxu0 0.0
        %1144 = vmatpush1.msra.mxu0 0.0
        %1145 = vmatprep.subr.mxu0 0.0
        %1146 = vmatpush1.msra.mxu0 0.0
        %1147 = vmatprep.subr.mxu0 0.0
        %1148 = vmatpush1.msra.mxu0 0.0
        %1149 = vmatprep.subr.mxu0 0.0
        %1150 = vmatpush1.msra.mxu0 0.0
        %1151 = vmatprep.subr.mxu0 0.0
        %1152 = vmatpush1.msra.mxu0 0.0
        %1153 = vmatprep.subr.mxu0 0.0
        %1154 = vmatpush1.msra.mxu0 0.0
        %1155 = vmatprep.subr.mxu0 0.0
        %1156 = vmatpush1.msra.mxu0 0.0
        %1157 = vmatprep.subr.mxu0 0.0
        %1158 = vmatpush1.msra.mxu0 0.0
        %1159 = vmatprep.subr.mxu0 0.0
        %1160 = vmatpush1.msra.mxu0 0.0
        %1161 = vmatprep.subr.mxu0 0.0
        %1162 = vmatpush1.msra.mxu0 0.0
        %1163 = vmatprep.subr.mxu0 0.0
        %1164 = vmatpush1.msra.mxu0 0.0
        %1165 = vmatprep.subr.mxu0 0.0
        %1166 = vmatpush1.msra.mxu0 0.0
        %1167 = vmatprep.subr.mxu0 0.0
        %1168 = vmatpush1.msra.mxu0 0.0
        %1169 = vmatprep.subr.mxu0 0.0
        %1170 = vmatpush1.msra.mxu0 0.0
        %1171 = vmatprep.subr.mxu0 0.0
        %1172 = vmatpush1.msra.mxu0 0.0
        %1173 = vmatprep.subr.mxu0 0.0
        %1174 = vmatpush1.msra.mxu0 0.0
        %1175 = vmatprep.subr.mxu0 0.0
        %1176 = vmatpush1.msra.mxu0 0.0
        %1177 = vmatprep.subr.mxu0 0.0
        %1178 = vmatpush1.msra.mxu0 0.0
        %1179 = vmatprep.subr.mxu0 0.0
        %1180 = vmatpush1.msra.mxu0 0.0
        %1181 = vmatprep.subr.mxu0 0.0
        %1182 = vmatpush1.msra.mxu0 0.0
        %1183 = vmatprep.subr.mxu0 0.0
        %1184 = vmatpush1.msra.mxu0 0.0
        %1185 = vmatprep.subr.mxu0 0.0
        %1186 = vmatpush1.msra.mxu0 0.0
        %1187 = vmatprep.subr.mxu0 0.0
        %1188 = vmatpush1.msra.mxu0 0.0
        %1189 = vmatprep.subr.mxu0 0.0
        %1190 = vmatpush1.msra.mxu0 0.0
        %1191 = vmatprep.mubr.f32.mxu0 0.0
        %1192 = vmatmul.mubr.f32.gmra.mrb[0].mxu0 %v1125
        %v1193 = vpop.f32.mrb[0].mxu0
        %v1194 = vadd.f32 0.0, %v1193
        %v1195 = vpop.f32.mrb[0].mxu0
        %1196 = vdwg.mxu0
        %1197 = vrot.lane.b32.xlu0 %v937, 64
        %v1198 = vpop.permute.xlu0 %1197
        %v1201 = vsel %vm943, %v1118, 0
        %1203 = vmatprep.subr.mxu0 0.0
        %1204 = vmatpush1.msra.mxu0 %v1198
        %1205 = vmatprep.subr.mxu0 0.0
        %1206 = vmatpush1.msra.mxu0 0.0
        %1207 = vmatprep.subr.mxu0 0.0
        %1208 = vmatpush1.msra.mxu0 0.0
        %1209 = vmatprep.subr.mxu0 0.0
        %1210 = vmatpush1.msra.mxu0 0.0
        %1211 = vmatprep.subr.mxu0 0.0
        %1212 = vmatpush1.msra.mxu0 0.0
        %1213 = vmatprep.subr.mxu0 0.0
        %1214 = vmatpush1.msra.mxu0 0.0
        %1215 = vmatprep.subr.mxu0 0.0
        %1216 = vmatpush1.msra.mxu0 0.0
        %1217 = vmatprep.subr.mxu0 0.0
        %1218 = vmatpush1.msra.mxu0 0.0
        %1219 = vmatprep.subr.mxu0 0.0
        %1220 = vmatpush1.msra.mxu0 0.0
        %1221 = vmatprep.subr.mxu0 0.0
        %1222 = vmatpush1.msra.mxu0 0.0
        %1223 = vmatprep.subr.mxu0 0.0
        %1224 = vmatpush1.msra.mxu0 0.0
        %1225 = vmatprep.subr.mxu0 0.0
        %1226 = vmatpush1.msra.mxu0 0.0
        %1227 = vmatprep.subr.mxu0 0.0
        %1228 = vmatpush1.msra.mxu0 0.0
        %1229 = vmatprep.subr.mxu0 0.0
        %1230 = vmatpush1.msra.mxu0 0.0
        %1231 = vmatprep.subr.mxu0 0.0
        %1232 = vmatpush1.msra.mxu0 0.0
        %1233 = vmatprep.subr.mxu0 0.0
        %1234 = vmatpush1.msra.mxu0 0.0
        %1235 = vmatprep.subr.mxu0 0.0
        %1236 = vmatpush1.msra.mxu0 0.0
        %1237 = vmatprep.subr.mxu0 0.0
        %1238 = vmatpush1.msra.mxu0 0.0
        %1239 = vmatprep.subr.mxu0 0.0
        %1240 = vmatpush1.msra.mxu0 0.0
        %1241 = vmatprep.subr.mxu0 0.0
        %1242 = vmatpush1.msra.mxu0 0.0
        %1243 = vmatprep.subr.mxu0 0.0
        %1244 = vmatpush1.msra.mxu0 0.0
        %1245 = vmatprep.subr.mxu0 0.0
        %1246 = vmatpush1.msra.mxu0 0.0
        %1247 = vmatprep.subr.mxu0 0.0
        %1248 = vmatpush1.msra.mxu0 0.0
        %1249 = vmatprep.subr.mxu0 0.0
        %1250 = vmatpush1.msra.mxu0 0.0
        %1251 = vmatprep.subr.mxu0 0.0
        %1252 = vmatpush1.msra.mxu0 0.0
        %1253 = vmatprep.subr.mxu0 0.0
        %1254 = vmatpush1.msra.mxu0 0.0
        %1255 = vmatprep.subr.mxu0 0.0
        %1256 = vmatpush1.msra.mxu0 0.0
        %1257 = vmatprep.subr.mxu0 0.0
        %1258 = vmatpush1.msra.mxu0 0.0
        %1259 = vmatprep.subr.mxu0 0.0
        %1260 = vmatpush1.msra.mxu0 0.0
        %1261 = vmatprep.subr.mxu0 0.0
        %1262 = vmatpush1.msra.mxu0 0.0
        %1263 = vmatprep.subr.mxu0 0.0
        %1264 = vmatpush1.msra.mxu0 0.0
        %1265 = vmatprep.subr.mxu0 0.0
        %1266 = vmatpush1.msra.mxu0 0.0
        %1267 = vmatprep.mubr.f32.mxu0 0.0
        %1268 = vmatmul.mubr.f32.gmra.mrb[0].mxu0 %v1201
        %v1269 = vpop.f32.mrb[0].mxu0
        %v1270 = vadd.f32 0.0, %v1269
        %v1271 = vpop.f32.mrb[0].mxu0
        %1272 = vdwg.mxu0
        %1273 = vrot.lane.b32.xlu0 %v932, 120
        %v1274 = vpop.permute.xlu0 %1273
        %1275 = vrot.lane.b32.xlu0 %v932, 88
        %v1276 = vpop.permute.xlu0 %1275
        %v1277 = vsel %vm943, %v1274, 0
        %v1279 = vsel %vm943, %v1276, 0
        %1281 = vmatprep.subr.mxu0 0.0
        %1282 = vmatpush1.xpose.msra.mxu0 %v1279
        %1283 = vmatprep.subr.mxu0 0.0
        %1284 = vmatpush1.xpose.msra.mxu0 0.0
        %1285 = vmatprep.subr.mxu0 0.0
        %1286 = vmatpush1.xpose.msra.mxu0 0.0
        %1287 = vmatprep.subr.mxu0 0.0
        %1288 = vmatpush1.xpose.msra.mxu0 0.0
        %1289 = vmatprep.subr.mxu0 0.0
        %1290 = vmatpush1.xpose.msra.mxu0 0.0
        %1291 = vmatprep.subr.mxu0 0.0
        %1292 = vmatpush1.xpose.msra.mxu0 0.0
        %1293 = vmatprep.subr.mxu0 0.0
        %1294 = vmatpush1.xpose.msra.mxu0 0.0
        %1295 = vmatprep.subr.mxu0 0.0
        %1296 = vmatpush1.xpose.msra.mxu0 0.0
        %1297 = vmatprep.subr.mxu0 0.0
        %1298 = vmatpush1.xpose.msra.mxu0 0.0
        %1299 = vmatprep.subr.mxu0 0.0
        %1300 = vmatpush1.xpose.msra.mxu0 0.0
        %1301 = vmatprep.subr.mxu0 0.0
        %1302 = vmatpush1.xpose.msra.mxu0 0.0
        %1303 = vmatprep.subr.mxu0 0.0
        %1304 = vmatpush1.xpose.msra.mxu0 0.0
        %1305 = vmatprep.subr.mxu0 0.0
        %1306 = vmatpush1.xpose.msra.mxu0 0.0
        %1307 = vmatprep.subr.mxu0 0.0
        %1308 = vmatpush1.xpose.msra.mxu0 0.0
        %1309 = vmatprep.subr.mxu0 0.0
        %1310 = vmatpush1.xpose.msra.mxu0 0.0
        %1311 = vmatprep.subr.mxu0 0.0
        %1312 = vmatpush1.xpose.msra.mxu0 0.0
        %1313 = vmatprep.subr.mxu0 0.0
        %1314 = vmatpush1.xpose.msra.mxu0 0.0
        %1315 = vmatprep.subr.mxu0 0.0
        %1316 = vmatpush1.xpose.msra.mxu0 0.0
        %1317 = vmatprep.subr.mxu0 0.0
        %1318 = vmatpush1.xpose.msra.mxu0 0.0
        %1319 = vmatprep.subr.mxu0 0.0
        %1320 = vmatpush1.xpose.msra.mxu0 0.0
        %1321 = vmatprep.subr.mxu0 0.0
        %1322 = vmatpush1.xpose.msra.mxu0 0.0
        %1323 = vmatprep.subr.mxu0 0.0
        %1324 = vmatpush1.xpose.msra.mxu0 0.0
        %1325 = vmatprep.subr.mxu0 0.0
        %1326 = vmatpush1.xpose.msra.mxu0 0.0
        %1327 = vmatprep.subr.mxu0 0.0
        %1328 = vmatpush1.xpose.msra.mxu0 0.0
        %1329 = vmatprep.subr.mxu0 0.0
        %1330 = vmatpush1.xpose.msra.mxu0 0.0
        %1331 = vmatprep.subr.mxu0 0.0
        %1332 = vmatpush1.xpose.msra.mxu0 0.0
        %1333 = vmatprep.subr.mxu0 0.0
        %1334 = vmatpush1.xpose.msra.mxu0 0.0
        %1335 = vmatprep.subr.mxu0 0.0
        %1336 = vmatpush1.xpose.msra.mxu0 0.0
        %1337 = vmatprep.subr.mxu0 0.0
        %1338 = vmatpush1.xpose.msra.mxu0 0.0
        %1339 = vmatprep.subr.mxu0 0.0
        %1340 = vmatpush1.xpose.msra.mxu0 0.0
        %1341 = vmatprep.subr.mxu0 0.0
        %1342 = vmatpush1.xpose.msra.mxu0 0.0
        %1343 = vmatprep.subr.mxu0 0.0
        %1344 = vmatpush1.xpose.msra.mxu0 0.0
        %1345 = vmatprep.mubr.f32.mxu0 0.0
        %1346 = vmatmul.mubr.f32.gmra.mrb[0].mxu0 %v1277
        %v1347 = vpop.f32.mrb[0].mxu0
        %v1348 = vadd.f32 0.0, %v1347
        %v1349 = vpop.f32.mrb[0].mxu0
        %1350 = vdwg.mxu0
        %1351 = vrot.lane.b32.xlu0 %v937, 120
        %v1352 = vpop.permute.xlu0 %1351
        %1353 = vrot.lane.b32.xlu0 %v937, 88
        %v1354 = vpop.permute.xlu0 %1353
        %v1355 = vsel %vm943, %v1352, 0
        %v1357 = vsel %vm943, %v1354, 0
        %1359 = vmatprep.subr.mxu0 0.0
        %1360 = vmatpush1.xpose.msra.mxu0 %v1357
        %1361 = vmatprep.subr.mxu0 0.0
        %1362 = vmatpush1.xpose.msra.mxu0 0.0
        %1363 = vmatprep.subr.mxu0 0.0
        %1364 = vmatpush1.xpose.msra.mxu0 0.0
        %1365 = vmatprep.subr.mxu0 0.0
        %1366 = vmatpush1.xpose.msra.mxu0 0.0
        %1367 = vmatprep.subr.mxu0 0.0
        %1368 = vmatpush1.xpose.msra.mxu0 0.0
        %1369 = vmatprep.subr.mxu0 0.0
        %1370 = vmatpush1.xpose.msra.mxu0 0.0
        %1371 = vmatprep.subr.mxu0 0.0
        %1372 = vmatpush1.xpose.msra.mxu0 0.0
        %1373 = vmatprep.subr.mxu0 0.0
        %1374 = vmatpush1.xpose.msra.mxu0 0.0
        %1375 = vmatprep.subr.mxu0 0.0
        %1376 = vmatpush1.xpose.msra.mxu0 0.0
        %1377 = vmatprep.subr.mxu0 0.0
        %1378 = vmatpush1.xpose.msra.mxu0 0.0
        %1379 = vmatprep.subr.mxu0 0.0
        %1380 = vmatpush1.xpose.msra.mxu0 0.0
        %1381 = vmatprep.subr.mxu0 0.0
        %1382 = vmatpush1.xpose.msra.mxu0 0.0
        %1383 = vmatprep.subr.mxu0 0.0
        %1384 = vmatpush1.xpose.msra.mxu0 0.0
        %1385 = vmatprep.subr.mxu0 0.0
        %1386 = vmatpush1.xpose.msra.mxu0 0.0
        %1387 = vmatprep.subr.mxu0 0.0
        %1388 = vmatpush1.xpose.msra.mxu0 0.0
        %1389 = vmatprep.subr.mxu0 0.0
        %1390 = vmatpush1.xpose.msra.mxu0 0.0
        %1391 = vmatprep.subr.mxu0 0.0
        %1392 = vmatpush1.xpose.msra.mxu0 0.0
        %1393 = vmatprep.subr.mxu0 0.0
        %1394 = vmatpush1.xpose.msra.mxu0 0.0
        %1395 = vmatprep.subr.mxu0 0.0
        %1396 = vmatpush1.xpose.msra.mxu0 0.0
        %1397 = vmatprep.subr.mxu0 0.0
        %1398 = vmatpush1.xpose.msra.mxu0 0.0
        %1399 = vmatprep.subr.mxu0 0.0
        %1400 = vmatpush1.xpose.msra.mxu0 0.0
        %1401 = vmatprep.subr.mxu0 0.0
        %1402 = vmatpush1.xpose.msra.mxu0 0.0
        %1403 = vmatprep.subr.mxu0 0.0
        %1404 = vmatpush1.xpose.msra.mxu0 0.0
        %1405 = vmatprep.subr.mxu0 0.0
        %1406 = vmatpush1.xpose.msra.mxu0 0.0
        %1407 = vmatprep.subr.mxu0 0.0
        %1408 = vmatpush1.xpose.msra.mxu0 0.0
        %1409 = vmatprep.subr.mxu0 0.0
        %1410 = vmatpush1.xpose.msra.mxu0 0.0
        %1411 = vmatprep.subr.mxu0 0.0
        %1412 = vmatpush1.xpose.msra.mxu0 0.0
        %1413 = vmatprep.subr.mxu0 0.0
        %1414 = vmatpush1.xpose.msra.mxu0 0.0
        %1415 = vmatprep.subr.mxu0 0.0
        %1416 = vmatpush1.xpose.msra.mxu0 0.0
        %1417 = vmatprep.subr.mxu0 0.0
        %1418 = vmatpush1.xpose.msra.mxu0 0.0
        %1419 = vmatprep.subr.mxu0 0.0
        %1420 = vmatpush1.xpose.msra.mxu0 0.0
        %1421 = vmatprep.subr.mxu0 0.0
        %1422 = vmatpush1.xpose.msra.mxu0 0.0
        %1423 = vmatprep.mubr.f32.mxu0 0.0
        %1424 = vmatmul.mubr.f32.gmra.mrb[0].mxu0 %v1355
        %v1425 = vpop.f32.mrb[0].mxu0
        %v1426 = vadd.f32 0.0, %v1425
        %v1427 = vpop.f32.mrb[0].mxu0
        %1428 = vdwg.mxu0
        %v1429 = vmul.f32 %v1348, 0.35355338
        %v1430 = vmul.f32 %v1426, 0.35355338
        %v1431 = vsel %vm943, %v1429, -inf
        %1432 = vmax.xlane.f32.xlu0 %v1431
        %v1433 = vpop.xlane.xlu0 %1432
        %v1434 = vsel %vm943, %v1430, -inf
        %1435 = vmax.xlane.f32.xlu0 %v1434
        %v1436 = vpop.xlane.xlu0 %1435
        %v1437 = vsub.f32 %v1429, %v1433
        %v1438 = vsub.f32 %v1430, %v1436
        %v1439 = vmul.f32 %v1437, 1.442695
        %v1440 = vpow.pop %v1439
        %v1441 = vmul.f32 %v1438, 1.442695
        %v1442 = vpow.pop %v1441
        %v1443 = vsel %vm943, %v1440, 0.0
        %1444 = vadd.xlane.f32.xlu0 %v1443
        %v1445 = vpop.xlane.xlu0 %1444
        %v1446 = vsel %vm943, %v1442, 0.0
        %1447 = vadd.xlane.f32.xlu0 %v1446
        %v1448 = vpop.xlane.xlu0 %1447
        %v1449 = vrcp.pop %v1445
        %v1450 = vrcp.pop %v1448
        %v1451 = vmul.f32 %v1440, %v1449
        %v1452 = vmul.f32 %v1442, %v1450
        %v1453 = vadd.f32 %v1119, %v1451
        %v1454 = vadd.f32 %v1120, %v1452
        %1455 = vrot.lane.b32.xlu0 %v932, 56
        %v1456 = vpop.permute.xlu0 %1455
        %v1459 = vsel %vm943, %v1451, 0
        %1461 = vmatprep.subr.mxu0 0.0
        %1462 = vmatpush1.msra.mxu0 %v1456
        %1463 = vmatprep.subr.mxu0 0.0
        %1464 = vmatpush1.msra.mxu0 0.0
        %1465 = vmatprep.subr.mxu0 0.0
        %1466 = vmatpush1.msra.mxu0 0.0
        %1467 = vmatprep.subr.mxu0 0.0
        %1468 = vmatpush1.msra.mxu0 0.0
        %1469 = vmatprep.subr.mxu0 0.0
        %1470 = vmatpush1.msra.mxu0 0.0
        %1471 = vmatprep.subr.mxu0 0.0
        %1472 = vmatpush1.msra.mxu0 0.0
        %1473 = vmatprep.subr.mxu0 0.0
        %1474 = vmatpush1.msra.mxu0 0.0
        %1475 = vmatprep.subr.mxu0 0.0
        %1476 = vmatpush1.msra.mxu0 0.0
        %1477 = vmatprep.subr.mxu0 0.0
        %1478 = vmatpush1.msra.mxu0 0.0
        %1479 = vmatprep.subr.mxu0 0.0
        %1480 = vmatpush1.msra.mxu0 0.0
        %1481 = vmatprep.subr.mxu0 0.0
        %1482 = vmatpush1.msra.mxu0 0.0
        %1483 = vmatprep.subr.mxu0 0.0
        %1484 = vmatpush1.msra.mxu0 0.0
        %1485 = vmatprep.subr.mxu0 0.0
        %1486 = vmatpush1.msra.mxu0 0.0
        %1487 = vmatprep.subr.mxu0 0.0
        %1488 = vmatpush1.msra.mxu0 0.0
        %1489 = vmatprep.subr.mxu0 0.0
        %1490 = vmatpush1.msra.mxu0 0.0
        %1491 = vmatprep.subr.mxu0 0.0
        %1492 = vmatpush1.msra.mxu0 0.0
        %1493 = vmatprep.subr.mxu0 0.0
        %1494 = vmatpush1.msra.mxu0 0.0
        %1495 = vmatprep.subr.mxu0 0.0
        %1496 = vmatpush1.msra.mxu0 0.0
        %1497 = vmatprep.subr.mxu0 0.0
        %1498 = vmatpush1.msra.mxu0 0.0
        %1499 = vmatprep.subr.mxu0 0.0
        %1500 = vmatpush1.msra.mxu0 0.0
        %1501 = vmatprep.subr.mxu0 0.0
        %1502 = vmatpush1.msra.mxu0 0.0
        %1503 = vmatprep.subr.mxu0 0.0
        %1504 = vmatpush1.msra.mxu0 0.0
        %1505 = vmatprep.subr.mxu0 0.0
        %1506 = vmatpush1.msra.mxu0 0.0
        %1507 = vmatprep.subr.mxu0 0.0
        %1508 = vmatpush1.msra.mxu0 0.0
        %1509 = vmatprep.subr.mxu0 0.0
        %1510 = vmatpush1.msra.mxu0 0.0
        %1511 = vmatprep.subr.mxu0 0.0
        %1512 = vmatpush1.msra.mxu0 0.0
        %1513 = vmatprep.subr.mxu0 0.0
        %1514 = vmatpush1.msra.mxu0 0.0
        %1515 = vmatprep.subr.mxu0 0.0
        %1516 = vmatpush1.msra.mxu0 0.0
        %1517 = vmatprep.subr.mxu0 0.0
        %1518 = vmatpush1.msra.mxu0 0.0
        %1519 = vmatprep.subr.mxu0 0.0
        %1520 = vmatpush1.msra.mxu0 0.0
        %1521 = vmatprep.subr.mxu0 0.0
        %1522 = vmatpush1.msra.mxu0 0.0
        %1523 = vmatprep.subr.mxu0 0.0
        %1524 = vmatpush1.msra.mxu0 0.0
        %1525 = vmatprep.mubr.f32.mxu0 0.0
        %1526 = vmatmul.mubr.f32.gmra.mrb[0].mxu0 %v1459
        %v1527 = vpop.f32.mrb[0].mxu0
        %v1528 = vadd.f32 0.0, %v1527
        %v1529 = vpop.f32.mrb[0].mxu0
        %1530 = vdwg.mxu0
        %1531 = vrot.lane.b32.xlu0 %v937, 56
        %v1532 = vpop.permute.xlu0 %1531
        %v1535 = vsel %vm943, %v1452, 0
        %1537 = vmatprep.subr.mxu0 0.0
        %1538 = vmatpush1.msra.mxu0 %v1532
        %1539 = vmatprep.subr.mxu0 0.0
        %1540 = vmatpush1.msra.mxu0 0.0
        %1541 = vmatprep.subr.mxu0 0.0
        %1542 = vmatpush1.msra.mxu0 0.0
        %1543 = vmatprep.subr.mxu0 0.0
        %1544 = vmatpush1.msra.mxu0 0.0
        %1545 = vmatprep.subr.mxu0 0.0
        %1546 = vmatpush1.msra.mxu0 0.0
        %1547 = vmatprep.subr.mxu0 0.0
        %1548 = vmatpush1.msra.mxu0 0.0
        %1549 = vmatprep.subr.mxu0 0.0
        %1550 = vmatpush1.msra.mxu0 0.0
        %1551 = vmatprep.subr.mxu0 0.0
        %1552 = vmatpush1.msra.mxu0 0.0
        %1553 = vmatprep.subr.mxu0 0.0
        %1554 = vmatpush1.msra.mxu0 0.0
        %1555 = vmatprep.subr.mxu0 0.0
        %1556 = vmatpush1.msra.mxu0 0.0
        %1557 = vmatprep.subr.mxu0 0.0
        %1558 = vmatpush1.msra.mxu0 0.0
        %1559 = vmatprep.subr.mxu0 0.0
        %1560 = vmatpush1.msra.mxu0 0.0
        %1561 = vmatprep.subr.mxu0 0.0
        %1562 = vmatpush1.msra.mxu0 0.0
        %1563 = vmatprep.subr.mxu0 0.0
        %1564 = vmatpush1.msra.mxu0 0.0
        %1565 = vmatprep.subr.mxu0 0.0
        %1566 = vmatpush1.msra.mxu0 0.0
        %1567 = vmatprep.subr.mxu0 0.0
        %1568 = vmatpush1.msra.mxu0 0.0
        %1569 = vmatprep.subr.mxu0 0.0
        %1570 = vmatpush1.msra.mxu0 0.0
        %1571 = vmatprep.subr.mxu0 0.0
        %1572 = vmatpush1.msra.mxu0 0.0
        %1573 = vmatprep.subr.mxu0 0.0
        %1574 = vmatpush1.msra.mxu0 0.0
        %1575 = vmatprep.subr.mxu0 0.0
        %1576 = vmatpush1.msra.mxu0 0.0
        %1577 = vmatprep.subr.mxu0 0.0
        %1578 = vmatpush1.msra.mxu0 0.0
        %1579 = vmatprep.subr.mxu0 0.0
        %1580 = vmatpush1.msra.mxu0 0.0
        %1581 = vmatprep.subr.mxu0 0.0
        %1582 = vmatpush1.msra.mxu0 0.0
        %1583 = vmatprep.subr.mxu0 0.0
        %1584 = vmatpush1.msra.mxu0 0.0
        %1585 = vmatprep.subr.mxu0 0.0
        %1586 = vmatpush1.msra.mxu0 0.0
        %1587 = vmatprep.subr.mxu0 0.0
        %1588 = vmatpush1.msra.mxu0 0.0
        %1589 = vmatprep.subr.mxu0 0.0
        %1590 = vmatpush1.msra.mxu0 0.0
        %1591 = vmatprep.subr.mxu0 0.0
        %1592 = vmatpush1.msra.mxu0 0.0
        %1593 = vmatprep.subr.mxu0 0.0
        %1594 = vmatpush1.msra.mxu0 0.0
        %1595 = vmatprep.subr.mxu0 0.0
        %1596 = vmatpush1.msra.mxu0 0.0
        %1597 = vmatprep.subr.mxu0 0.0
        %1598 = vmatpush1.msra.mxu0 0.0
        %1599 = vmatprep.subr.mxu0 0.0
        %1600 = vmatpush1.msra.mxu0 0.0
        %1601 = vmatprep.mubr.f32.mxu0 0.0
        %1602 = vmatmul.mubr.f32.gmra.mrb[0].mxu0 %v1535
        %v1603 = vpop.f32.mrb[0].mxu0
        %v1604 = vadd.f32 0.0, %v1603
        %v1605 = vpop.f32.mrb[0].mxu0
        %1606 = vdwg.mxu0
        %1607 = vrot.lane.b32.xlu0 %v932, 112
        %v1608 = vpop.permute.xlu0 %1607
        %1609 = vrot.lane.b32.xlu0 %v932, 80
        %v1610 = vpop.permute.xlu0 %1609
        %v1611 = vsel %vm943, %v1608, 0
        %v1613 = vsel %vm943, %v1610, 0
        %1615 = vmatprep.subr.mxu0 0.0
        %1616 = vmatpush1.xpose.msra.mxu0 %v1613
        %1617 = vmatprep.subr.mxu0 0.0
        %1618 = vmatpush1.xpose.msra.mxu0 0.0
        %1619 = vmatprep.subr.mxu0 0.0
        %1620 = vmatpush1.xpose.msra.mxu0 0.0
        %1621 = vmatprep.subr.mxu0 0.0
        %1622 = vmatpush1.xpose.msra.mxu0 0.0
        %1623 = vmatprep.subr.mxu0 0.0
        %1624 = vmatpush1.xpose.msra.mxu0 0.0
        %1625 = vmatprep.subr.mxu0 0.0
        %1626 = vmatpush1.xpose.msra.mxu0 0.0
        %1627 = vmatprep.subr.mxu0 0.0
        %1628 = vmatpush1.xpose.msra.mxu0 0.0
        %1629 = vmatprep.subr.mxu0 0.0
        %1630 = vmatpush1.xpose.msra.mxu0 0.0
        %1631 = vmatprep.subr.mxu0 0.0
        %1632 = vmatpush1.xpose.msra.mxu0 0.0
        %1633 = vmatprep.subr.mxu0 0.0
        %1634 = vmatpush1.xpose.msra.mxu0 0.0
        %1635 = vmatprep.subr.mxu0 0.0
        %1636 = vmatpush1.xpose.msra.mxu0 0.0
        %1637 = vmatprep.subr.mxu0 0.0
        %1638 = vmatpush1.xpose.msra.mxu0 0.0
        %1639 = vmatprep.subr.mxu0 0.0
        %1640 = vmatpush1.xpose.msra.mxu0 0.0
        %1641 = vmatprep.subr.mxu0 0.0
        %1642 = vmatpush1.xpose.msra.mxu0 0.0
        %1643 = vmatprep.subr.mxu0 0.0
        %1644 = vmatpush1.xpose.msra.mxu0 0.0
        %1645 = vmatprep.subr.mxu0 0.0
        %1646 = vmatpush1.xpose.msra.mxu0 0.0
        %1647 = vmatprep.subr.mxu0 0.0
        %1648 = vmatpush1.xpose.msra.mxu0 0.0
        %1649 = vmatprep.subr.mxu0 0.0
        %1650 = vmatpush1.xpose.msra.mxu0 0.0
        %1651 = vmatprep.subr.mxu0 0.0
        %1652 = vmatpush1.xpose.msra.mxu0 0.0
        %1653 = vmatprep.subr.mxu0 0.0
        %1654 = vmatpush1.xpose.msra.mxu0 0.0
        %1655 = vmatprep.subr.mxu0 0.0
        %1656 = vmatpush1.xpose.msra.mxu0 0.0
        %1657 = vmatprep.subr.mxu0 0.0
        %1658 = vmatpush1.xpose.msra.mxu0 0.0
        %1659 = vmatprep.subr.mxu0 0.0
        %1660 = vmatpush1.xpose.msra.mxu0 0.0
        %1661 = vmatprep.subr.mxu0 0.0
        %1662 = vmatpush1.xpose.msra.mxu0 0.0
        %1663 = vmatprep.subr.mxu0 0.0
        %1664 = vmatpush1.xpose.msra.mxu0 0.0
        %1665 = vmatprep.subr.mxu0 0.0
        %1666 = vmatpush1.xpose.msra.mxu0 0.0
        %1667 = vmatprep.subr.mxu0 0.0
        %1668 = vmatpush1.xpose.msra.mxu0 0.0
        %1669 = vmatprep.subr.mxu0 0.0
        %1670 = vmatpush1.xpose.msra.mxu0 0.0
        %1671 = vmatprep.subr.mxu0 0.0
        %1672 = vmatpush1.xpose.msra.mxu0 0.0
        %1673 = vmatprep.subr.mxu0 0.0
        %1674 = vmatpush1.xpose.msra.mxu0 0.0
        %1675 = vmatprep.subr.mxu0 0.0
        %1676 = vmatpush1.xpose.msra.mxu0 0.0
        %1677 = vmatprep.subr.mxu0 0.0
        %1678 = vmatpush1.xpose.msra.mxu0 0.0
        %1679 = vmatprep.mubr.f32.mxu0 0.0
        %1680 = vmatmul.mubr.f32.gmra.mrb[0].mxu0 %v1611
        %v1681 = vpop.f32.mrb[0].mxu0
        %v1682 = vadd.f32 0.0, %v1681
        %v1683 = vpop.f32.mrb[0].mxu0
        %1684 = vdwg.mxu0
        %1685 = vrot.lane.b32.xlu0 %v937, 112
        %v1686 = vpop.permute.xlu0 %1685
        %1687 = vrot.lane.b32.xlu0 %v937, 80
        %v1688 = vpop.permute.xlu0 %1687
        %v1689 = vsel %vm943, %v1686, 0
        %v1691 = vsel %vm943, %v1688, 0
        %1693 = vmatprep.subr.mxu0 0.0
        %1694 = vmatpush1.xpose.msra.mxu0 %v1691
        %1695 = vmatprep.subr.mxu0 0.0
        %1696 = vmatpush1.xpose.msra.mxu0 0.0
        %1697 = vmatprep.subr.mxu0 0.0
        %1698 = vmatpush1.xpose.msra.mxu0 0.0
        %1699 = vmatprep.subr.mxu0 0.0
        %1700 = vmatpush1.xpose.msra.mxu0 0.0
        %1701 = vmatprep.subr.mxu0 0.0
        %1702 = vmatpush1.xpose.msra.mxu0 0.0
        %1703 = vmatprep.subr.mxu0 0.0
        %1704 = vmatpush1.xpose.msra.mxu0 0.0
        %1705 = vmatprep.subr.mxu0 0.0
        %1706 = vmatpush1.xpose.msra.mxu0 0.0
        %1707 = vmatprep.subr.mxu0 0.0
        %1708 = vmatpush1.xpose.msra.mxu0 0.0
        %1709 = vmatprep.subr.mxu0 0.0
        %1710 = vmatpush1.xpose.msra.mxu0 0.0
        %1711 = vmatprep.subr.mxu0 0.0
        %1712 = vmatpush1.xpose.msra.mxu0 0.0
        %1713 = vmatprep.subr.mxu0 0.0
        %1714 = vmatpush1.xpose.msra.mxu0 0.0
        %1715 = vmatprep.subr.mxu0 0.0
        %1716 = vmatpush1.xpose.msra.mxu0 0.0
        %1717 = vmatprep.subr.mxu0 0.0
        %1718 = vmatpush1.xpose.msra.mxu0 0.0
        %1719 = vmatprep.subr.mxu0 0.0
        %1720 = vmatpush1.xpose.msra.mxu0 0.0
        %1721 = vmatprep.subr.mxu0 0.0
        %1722 = vmatpush1.xpose.msra.mxu0 0.0
        %1723 = vmatprep.subr.mxu0 0.0
        %1724 = vmatpush1.xpose.msra.mxu0 0.0
        %1725 = vmatprep.subr.mxu0 0.0
        %1726 = vmatpush1.xpose.msra.mxu0 0.0
        %1727 = vmatprep.subr.mxu0 0.0
        %1728 = vmatpush1.xpose.msra.mxu0 0.0
        %1729 = vmatprep.subr.mxu0 0.0
        %1730 = vmatpush1.xpose.msra.mxu0 0.0
        %1731 = vmatprep.subr.mxu0 0.0
        %1732 = vmatpush1.xpose.msra.mxu0 0.0
        %1733 = vmatprep.subr.mxu0 0.0
        %1734 = vmatpush1.xpose.msra.mxu0 0.0
        %1735 = vmatprep.subr.mxu0 0.0
        %1736 = vmatpush1.xpose.msra.mxu0 0.0
        %1737 = vmatprep.subr.mxu0 0.0
        %1738 = vmatpush1.xpose.msra.mxu0 0.0
        %1739 = vmatprep.subr.mxu0 0.0
        %1740 = vmatpush1.xpose.msra.mxu0 0.0
        %1741 = vmatprep.subr.mxu0 0.0
        %1742 = vmatpush1.xpose.msra.mxu0 0.0
        %1743 = vmatprep.subr.mxu0 0.0
        %1744 = vmatpush1.xpose.msra.mxu0 0.0
        %1745 = vmatprep.subr.mxu0 0.0
        %1746 = vmatpush1.xpose.msra.mxu0 0.0
        %1747 = vmatprep.subr.mxu0 0.0
        %1748 = vmatpush1.xpose.msra.mxu0 0.0
        %1749 = vmatprep.subr.mxu0 0.0
        %1750 = vmatpush1.xpose.msra.mxu0 0.0
        %1751 = vmatprep.subr.mxu0 0.0
        %1752 = vmatpush1.xpose.msra.mxu0 0.0
        %1753 = vmatprep.subr.mxu0 0.0
        %1754 = vmatpush1.xpose.msra.mxu0 0.0
        %1755 = vmatprep.subr.mxu0 0.0
        %1756 = vmatpush1.xpose.msra.mxu0 0.0
        %1757 = vmatprep.mubr.f32.mxu0 0.0
        %1758 = vmatmul.mubr.f32.gmra.mrb[0].mxu0 %v1689
        %v1759 = vpop.f32.mrb[0].mxu0
        %v1760 = vadd.f32 0.0, %v1759
        %v1761 = vpop.f32.mrb[0].mxu0
        %1762 = vdwg.mxu0
        %v1763 = vmul.f32 %v1682, 0.35355338
        %v1764 = vmul.f32 %v1760, 0.35355338
        %v1765 = vsel %vm943, %v1763, -inf
        %1766 = vmax.xlane.f32.xlu0 %v1765
        %v1767 = vpop.xlane.xlu0 %1766
        %v1768 = vsel %vm943, %v1764, -inf
        %1769 = vmax.xlane.f32.xlu0 %v1768
        %v1770 = vpop.xlane.xlu0 %1769
        %v1771 = vsub.f32 %v1763, %v1767
        %v1772 = vsub.f32 %v1764, %v1770
        %v1773 = vmul.f32 %v1771, 1.442695
        %v1774 = vpow.pop %v1773
        %v1775 = vmul.f32 %v1772, 1.442695
        %v1776 = vpow.pop %v1775
        %v1777 = vsel %vm943, %v1774, 0.0
        %1778 = vadd.xlane.f32.xlu0 %v1777
        %v1779 = vpop.xlane.xlu0 %1778
        %v1780 = vsel %vm943, %v1776, 0.0
        %1781 = vadd.xlane.f32.xlu0 %v1780
        %v1782 = vpop.xlane.xlu0 %1781
        %v1783 = vrcp.pop %v1779
        %v1784 = vrcp.pop %v1782
        %v1785 = vmul.f32 %v1774, %v1783
        %v1786 = vmul.f32 %v1776, %v1784
        %v1787 = vadd.f32 %v1453, %v1785
        %v1788 = vadd.f32 %v1454, %v1786
        %1789 = vrot.lane.b32.xlu0 %v932, 48
        %v1790 = vpop.permute.xlu0 %1789
        %v1793 = vsel %vm943, %v1785, 0
        %1795 = vmatprep.subr.mxu0 0.0
        %1796 = vmatpush1.msra.mxu0 %v1790
        %1797 = vmatprep.subr.mxu0 0.0
        %1798 = vmatpush1.msra.mxu0 0.0
        %1799 = vmatprep.subr.mxu0 0.0
        %1800 = vmatpush1.msra.mxu0 0.0
        %1801 = vmatprep.subr.mxu0 0.0
        %1802 = vmatpush1.msra.mxu0 0.0
        %1803 = vmatprep.subr.mxu0 0.0
        %1804 = vmatpush1.msra.mxu0 0.0
        %1805 = vmatprep.subr.mxu0 0.0
        %1806 = vmatpush1.msra.mxu0 0.0
        %1807 = vmatprep.subr.mxu0 0.0
        %1808 = vmatpush1.msra.mxu0 0.0
        %1809 = vmatprep.subr.mxu0 0.0
        %1810 = vmatpush1.msra.mxu0 0.0
        %1811 = vmatprep.subr.mxu0 0.0
        %1812 = vmatpush1.msra.mxu0 0.0
        %1813 = vmatprep.subr.mxu0 0.0
        %1814 = vmatpush1.msra.mxu0 0.0
        %1815 = vmatprep.subr.mxu0 0.0
        %1816 = vmatpush1.msra.mxu0 0.0
        %1817 = vmatprep.subr.mxu0 0.0
        %1818 = vmatpush1.msra.mxu0 0.0
        %1819 = vmatprep.subr.mxu0 0.0
        %1820 = vmatpush1.msra.mxu0 0.0
        %1821 = vmatprep.subr.mxu0 0.0
        %1822 = vmatpush1.msra.mxu0 0.0
        %1823 = vmatprep.subr.mxu0 0.0
        %1824 = vmatpush1.msra.mxu0 0.0
        %1825 = vmatprep.subr.mxu0 0.0
        %1826 = vmatpush1.msra.mxu0 0.0
        %1827 = vmatprep.subr.mxu0 0.0
        %1828 = vmatpush1.msra.mxu0 0.0
        %1829 = vmatprep.subr.mxu0 0.0
        %1830 = vmatpush1.msra.mxu0 0.0
        %1831 = vmatprep.subr.mxu0 0.0
        %1832 = vmatpush1.msra.mxu0 0.0
        %1833 = vmatprep.subr.mxu0 0.0
        %1834 = vmatpush1.msra.mxu0 0.0
        %1835 = vmatprep.subr.mxu0 0.0
        %1836 = vmatpush1.msra.mxu0 0.0
        %1837 = vmatprep.subr.mxu0 0.0
        %1838 = vmatpush1.msra.mxu0 0.0
        %1839 = vmatprep.subr.mxu0 0.0
        %1840 = vmatpush1.msra.mxu0 0.0
        %1841 = vmatprep.subr.mxu0 0.0
        %1842 = vmatpush1.msra.mxu0 0.0
        %1843 = vmatprep.subr.mxu0 0.0
        %1844 = vmatpush1.msra.mxu0 0.0
        %1845 = vmatprep.subr.mxu0 0.0
        %1846 = vmatpush1.msra.mxu0 0.0
        %1847 = vmatprep.subr.mxu0 0.0
        %1848 = vmatpush1.msra.mxu0 0.0
        %1849 = vmatprep.subr.mxu0 0.0
        %1850 = vmatpush1.msra.mxu0 0.0
        %1851 = vmatprep.subr.mxu0 0.0
        %1852 = vmatpush1.msra.mxu0 0.0
        %1853 = vmatprep.subr.mxu0 0.0
        %1854 = vmatpush1.msra.mxu0 0.0
        %1855 = vmatprep.subr.mxu0 0.0
        %1856 = vmatpush1.msra.mxu0 0.0
        %1857 = vmatprep.subr.mxu0 0.0
        %1858 = vmatpush1.msra.mxu0 0.0
        %1859 = vmatprep.mubr.f32.mxu0 0.0
        %1860 = vmatmul.mubr.f32.gmra.mrb[0].mxu0 %v1793
        %v1861 = vpop.f32.mrb[0].mxu0
        %v1862 = vadd.f32 0.0, %v1861
        %v1863 = vpop.f32.mrb[0].mxu0
        %1864 = vdwg.mxu0
        %1865 = vrot.lane.b32.xlu0 %v937, 48
        %v1866 = vpop.permute.xlu0 %1865
        %v1869 = vsel %vm943, %v1786, 0
        %1871 = vmatprep.subr.mxu0 0.0
        %1872 = vmatpush1.msra.mxu0 %v1866
        %1873 = vmatprep.subr.mxu0 0.0
        %1874 = vmatpush1.msra.mxu0 0.0
        %1875 = vmatprep.subr.mxu0 0.0
        %1876 = vmatpush1.msra.mxu0 0.0
        %1877 = vmatprep.subr.mxu0 0.0
        %1878 = vmatpush1.msra.mxu0 0.0
        %1879 = vmatprep.subr.mxu0 0.0
        %1880 = vmatpush1.msra.mxu0 0.0
        %1881 = vmatprep.subr.mxu0 0.0
        %1882 = vmatpush1.msra.mxu0 0.0
        %1883 = vmatprep.subr.mxu0 0.0
        %1884 = vmatpush1.msra.mxu0 0.0
        %1885 = vmatprep.subr.mxu0 0.0
        %1886 = vmatpush1.msra.mxu0 0.0
        %1887 = vmatprep.subr.mxu0 0.0
        %1888 = vmatpush1.msra.mxu0 0.0
        %1889 = vmatprep.subr.mxu0 0.0
        %1890 = vmatpush1.msra.mxu0 0.0
        %1891 = vmatprep.subr.mxu0 0.0
        %1892 = vmatpush1.msra.mxu0 0.0
        %1893 = vmatprep.subr.mxu0 0.0
        %1894 = vmatpush1.msra.mxu0 0.0
        %1895 = vmatprep.subr.mxu0 0.0
        %1896 = vmatpush1.msra.mxu0 0.0
        %1897 = vmatprep.subr.mxu0 0.0
        %1898 = vmatpush1.msra.mxu0 0.0
        %1899 = vmatprep.subr.mxu0 0.0
        %1900 = vmatpush1.msra.mxu0 0.0
        %1901 = vmatprep.subr.mxu0 0.0
        %1902 = vmatpush1.msra.mxu0 0.0
        %1903 = vmatprep.subr.mxu0 0.0
        %1904 = vmatpush1.msra.mxu0 0.0
        %1905 = vmatprep.subr.mxu0 0.0
        %1906 = vmatpush1.msra.mxu0 0.0
        %1907 = vmatprep.subr.mxu0 0.0
        %1908 = vmatpush1.msra.mxu0 0.0
        %1909 = vmatprep.subr.mxu0 0.0
        %1910 = vmatpush1.msra.mxu0 0.0
        %1911 = vmatprep.subr.mxu0 0.0
        %1912 = vmatpush1.msra.mxu0 0.0
        %1913 = vmatprep.subr.mxu0 0.0
        %1914 = vmatpush1.msra.mxu0 0.0
        %1915 = vmatprep.subr.mxu0 0.0
        %1916 = vmatpush1.msra.mxu0 0.0
        %1917 = vmatprep.subr.mxu0 0.0
        %1918 = vmatpush1.msra.mxu0 0.0
        %1919 = vmatprep.subr.mxu0 0.0
        %1920 = vmatpush1.msra.mxu0 0.0
        %1921 = vmatprep.subr.mxu0 0.0
        %1922 = vmatpush1.msra.mxu0 0.0
        %1923 = vmatprep.subr.mxu0 0.0
        %1924 = vmatpush1.msra.mxu0 0.0
        %1925 = vmatprep.subr.mxu0 0.0
        %1926 = vmatpush1.msra.mxu0 0.0
        %1927 = vmatprep.subr.mxu0 0.0
        %1928 = vmatpush1.msra.mxu0 0.0
        %1929 = vmatprep.subr.mxu0 0.0
        %1930 = vmatpush1.msra.mxu0 0.0
        %1931 = vmatprep.subr.mxu0 0.0
        %1932 = vmatpush1.msra.mxu0 0.0
        %1933 = vmatprep.subr.mxu0 0.0
        %1934 = vmatpush1.msra.mxu0 0.0
        %1935 = vmatprep.mubr.f32.mxu0 0.0
        %1936 = vmatmul.mubr.f32.gmra.mrb[0].mxu0 %v1869
        %v1937 = vpop.f32.mrb[0].mxu0
        %v1938 = vadd.f32 0.0, %v1937
        %v1939 = vpop.f32.mrb[0].mxu0
        %1940 = vdwg.mxu0
        %1941 = vrot.lane.b32.xlu0 %v932, 104
        %v1942 = vpop.permute.xlu0 %1941
        %1943 = vrot.lane.b32.xlu0 %v932, 72
        %v1944 = vpop.permute.xlu0 %1943
        %v1945 = vsel %vm943, %v1942, 0
        %v1947 = vsel %vm943, %v1944, 0
        %1949 = vmatprep.subr.mxu0 0.0
        %1950 = vmatpush1.xpose.msra.mxu0 %v1947
        %1951 = vmatprep.subr.mxu0 0.0
        %1952 = vmatpush1.xpose.msra.mxu0 0.0
        %1953 = vmatprep.subr.mxu0 0.0
        %1954 = vmatpush1.xpose.msra.mxu0 0.0
        %1955 = vmatprep.subr.mxu0 0.0
        %1956 = vmatpush1.xpose.msra.mxu0 0.0
        %1957 = vmatprep.subr.mxu0 0.0
        %1958 = vmatpush1.xpose.msra.mxu0 0.0
        %1959 = vmatprep.subr.mxu0 0.0
        %1960 = vmatpush1.xpose.msra.mxu0 0.0
        %1961 = vmatprep.subr.mxu0 0.0
        %1962 = vmatpush1.xpose.msra.mxu0 0.0
        %1963 = vmatprep.subr.mxu0 0.0
        %1964 = vmatpush1.xpose.msra.mxu0 0.0
        %1965 = vmatprep.subr.mxu0 0.0
        %1966 = vmatpush1.xpose.msra.mxu0 0.0
        %1967 = vmatprep.subr.mxu0 0.0
        %1968 = vmatpush1.xpose.msra.mxu0 0.0
        %1969 = vmatprep.subr.mxu0 0.0
        %1970 = vmatpush1.xpose.msra.mxu0 0.0
        %1971 = vmatprep.subr.mxu0 0.0
        %1972 = vmatpush1.xpose.msra.mxu0 0.0
        %1973 = vmatprep.subr.mxu0 0.0
        %1974 = vmatpush1.xpose.msra.mxu0 0.0
        %1975 = vmatprep.subr.mxu0 0.0
        %1976 = vmatpush1.xpose.msra.mxu0 0.0
        %1977 = vmatprep.subr.mxu0 0.0
        %1978 = vmatpush1.xpose.msra.mxu0 0.0
        %1979 = vmatprep.subr.mxu0 0.0
        %1980 = vmatpush1.xpose.msra.mxu0 0.0
        %1981 = vmatprep.subr.mxu0 0.0
        %1982 = vmatpush1.xpose.msra.mxu0 0.0
        %1983 = vmatprep.subr.mxu0 0.0
        %1984 = vmatpush1.xpose.msra.mxu0 0.0
        %1985 = vmatprep.subr.mxu0 0.0
        %1986 = vmatpush1.xpose.msra.mxu0 0.0
        %1987 = vmatprep.subr.mxu0 0.0
        %1988 = vmatpush1.xpose.msra.mxu0 0.0
        %1989 = vmatprep.subr.mxu0 0.0
        %1990 = vmatpush1.xpose.msra.mxu0 0.0
        %1991 = vmatprep.subr.mxu0 0.0
        %1992 = vmatpush1.xpose.msra.mxu0 0.0
        %1993 = vmatprep.subr.mxu0 0.0
        %1994 = vmatpush1.xpose.msra.mxu0 0.0
        %1995 = vmatprep.subr.mxu0 0.0
        %1996 = vmatpush1.xpose.msra.mxu0 0.0
        %1997 = vmatprep.subr.mxu0 0.0
        %1998 = vmatpush1.xpose.msra.mxu0 0.0
        %1999 = vmatprep.subr.mxu0 0.0
        %2000 = vmatpush1.xpose.msra.mxu0 0.0
        %2001 = vmatprep.subr.mxu0 0.0
        %2002 = vmatpush1.xpose.msra.mxu0 0.0
        %2003 = vmatprep.subr.mxu0 0.0
        %2004 = vmatpush1.xpose.msra.mxu0 0.0
        %2005 = vmatprep.subr.mxu0 0.0
        %2006 = vmatpush1.xpose.msra.mxu0 0.0
        %2007 = vmatprep.subr.mxu0 0.0
        %2008 = vmatpush1.xpose.msra.mxu0 0.0
        %2009 = vmatprep.subr.mxu0 0.0
        %2010 = vmatpush1.xpose.msra.mxu0 0.0
        %2011 = vmatprep.subr.mxu0 0.0
        %2012 = vmatpush1.xpose.msra.mxu0 0.0
        %2013 = vmatprep.mubr.f32.mxu0 0.0
        %2014 = vmatmul.mubr.f32.gmra.mrb[0].mxu0 %v1945
        %v2015 = vpop.f32.mrb[0].mxu0
        %v2016 = vadd.f32 0.0, %v2015
        %v2017 = vpop.f32.mrb[0].mxu0
        %2018 = vdwg.mxu0
        %2019 = vrot.lane.b32.xlu0 %v937, 104
        %v2020 = vpop.permute.xlu0 %2019
        %2021 = vrot.lane.b32.xlu0 %v937, 72
        %v2022 = vpop.permute.xlu0 %2021
        %v2023 = vsel %vm943, %v2020, 0
        %v2025 = vsel %vm943, %v2022, 0
        %2027 = vmatprep.subr.mxu0 0.0
        %2028 = vmatpush1.xpose.msra.mxu0 %v2025
        %2029 = vmatprep.subr.mxu0 0.0
        %2030 = vmatpush1.xpose.msra.mxu0 0.0
        %2031 = vmatprep.subr.mxu0 0.0
        %2032 = vmatpush1.xpose.msra.mxu0 0.0
        %2033 = vmatprep.subr.mxu0 0.0
        %2034 = vmatpush1.xpose.msra.mxu0 0.0
        %2035 = vmatprep.subr.mxu0 0.0
        %2036 = vmatpush1.xpose.msra.mxu0 0.0
        %2037 = vmatprep.subr.mxu0 0.0
        %2038 = vmatpush1.xpose.msra.mxu0 0.0
        %2039 = vmatprep.subr.mxu0 0.0
        %2040 = vmatpush1.xpose.msra.mxu0 0.0
        %2041 = vmatprep.subr.mxu0 0.0
        %2042 = vmatpush1.xpose.msra.mxu0 0.0
        %2043 = vmatprep.subr.mxu0 0.0
        %2044 = vmatpush1.xpose.msra.mxu0 0.0
        %2045 = vmatprep.subr.mxu0 0.0
        %2046 = vmatpush1.xpose.msra.mxu0 0.0
        %2047 = vmatprep.subr.mxu0 0.0
        %2048 = vmatpush1.xpose.msra.mxu0 0.0
        %2049 = vmatprep.subr.mxu0 0.0
        %2050 = vmatpush1.xpose.msra.mxu0 0.0
        %2051 = vmatprep.subr.mxu0 0.0
        %2052 = vmatpush1.xpose.msra.mxu0 0.0
        %2053 = vmatprep.subr.mxu0 0.0
        %2054 = vmatpush1.xpose.msra.mxu0 0.0
        %2055 = vmatprep.subr.mxu0 0.0
        %2056 = vmatpush1.xpose.msra.mxu0 0.0
        %2057 = vmatprep.subr.mxu0 0.0
        %2058 = vmatpush1.xpose.msra.mxu0 0.0
        %2059 = vmatprep.subr.mxu0 0.0
        %2060 = vmatpush1.xpose.msra.mxu0 0.0
        %2061 = vmatprep.subr.mxu0 0.0
        %2062 = vmatpush1.xpose.msra.mxu0 0.0
        %2063 = vmatprep.subr.mxu0 0.0
        %2064 = vmatpush1.xpose.msra.mxu0 0.0
        %2065 = vmatprep.subr.mxu0 0.0
        %2066 = vmatpush1.xpose.msra.mxu0 0.0
        %2067 = vmatprep.subr.mxu0 0.0
        %2068 = vmatpush1.xpose.msra.mxu0 0.0
        %2069 = vmatprep.subr.mxu0 0.0
        %2070 = vmatpush1.xpose.msra.mxu0 0.0
        %2071 = vmatprep.subr.mxu0 0.0
        %2072 = vmatpush1.xpose.msra.mxu0 0.0
        %2073 = vmatprep.subr.mxu0 0.0
        %2074 = vmatpush1.xpose.msra.mxu0 0.0
        %2075 = vmatprep.subr.mxu0 0.0
        %2076 = vmatpush1.xpose.msra.mxu0 0.0
        %2077 = vmatprep.subr.mxu0 0.0
        %2078 = vmatpush1.xpose.msra.mxu0 0.0
        %2079 = vmatprep.subr.mxu0 0.0
        %2080 = vmatpush1.xpose.msra.mxu0 0.0
        %2081 = vmatprep.subr.mxu0 0.0
        %2082 = vmatpush1.xpose.msra.mxu0 0.0
        %2083 = vmatprep.subr.mxu0 0.0
        %2084 = vmatpush1.xpose.msra.mxu0 0.0
        %2085 = vmatprep.subr.mxu0 0.0
        %2086 = vmatpush1.xpose.msra.mxu0 0.0
        %2087 = vmatprep.subr.mxu0 0.0
        %2088 = vmatpush1.xpose.msra.mxu0 0.0
        %2089 = vmatprep.subr.mxu0 0.0
        %2090 = vmatpush1.xpose.msra.mxu0 0.0
        %2091 = vmatprep.mubr.f32.mxu0 0.0
        %2092 = vmatmul.mubr.f32.gmra.mrb[0].mxu0 %v2023
        %v2093 = vpop.f32.mrb[0].mxu0
        %v2094 = vadd.f32 0.0, %v2093
        %v2095 = vpop.f32.mrb[0].mxu0
        %2096 = vdwg.mxu0
        %v2097 = vmul.f32 %v2016, 0.35355338
        %v2098 = vmul.f32 %v2094, 0.35355338
        %v2099 = vsel %vm943, %v2097, -inf
        %2100 = vmax.xlane.f32.xlu0 %v2099
        %v2101 = vpop.xlane.xlu0 %2100
        %v2102 = vsel %vm943, %v2098, -inf
        %2103 = vmax.xlane.f32.xlu0 %v2102
        %v2104 = vpop.xlane.xlu0 %2103
        %v2105 = vsub.f32 %v2097, %v2101
        %v2106 = vsub.f32 %v2098, %v2104
        %v2107 = vmul.f32 %v2105, 1.442695
        %v2108 = vpow.pop %v2107
        %v2109 = vmul.f32 %v2106, 1.442695
        %v2110 = vpow.pop %v2109
        %v2111 = vsel %vm943, %v2108, 0.0
        %2112 = vadd.xlane.f32.xlu0 %v2111
        %v2113 = vpop.xlane.xlu0 %2112
        %v2114 = vsel %vm943, %v2110, 0.0
        %2115 = vadd.xlane.f32.xlu0 %v2114
        %v2116 = vpop.xlane.xlu0 %2115
        %v2117 = vrcp.pop %v2113
        %v2118 = vrcp.pop %v2116
        %v2119 = vmul.f32 %v2108, %v2117
        %v2120 = vmul.f32 %v2110, %v2118
        %v2121 = vadd.f32 %v1787, %v2119
        %v2122 = vadd.f32 %v1788, %v2120
        %2123 = vrot.lane.b32.xlu0 %v932, 40
        %v2124 = vpop.permute.xlu0 %2123
        %v2127 = vsel %vm943, %v2119, 0
        %2129 = vmatprep.subr.mxu0 0.0
        %2130 = vmatpush1.msra.mxu0 %v2124
        %2131 = vmatprep.subr.mxu0 0.0
        %2132 = vmatpush1.msra.mxu0 0.0
        %2133 = vmatprep.subr.mxu0 0.0
        %2134 = vmatpush1.msra.mxu0 0.0
        %2135 = vmatprep.subr.mxu0 0.0
        %2136 = vmatpush1.msra.mxu0 0.0
        %2137 = vmatprep.subr.mxu0 0.0
        %2138 = vmatpush1.msra.mxu0 0.0
        %2139 = vmatprep.subr.mxu0 0.0
        %2140 = vmatpush1.msra.mxu0 0.0
        %2141 = vmatprep.subr.mxu0 0.0
        %2142 = vmatpush1.msra.mxu0 0.0
        %2143 = vmatprep.subr.mxu0 0.0
        %2144 = vmatpush1.msra.mxu0 0.0
        %2145 = vmatprep.subr.mxu0 0.0
        %2146 = vmatpush1.msra.mxu0 0.0
        %2147 = vmatprep.subr.mxu0 0.0
        %2148 = vmatpush1.msra.mxu0 0.0
        %2149 = vmatprep.subr.mxu0 0.0
        %2150 = vmatpush1.msra.mxu0 0.0
        %2151 = vmatprep.subr.mxu0 0.0
        %2152 = vmatpush1.msra.mxu0 0.0
        %2153 = vmatprep.subr.mxu0 0.0
        %2154 = vmatpush1.msra.mxu0 0.0
        %2155 = vmatprep.subr.mxu0 0.0
        %2156 = vmatpush1.msra.mxu0 0.0
        %2157 = vmatprep.subr.mxu0 0.0
        %2158 = vmatpush1.msra.mxu0 0.0
        %2159 = vmatprep.subr.mxu0 0.0
        %2160 = vmatpush1.msra.mxu0 0.0
        %2161 = vmatprep.subr.mxu0 0.0
        %2162 = vmatpush1.msra.mxu0 0.0
        %2163 = vmatprep.subr.mxu0 0.0
        %2164 = vmatpush1.msra.mxu0 0.0
        %2165 = vmatprep.subr.mxu0 0.0
        %2166 = vmatpush1.msra.mxu0 0.0
        %2167 = vmatprep.subr.mxu0 0.0
        %2168 = vmatpush1.msra.mxu0 0.0
        %2169 = vmatprep.subr.mxu0 0.0
        %2170 = vmatpush1.msra.mxu0 0.0
        %2171 = vmatprep.subr.mxu0 0.0
        %2172 = vmatpush1.msra.mxu0 0.0
        %2173 = vmatprep.subr.mxu0 0.0
        %2174 = vmatpush1.msra.mxu0 0.0
        %2175 = vmatprep.subr.mxu0 0.0
        %2176 = vmatpush1.msra.mxu0 0.0
        %2177 = vmatprep.subr.mxu0 0.0
        %2178 = vmatpush1.msra.mxu0 0.0
        %2179 = vmatprep.subr.mxu0 0.0
        %2180 = vmatpush1.msra.mxu0 0.0
        %2181 = vmatprep.subr.mxu0 0.0
        %2182 = vmatpush1.msra.mxu0 0.0
        %2183 = vmatprep.subr.mxu0 0.0
        %2184 = vmatpush1.msra.mxu0 0.0
        %2185 = vmatprep.subr.mxu0 0.0
        %2186 = vmatpush1.msra.mxu0 0.0
        %2187 = vmatprep.subr.mxu0 0.0
        %2188 = vmatpush1.msra.mxu0 0.0
        %2189 = vmatprep.subr.mxu0 0.0
        %2190 = vmatpush1.msra.mxu0 0.0
        %2191 = vmatprep.subr.mxu0 0.0
        %2192 = vmatpush1.msra.mxu0 0.0
        %2193 = vmatprep.mubr.f32.mxu0 0.0
        %2194 = vmatmul.mubr.f32.gmra.mrb[0].mxu0 %v2127
        %v2195 = vpop.f32.mrb[0].mxu0
        %v2196 = vadd.f32 0.0, %v2195
        %v2197 = vpop.f32.mrb[0].mxu0
        %2198 = vdwg.mxu0
        %2199 = vrot.lane.b32.xlu0 %v937, 40
        %v2200 = vpop.permute.xlu0 %2199
        %v2203 = vsel %vm943, %v2120, 0
        %2205 = vmatprep.subr.mxu0 0.0
        %2206 = vmatpush1.msra.mxu0 %v2200
        %2207 = vmatprep.subr.mxu0 0.0
        %2208 = vmatpush1.msra.mxu0 0.0
        %2209 = vmatprep.subr.mxu0 0.0
        %2210 = vmatpush1.msra.mxu0 0.0
        %2211 = vmatprep.subr.mxu0 0.0
        %2212 = vmatpush1.msra.mxu0 0.0
        %2213 = vmatprep.subr.mxu0 0.0
        %2214 = vmatpush1.msra.mxu0 0.0
        %2215 = vmatprep.subr.mxu0 0.0
        %2216 = vmatpush1.msra.mxu0 0.0
        %2217 = vmatprep.subr.mxu0 0.0
        %2218 = vmatpush1.msra.mxu0 0.0
        %2219 = vmatprep.subr.mxu0 0.0
        %2220 = vmatpush1.msra.mxu0 0.0
        %2221 = vmatprep.subr.mxu0 0.0
        %2222 = vmatpush1.msra.mxu0 0.0
        %2223 = vmatprep.subr.mxu0 0.0
        %2224 = vmatpush1.msra.mxu0 0.0
        %2225 = vmatprep.subr.mxu0 0.0
        %2226 = vmatpush1.msra.mxu0 0.0
        %2227 = vmatprep.subr.mxu0 0.0
        %2228 = vmatpush1.msra.mxu0 0.0
        %2229 = vmatprep.subr.mxu0 0.0
        %2230 = vmatpush1.msra.mxu0 0.0
        %2231 = vmatprep.subr.mxu0 0.0
        %2232 = vmatpush1.msra.mxu0 0.0
        %2233 = vmatprep.subr.mxu0 0.0
        %2234 = vmatpush1.msra.mxu0 0.0
        %2235 = vmatprep.subr.mxu0 0.0
        %2236 = vmatpush1.msra.mxu0 0.0
        %2237 = vmatprep.subr.mxu0 0.0
        %2238 = vmatpush1.msra.mxu0 0.0
        %2239 = vmatprep.subr.mxu0 0.0
        %2240 = vmatpush1.msra.mxu0 0.0
        %2241 = vmatprep.subr.mxu0 0.0
        %2242 = vmatpush1.msra.mxu0 0.0
        %2243 = vmatprep.subr.mxu0 0.0
        %2244 = vmatpush1.msra.mxu0 0.0
        %2245 = vmatprep.subr.mxu0 0.0
        %2246 = vmatpush1.msra.mxu0 0.0
        %2247 = vmatprep.subr.mxu0 0.0
        %2248 = vmatpush1.msra.mxu0 0.0
        %2249 = vmatprep.subr.mxu0 0.0
        %2250 = vmatpush1.msra.mxu0 0.0
        %2251 = vmatprep.subr.mxu0 0.0
        %2252 = vmatpush1.msra.mxu0 0.0
        %2253 = vmatprep.subr.mxu0 0.0
        %2254 = vmatpush1.msra.mxu0 0.0
        %2255 = vmatprep.subr.mxu0 0.0
        %2256 = vmatpush1.msra.mxu0 0.0
        %2257 = vmatprep.subr.mxu0 0.0
        %2258 = vmatpush1.msra.mxu0 0.0
        %2259 = vmatprep.subr.mxu0 0.0
        %2260 = vmatpush1.msra.mxu0 0.0
        %2261 = vmatprep.subr.mxu0 0.0
        %2262 = vmatpush1.msra.mxu0 0.0
        %2263 = vmatprep.subr.mxu0 0.0
        %2264 = vmatpush1.msra.mxu0 0.0
        %2265 = vmatprep.subr.mxu0 0.0
        %2266 = vmatpush1.msra.mxu0 0.0
        %2267 = vmatprep.subr.mxu0 0.0
        %2268 = vmatpush1.msra.mxu0 0.0
        %2269 = vmatprep.mubr.f32.mxu0 0.0
        %2270 = vmatmul.mubr.f32.gmra.mrb[0].mxu0 %v2203
        %v2271 = vpop.f32.mrb[0].mxu0
        %v2272 = vadd.f32 0.0, %v2271
        %v2273 = vpop.f32.mrb[0].mxu0
        %2274 = vdwg.mxu0
        %2277 = vrot.lane.b32.xlu0 %v1528, 8
        %v2278 = vpop.permute.xlu0 %2277
        %2279 = vrot.lane.b32.xlu0 %v1604, 8
        %v2280 = vpop.permute.xlu0 %2279
        %2285 = vrot.lane.b32.xlu0 %v1862, 16
        %v2286 = vpop.permute.xlu0 %2285
        %2287 = vrot.lane.b32.xlu0 %v1938, 16
        %v2288 = vpop.permute.xlu0 %2287
        %2293 = vrot.lane.b32.xlu0 %v2196, 24
        %v2294 = vpop.permute.xlu0 %2293
        %2295 = vrot.lane.b32.xlu0 %v2272, 24
        %v2296 = vpop.permute.xlu0 %2295
        %v2299 = vsel %vm943, %v1194, %v2278
        %v2300 = vsel %vm943, %v1270, %v2280
        %vm2301 = vcmask 130048
        %v2302 = vsel %vm2301, %v2299, %v2286
        %v2303 = vsel %vm2301, %v2300, %v2288
        %vm2304 = vcmask 195584
        %v2305 = vsel %vm2304, %v2302, %v2294
        %v2306 = vsel %vm2304, %v2303, %v2296
        %v2307 = vld [vmem:[%s755] sm:$0xff]
        %v2308 = vld [vmem:[%s755 + $0x8] sm:$0xff]
        %v2309 = vld [vmem:[%s755 + $0x10] sm:$0xff]
        %v2310 = vld [vmem:[%s755 + $0x18] sm:$0xff]
        %v2311 = vld [vmem:[%s758] sm:$0x1]
        %v2313 = vlaneseq
        %v2314 = vshrl.u32 %v2313, 7
        %v2315 = vsub.s32 0, %v2314
        %v2316 = vrot.slane %v2311, %v2315
        %v2319 = vsel %vm858, %v2305, 0
        %v2322 = vsel %vm858, %v2306, 0
        %2324 = vmatprep.subr.mxu0 0.0
        %2325 = vmatpush1.msra.mxu0 %v2307
        %2326 = vmatprep.subr.mxu0 0.0
        %2327 = vmatpush1.msra.mxu0 %v2308
        %2328 = vmatprep.subr.mxu0 0.0
        %2329 = vmatpush1.msra.mxu0 %v2309
        %2330 = vmatprep.subr.mxu0 0.0
        %2331 = vmatpush1.msra.mxu0 %v2310
        %2332 = vmatprep.subr.mxu0 0.0
        %2333 = vmatpush1.msra.mxu0 0.0
        %2334 = vmatprep.subr.mxu0 0.0
        %2335 = vmatpush1.msra.mxu0 0.0
        %2336 = vmatprep.subr.mxu0 0.0
        %2337 = vmatpush1.msra.mxu0 0.0
        %2338 = vmatprep.subr.mxu0 0.0
        %2339 = vmatpush1.msra.mxu0 0.0
        %2340 = vmatprep.subr.mxu0 0.0
        %2341 = vmatpush1.msra.mxu0 0.0
        %2342 = vmatprep.subr.mxu0 0.0
        %2343 = vmatpush1.msra.mxu0 0.0
        %2344 = vmatprep.subr.mxu0 0.0
        %2345 = vmatpush1.msra.mxu0 0.0
        %2346 = vmatprep.subr.mxu0 0.0
        %2347 = vmatpush1.msra.mxu0 0.0
        %2348 = vmatprep.subr.mxu0 0.0
        %2349 = vmatpush1.msra.mxu0 0.0
        %2350 = vmatprep.subr.mxu0 0.0
        %2351 = vmatpush1.msra.mxu0 0.0
        %2352 = vmatprep.subr.mxu0 0.0
        %2353 = vmatpush1.msra.mxu0 0.0
        %2354 = vmatprep.subr.mxu0 0.0
        %2355 = vmatpush1.msra.mxu0 0.0
        %2356 = vmatprep.subr.mxu0 0.0
        %2357 = vmatpush1.msra.mxu0 0.0
        %2358 = vmatprep.subr.mxu0 0.0
        %2359 = vmatpush1.msra.mxu0 0.0
        %2360 = vmatprep.subr.mxu0 0.0
        %2361 = vmatpush1.msra.mxu0 0.0
        %2362 = vmatprep.subr.mxu0 0.0
        %2363 = vmatpush1.msra.mxu0 0.0
        %2364 = vmatprep.subr.mxu0 0.0
        %2365 = vmatpush1.msra.mxu0 0.0
        %2366 = vmatprep.subr.mxu0 0.0
        %2367 = vmatpush1.msra.mxu0 0.0
        %2368 = vmatprep.subr.mxu0 0.0
        %2369 = vmatpush1.msra.mxu0 0.0
        %2370 = vmatprep.subr.mxu0 0.0
        %2371 = vmatpush1.msra.mxu0 0.0
        %2372 = vmatprep.subr.mxu0 0.0
        %2373 = vmatpush1.msra.mxu0 0.0
        %2374 = vmatprep.subr.mxu0 0.0
        %2375 = vmatpush1.msra.mxu0 0.0
        %2376 = vmatprep.subr.mxu0 0.0
        %2377 = vmatpush1.msra.mxu0 0.0
        %2378 = vmatprep.subr.mxu0 0.0
        %2379 = vmatpush1.msra.mxu0 0.0
        %2380 = vmatprep.subr.mxu0 0.0
        %2381 = vmatpush1.msra.mxu0 0.0
        %2382 = vmatprep.subr.mxu0 0.0
        %2383 = vmatpush1.msra.mxu0 0.0
        %2384 = vmatprep.subr.mxu0 0.0
        %2385 = vmatpush1.msra.mxu0 0.0
        %2386 = vmatprep.subr.mxu0 0.0
        %2387 = vmatpush1.msra.mxu0 0.0
        %2388 = vmatprep.mubr.f32.mxu0 0.0
        %2389 = vmatmul.mubr.f32.gmra.mrb[0].mxu0 %v2319
        %v2390 = vpop.f32.mrb[0].mxu0
        %v2391 = vadd.f32 %v2316, %v2390
        %v2392 = vpop.f32.mrb[0].mxu0
        %2393 = vmatprep.mubr.f32.mxu0 0.0
        %2394 = vmatmul.mubr.f32.gmra.mrb[0].mxu0 %v2322
        %v2395 = vpop.f32.mrb[0].mxu0
        %v2396 = vadd.f32 %v2316, %v2395
        %v2397 = vpop.f32.mrb[0].mxu0
        %2398 = vdwg.mxu0
        %v2399 = vadd.f32 %v845, %v2391
        %v2400 = vadd.f32 %v846, %v2396
        %v2401 = vld [vmem:[%s761] sm:$0x1]
        %v2402 = vld [vmem:[%s764] sm:$0x1]
        %v2403 = vsel %vm858, %v2399, 0.0
        %2404 = vadd.xlane.f32.xlu0 %v2403
        %v2405 = vpop.xlane.xlu0 %2404
        %v2406 = vsel %vm858, %v2400, 0.0
        %2407 = vadd.xlane.f32.xlu0 %v2406
        %v2408 = vpop.xlane.xlu0 %2407
        %v2409 = vrcp.pop 32.0
        %v2410 = vmul.f32 %v2405, %v2409
        %v2411 = vmul.f32 %v2408, %v2409
        %v2412 = vsub.f32 %v2399, %v2410
        %v2413 = vsub.f32 %v2400, %v2411
        %v2414 = vmul.f32 %v2412, %v2412
        %v2415 = vmul.f32 %v2413, %v2413
        %v2416 = vsel %vm858, %v2414, 0.0
        %2417 = vadd.xlane.f32.xlu0 %v2416
        %v2418 = vpop.xlane.xlu0 %2417
        %v2419 = vsel %vm858, %v2415, 0.0
        %2420 = vadd.xlane.f32.xlu0 %v2419
        %v2421 = vpop.xlane.xlu0 %2420
        %v2422 = vmul.f32 %v2418, %v2409
        %v2423 = vmul.f32 %v2421, %v2409
        %v2424 = vadd.f32 %v2422, 1e-12
        %v2425 = vadd.f32 %v2423, 1e-12
        %v2426 = vrsqrt.pop %v2424
        %v2427 = vrsqrt.pop %v2425
        %v2428 = vmul.f32 %v2412, %v2426
        %v2429 = vmul.f32 %v2413, %v2427
        %v2431 = vlaneseq
        %v2432 = vshrl.u32 %v2431, 7
        %v2433 = vsub.s32 0, %v2432
        %v2434 = vrot.slane %v2401, %v2433
        %v2436 = vmul.f32 %v2428, %v2434
        %v2437 = vmul.f32 %v2429, %v2434
        %v2439 = vlaneseq
        %v2440 = vshrl.u32 %v2439, 7
        %v2441 = vsub.s32 0, %v2440
        %v2442 = vrot.slane %v2402, %v2441
        %v2444 = vadd.f32 %v2436, %v2442
        %v2445 = vadd.f32 %v2437, %v2442
        %v2446 = vld [vmem:[%s769] sm:$0xff]
        %v2447 = vld [vmem:[%s769 + $0x8] sm:$0xff]
        %v2448 = vld [vmem:[%s769 + $0x10] sm:$0xff]
        %v2449 = vld [vmem:[%s769 + $0x18] sm:$0xff]
        %v2450 = vld [vmem:[%s772] sm:$0x1]
        %v2452 = vlaneseq
        %v2453 = vshrl.u32 %v2452, 7
        %v2454 = vsub.s32 0, %v2453
        %v2455 = vrot.slane %v2450, %v2454
        %v2458 = vsel %vm858, %v2444, 0
        %v2461 = vsel %vm858, %v2445, 0
        %2463 = vmatprep.subr.mxu0 0.0
        %2464 = vmatpush1.msra.mxu0 %v2446
        %2465 = vmatprep.subr.mxu0 0.0
        %2466 = vmatpush1.msra.mxu0 %v2447
        %2467 = vmatprep.subr.mxu0 0.0
        %2468 = vmatpush1.msra.mxu0 %v2448
        %2469 = vmatprep.subr.mxu0 0.0
        %2470 = vmatpush1.msra.mxu0 %v2449
        %2471 = vmatprep.subr.mxu0 0.0
        %2472 = vmatpush1.msra.mxu0 0.0
        %2473 = vmatprep.subr.mxu0 0.0
        %2474 = vmatpush1.msra.mxu0 0.0
        %2475 = vmatprep.subr.mxu0 0.0
        %2476 = vmatpush1.msra.mxu0 0.0
        %2477 = vmatprep.subr.mxu0 0.0
        %2478 = vmatpush1.msra.mxu0 0.0
        %2479 = vmatprep.subr.mxu0 0.0
        %2480 = vmatpush1.msra.mxu0 0.0
        %2481 = vmatprep.subr.mxu0 0.0
        %2482 = vmatpush1.msra.mxu0 0.0
        %2483 = vmatprep.subr.mxu0 0.0
        %2484 = vmatpush1.msra.mxu0 0.0
        %2485 = vmatprep.subr.mxu0 0.0
        %2486 = vmatpush1.msra.mxu0 0.0
        %2487 = vmatprep.subr.mxu0 0.0
        %2488 = vmatpush1.msra.mxu0 0.0
        %2489 = vmatprep.subr.mxu0 0.0
        %2490 = vmatpush1.msra.mxu0 0.0
        %2491 = vmatprep.subr.mxu0 0.0
        %2492 = vmatpush1.msra.mxu0 0.0
        %2493 = vmatprep.subr.mxu0 0.0
        %2494 = vmatpush1.msra.mxu0 0.0
        %2495 = vmatprep.subr.mxu0 0.0
        %2496 = vmatpush1.msra.mxu0 0.0
        %2497 = vmatprep.subr.mxu0 0.0
        %2498 = vmatpush1.msra.mxu0 0.0
        %2499 = vmatprep.subr.mxu0 0.0
        %2500 = vmatpush1.msra.mxu0 0.0
        %2501 = vmatprep.subr.mxu0 0.0
        %2502 = vmatpush1.msra.mxu0 0.0
        %2503 = vmatprep.subr.mxu0 0.0
        %2504 = vmatpush1.msra.mxu0 0.0
        %2505 = vmatprep.subr.mxu0 0.0
        %2506 = vmatpush1.msra.mxu0 0.0
        %2507 = vmatprep.subr.mxu0 0.0
        %2508 = vmatpush1.msra.mxu0 0.0
        %2509 = vmatprep.subr.mxu0 0.0
        %2510 = vmatpush1.msra.mxu0 0.0
        %2511 = vmatprep.subr.mxu0 0.0
        %2512 = vmatpush1.msra.mxu0 0.0
        %2513 = vmatprep.subr.mxu0 0.0
        %2514 = vmatpush1.msra.mxu0 0.0
        %2515 = vmatprep.subr.mxu0 0.0
        %2516 = vmatpush1.msra.mxu0 0.0
        %2517 = vmatprep.subr.mxu0 0.0
        %2518 = vmatpush1.msra.mxu0 0.0
        %2519 = vmatprep.subr.mxu0 0.0
        %2520 = vmatpush1.msra.mxu0 0.0
        %2521 = vmatprep.subr.mxu0 0.0
        %2522 = vmatpush1.msra.mxu0 0.0
        %2523 = vmatprep.subr.mxu0 0.0
        %2524 = vmatpush1.msra.mxu0 0.0
        %2525 = vmatprep.subr.mxu0 0.0
        %2526 = vmatpush1.msra.mxu0 0.0
        %2527 = vmatprep.mubr.f32.mxu0 0.0
        %2528 = vmatmul.mubr.f32.gmra.mrb[0].mxu0 %v2458
        %v2529 = vpop.f32.mrb[0].mxu0
        %v2530 = vadd.f32 %v2455, %v2529
        %v2531 = vpop.f32.mrb[0].mxu0
        %2532 = vmatprep.mubr.f32.mxu0 0.0
        %2533 = vmatmul.mubr.f32.gmra.mrb[0].mxu0 %v2461
        %v2534 = vpop.f32.mrb[0].mxu0
        %v2535 = vadd.f32 %v2455, %v2534
        %v2536 = vpop.f32.mrb[0].mxu0
        %2537 = vdwg.mxu0
        %v2538 = vmul.f32 %v2530, 0.5
        %v2539 = vmul.f32 %v2535, 0.5
        %v2540 = vmul.f32 %v2530, 0.044715
        %v2541 = vmul.f32 %v2535, 0.044715
        %v2542 = vmul.f32 %v2540, %v2530
        %v2543 = vmul.f32 %v2541, %v2535
        %v2544 = vmul.f32 %v2542, %v2530
        %v2545 = vmul.f32 %v2543, %v2535
        %v2546 = vadd.f32 %v2530, %v2544
        %v2547 = vadd.f32 %v2535, %v2545
        %v2548 = vmul.f32 %v2546, 0.7978846
        %v2549 = vmul.f32 %v2547, 0.7978846
        %v2550 = vtanh.pop %v2548
        %v2551 = vtanh.pop %v2549
        %v2552 = vadd.f32 %v2550, 1.0
        %v2553 = vadd.f32 %v2551, 1.0
        %v2554 = vmul.f32 %v2538, %v2552
        %v2555 = vmul.f32 %v2539, %v2553
        %v2556 = vld [vmem:[%s777] sm:$0xff]
        %v2557 = vld [vmem:[%s777 + $0x8] sm:$0xff]
        %v2558 = vld [vmem:[%s777 + $0x10] sm:$0xff]
        %v2559 = vld [vmem:[%s777 + $0x18] sm:$0xff]
        %v2560 = vld [vmem:[%s777 + $0x20] sm:$0xff]
        %v2561 = vld [vmem:[%s777 + $0x28] sm:$0xff]
        %v2562 = vld [vmem:[%s777 + $0x30] sm:$0xff]
        %v2563 = vld [vmem:[%s777 + $0x38] sm:$0xff]
        %v2564 = vld [vmem:[%s777 + $0x40] sm:$0xff]
        %v2565 = vld [vmem:[%s777 + $0x48] sm:$0xff]
        %v2566 = vld [vmem:[%s777 + $0x50] sm:$0xff]
        %v2567 = vld [vmem:[%s777 + $0x58] sm:$0xff]
        %v2568 = vld [vmem:[%s777 + $0x60] sm:$0xff]
        %v2569 = vld [vmem:[%s777 + $0x68] sm:$0xff]
        %v2570 = vld [vmem:[%s777 + $0x70] sm:$0xff]
        %v2571 = vld [vmem:[%s777 + $0x78] sm:$0xff]
        %v2572 = vld [vmem:[%s780] sm:$0x1]
        %v2574 = vlaneseq
        %v2575 = vshrl.u32 %v2574, 7
        %v2576 = vsub.s32 0, %v2575
        %v2577 = vrot.slane %v2572, %v2576
        %2579 = vmatprep.subr.mxu0 0.0
        %2580 = vmatpush1.msra.mxu0 %v2556
        %2581 = vmatprep.subr.mxu0 0.0
        %2582 = vmatpush1.msra.mxu0 %v2557
        %2583 = vmatprep.subr.mxu0 0.0
        %2584 = vmatpush1.msra.mxu0 %v2558
        %2585 = vmatprep.subr.mxu0 0.0
        %2586 = vmatpush1.msra.mxu0 %v2559
        %2587 = vmatprep.subr.mxu0 0.0
        %2588 = vmatpush1.msra.mxu0 %v2560
        %2589 = vmatprep.subr.mxu0 0.0
        %2590 = vmatpush1.msra.mxu0 %v2561
        %2591 = vmatprep.subr.mxu0 0.0
        %2592 = vmatpush1.msra.mxu0 %v2562
        %2593 = vmatprep.subr.mxu0 0.0
        %2594 = vmatpush1.msra.mxu0 %v2563
        %2595 = vmatprep.subr.mxu0 0.0
        %2596 = vmatpush1.msra.mxu0 %v2564
        %2597 = vmatprep.subr.mxu0 0.0
        %2598 = vmatpush1.msra.mxu0 %v2565
        %2599 = vmatprep.subr.mxu0 0.0
        %2600 = vmatpush1.msra.mxu0 %v2566
        %2601 = vmatprep.subr.mxu0 0.0
        %2602 = vmatpush1.msra.mxu0 %v2567
        %2603 = vmatprep.subr.mxu0 0.0
        %2604 = vmatpush1.msra.mxu0 %v2568
        %2605 = vmatprep.subr.mxu0 0.0
        %2606 = vmatpush1.msra.mxu0 %v2569
        %2607 = vmatprep.subr.mxu0 0.0
        %2608 = vmatpush1.msra.mxu0 %v2570
        %2609 = vmatprep.subr.mxu0 0.0
        %2610 = vmatpush1.msra.mxu0 %v2571
        %2611 = vmatprep.subr.mxu0 0.0
        %2612 = vmatpush1.msra.mxu0 0.0
        %2613 = vmatprep.subr.mxu0 0.0
        %2614 = vmatpush1.msra.mxu0 0.0
        %2615 = vmatprep.subr.mxu0 0.0
        %2616 = vmatpush1.msra.mxu0 0.0
        %2617 = vmatprep.subr.mxu0 0.0
        %2618 = vmatpush1.msra.mxu0 0.0
        %2619 = vmatprep.subr.mxu0 0.0
        %2620 = vmatpush1.msra.mxu0 0.0
        %2621 = vmatprep.subr.mxu0 0.0
        %2622 = vmatpush1.msra.mxu0 0.0
        %2623 = vmatprep.subr.mxu0 0.0
        %2624 = vmatpush1.msra.mxu0 0.0
        %2625 = vmatprep.subr.mxu0 0.0
        %2626 = vmatpush1.msra.mxu0 0.0
        %2627 = vmatprep.subr.mxu0 0.0
        %2628 = vmatpush1.msra.mxu0 0.0
        %2629 = vmatprep.subr.mxu0 0.0
        %2630 = vmatpush1.msra.mxu0 0.0
        %2631 = vmatprep.subr.mxu0 0.0
        %2632 = vmatpush1.msra.mxu0 0.0
        %2633 = vmatprep.subr.mxu0 0.0
        %2634 = vmatpush1.msra.mxu0 0.0
        %2635 = vmatprep.subr.mxu0 0.0
        %2636 = vmatpush1.msra.mxu0 0.0
        %2637 = vmatprep.subr.mxu0 0.0
        %2638 = vmatpush1.msra.mxu0 0.0
        %2639 = vmatprep.subr.mxu0 0.0
        %2640 = vmatpush1.msra.mxu0 0.0
        %2641 = vmatprep.subr.mxu0 0.0
        %2642 = vmatpush1.msra.mxu0 0.0
        %2643 = vmatprep.mubr.f32.mxu0 0.0
        %2644 = vmatmul.mubr.f32.gmra.mrb[0].mxu0 %v2554
        %v2645 = vpop.f32.mrb[0].mxu0
        %v2646 = vadd.f32 %v2577, %v2645
        %v2647 = vpop.f32.mrb[0].mxu0
        %2648 = vmatprep.mubr.f32.mxu0 0.0
        %2649 = vmatmul.mubr.f32.gmra.mrb[0].mxu0 %v2555
        %v2650 = vpop.f32.mrb[0].mxu0
        %v2651 = vadd.f32 %v2577, %v2650
        %v2652 = vpop.f32.mrb[0].mxu0
        %2653 = vdwg.mxu0
        %v2654 = vadd.f32 %v2444, %v2646
        %v2655 = vadd.f32 %v2445, %v2651
        %v2656 = vld [vmem:[%s783] sm:$0x1]
        %v2657 = vld [vmem:[%s786] sm:$0x1]
        %v2658 = vsel %vm858, %v2654, 0.0
        %2659 = vadd.xlane.f32.xlu0 %v2658
        %v2660 = vpop.xlane.xlu0 %2659
        %v2661 = vsel %vm858, %v2655, 0.0
        %2662 = vadd.xlane.f32.xlu0 %v2661
        %v2663 = vpop.xlane.xlu0 %2662
        %v2664 = vmul.f32 %v2660, %v2409
        %v2665 = vmul.f32 %v2663, %v2409
        %v2666 = vsub.f32 %v2654, %v2664
        %v2667 = vsub.f32 %v2655, %v2665
        %v2668 = vmul.f32 %v2666, %v2666
        %v2669 = vmul.f32 %v2667, %v2667
        %v2670 = vsel %vm858, %v2668, 0.0
        %2671 = vadd.xlane.f32.xlu0 %v2670
        %v2672 = vpop.xlane.xlu0 %2671
        %v2673 = vsel %vm858, %v2669, 0.0
        %2674 = vadd.xlane.f32.xlu0 %v2673
        %v2675 = vpop.xlane.xlu0 %2674
        %v2676 = vmul.f32 %v2672, %v2409
        %v2677 = vmul.f32 %v2675, %v2409
        %v2678 = vadd.f32 %v2676, 1e-12
        %v2679 = vadd.f32 %v2677, 1e-12
        %v2680 = vrsqrt.pop %v2678
        %v2681 = vrsqrt.pop %v2679
        %v2682 = vmul.f32 %v2666, %v2680
        %v2683 = vmul.f32 %v2667, %v2681
        %v2685 = vlaneseq
        %v2686 = vshrl.u32 %v2685, 7
        %v2687 = vsub.s32 0, %v2686
        %v2688 = vrot.slane %v2656, %v2687
        %v2690 = vmul.f32 %v2682, %v2688
        %v2691 = vmul.f32 %v2683, %v2688
        %v2693 = vlaneseq
        %v2694 = vshrl.u32 %v2693, 7
        %v2695 = vsub.s32 0, %v2694
        %v2696 = vrot.slane %v2657, %v2695
        %v2698 = vadd.f32 %v2690, %v2696
        %v2699 = vadd.f32 %v2691, %v2696
        %2700 = vst.msk [vmem:[#allocation2] sm:$0xff] %vm858, %v2698
        %2701 = vst.msk [vmem:[#allocation2 + $0x8] sm:$0xff] %vm858, %v2699
        %p2702 = scmp.eq.s32.totalorder %s34, 11
        // Predicated region
        $region101: #{bert_rel_simple_forward.1} parent=95 // pred_check
          %p2703 = pneg %p2702
        $region102: #{bert_rel_simple_forward.1} parent=95 // pred_check_branch
          %2705 = sbr.rel (%p2703) target = $region104
        $region103: #{bert_rel_simple_forward.1} parent=95 // pred_region
          %v2706 = vld [vmem:[%s15] sm:$0xff]
          %v2707 = vld [vmem:[%s15 + $0x8] sm:$0xff]
          %v2708 = vld [vmem:[%s15 + $0x10] sm:$0xff]
          %v2709 = vld [vmem:[%s15 + $0x18] sm:$0xff]
          %v2710 = vld [vmem:[%s16] sm:$0x1]
          %v2712 = vlaneseq
          %v2713 = vshrl.u32 %v2712, 7
          %v2714 = vsub.s32 0, %v2713
          %v2715 = vrot.slane %v2710, %v2714
          %v2719 = vrot.slane %v2699, 7
          %vm2720 = vcmask 1041409
          %v2721 = vsel %vm2720, %v2719, %v2698
          %v2722 = vsel %vm858, %v2721, 0
          %2724 = vmatprep.subr.mxu0 0.0
          %2725 = vmatpush1.msra.mxu0 %v2706
          %2726 = vmatprep.subr.mxu0 0.0
          %2727 = vmatpush1.msra.mxu0 %v2707
          %2728 = vmatprep.subr.mxu0 0.0
          %2729 = vmatpush1.msra.mxu0 %v2708
          %2730 = vmatprep.subr.mxu0 0.0
          %2731 = vmatpush1.msra.mxu0 %v2709
          %2732 = vmatprep.subr.mxu0 0.0
          %2733 = vmatpush1.msra.mxu0 0.0
          %2734 = vmatprep.subr.mxu0 0.0
          %2735 = vmatpush1.msra.mxu0 0.0
          %2736 = vmatprep.subr.mxu0 0.0
          %2737 = vmatpush1.msra.mxu0 0.0
          %2738 = vmatprep.subr.mxu0 0.0
          %2739 = vmatpush1.msra.mxu0 0.0
          %2740 = vmatprep.subr.mxu0 0.0
          %2741 = vmatpush1.msra.mxu0 0.0
          %2742 = vmatprep.subr.mxu0 0.0
          %2743 = vmatpush1.msra.mxu0 0.0
          %2744 = vmatprep.subr.mxu0 0.0
          %2745 = vmatpush1.msra.mxu0 0.0
          %2746 = vmatprep.subr.mxu0 0.0
          %2747 = vmatpush1.msra.mxu0 0.0
          %2748 = vmatprep.subr.mxu0 0.0
          %2749 = vmatpush1.msra.mxu0 0.0
          %2750 = vmatprep.subr.mxu0 0.0
          %2751 = vmatpush1.msra.mxu0 0.0
          %2752 = vmatprep.subr.mxu0 0.0
          %2753 = vmatpush1.msra.mxu0 0.0
          %2754 = vmatprep.subr.mxu0 0.0
          %2755 = vmatpush1.msra.mxu0 0.0
          %2756 = vmatprep.subr.mxu0 0.0
          %2757 = vmatpush1.msra.mxu0 0.0
          %2758 = vmatprep.subr.mxu0 0.0
          %2759 = vmatpush1.msra.mxu0 0.0
          %2760 = vmatprep.subr.mxu0 0.0
          %2761 = vmatpush1.msra.mxu0 0.0
          %2762 = vmatprep.subr.mxu0 0.0
          %2763 = vmatpush1.msra.mxu0 0.0
          %2764 = vmatprep.subr.mxu0 0.0
          %2765 = vmatpush1.msra.mxu0 0.0
          %2766 = vmatprep.subr.mxu0 0.0
          %2767 = vmatpush1.msra.mxu0 0.0
          %2768 = vmatprep.subr.mxu0 0.0
          %2769 = vmatpush1.msra.mxu0 0.0
          %2770 = vmatprep.subr.mxu0 0.0
          %2771 = vmatpush1.msra.mxu0 0.0
          %2772 = vmatprep.subr.mxu0 0.0
          %2773 = vmatpush1.msra.mxu0 0.0
          %2774 = vmatprep.subr.mxu0 0.0
          %2775 = vmatpush1.msra.mxu0 0.0
          %2776 = vmatprep.subr.mxu0 0.0
          %2777 = vmatpush1.msra.mxu0 0.0
          %2778 = vmatprep.subr.mxu0 0.0
          %2779 = vmatpush1.msra.mxu0 0.0
          %2780 = vmatprep.subr.mxu0 0.0
          %2781 = vmatpush1.msra.mxu0 0.0
          %2782 = vmatprep.subr.mxu0 0.0
          %2783 = vmatpush1.msra.mxu0 0.0
          %2784 = vmatprep.subr.mxu0 0.0
          %2785 = vmatpush1.msra.mxu0 0.0
          %2786 = vmatprep.subr.mxu0 0.0
          %2787 = vmatpush1.msra.mxu0 0.0
          %2788 = vmatprep.mubr.f32.mxu0 0.0
          %2789 = vmatmul.mubr.f32.gmra.mrb[0].mxu0 %v2722
          %v2790 = vpop.f32.mrb[0].mxu0
          %v2791 = vadd.f32 %v2715, %v2790
          %v2792 = vpop.f32.mrb[0].mxu0
          %2793 = vdwg.mxu0
          %v2794 = vtanh.pop %v2791
          %v2795 = vld [vmem:[%s17] sm:$0xff]
          %v2796 = vld [vmem:[%s17 + $0x8] sm:$0xff]
          %v2797 = vld [vmem:[%s17 + $0x10] sm:$0xff]
          %v2798 = vld [vmem:[%s17 + $0x18] sm:$0xff]
          %v2799 = vld [vmem:[%s18] sm:$0x1]
          %v2801 = vlaneseq
          %v2802 = vshrl.u32 %v2801, 7
          %v2803 = vsub.s32 0, %v2802
          %v2804 = vrot.slane %v2799, %v2803
          %v2807 = vsel %vm858, %v2794, 0
          %2809 = vmatprep.subr.mxu0 0.0
          %2810 = vmatpush1.msra.mxu0 %v2795
          %2811 = vmatprep.subr.mxu0 0.0
          %2812 = vmatpush1.msra.mxu0 %v2796
          %2813 = vmatprep.subr.mxu0 0.0
          %2814 = vmatpush1.msra.mxu0 %v2797
          %2815 = vmatprep.subr.mxu0 0.0
          %2816 = vmatpush1.msra.mxu0 %v2798
          %2817 = vmatprep.subr.mxu0 0.0
          %2818 = vmatpush1.msra.mxu0 0.0
          %2819 = vmatprep.subr.mxu0 0.0
          %2820 = vmatpush1.msra.mxu0 0.0
          %2821 = vmatprep.subr.mxu0 0.0
          %2822 = vmatpush1.msra.mxu0 0.0
          %2823 = vmatprep.subr.mxu0 0.0
          %2824 = vmatpush1.msra.mxu0 0.0
          %2825 = vmatprep.subr.mxu0 0.0
          %2826 = vmatpush1.msra.mxu0 0.0
          %2827 = vmatprep.subr.mxu0 0.0
          %2828 = vmatpush1.msra.mxu0 0.0
          %2829 = vmatprep.subr.mxu0 0.0
          %2830 = vmatpush1.msra.mxu0 0.0
          %2831 = vmatprep.subr.mxu0 0.0
          %2832 = vmatpush1.msra.mxu0 0.0
          %2833 = vmatprep.subr.mxu0 0.0
          %2834 = vmatpush1.msra.mxu0 0.0
          %2835 = vmatprep.subr.mxu0 0.0
          %2836 = vmatpush1.msra.mxu0 0.0
          %2837 = vmatprep.subr.mxu0 0.0
          %2838 = vmatpush1.msra.mxu0 0.0
          %2839 = vmatprep.subr.mxu0 0.0
          %2840 = vmatpush1.msra.mxu0 0.0
          %2841 = vmatprep.subr.mxu0 0.0
          %2842 = vmatpush1.msra.mxu0 0.0
          %2843 = vmatprep.subr.mxu0 0.0
          %2844 = vmatpush1.msra.mxu0 0.0
          %2845 = vmatprep.subr.mxu0 0.0
          %2846 = vmatpush1.msra.mxu0 0.0
          %2847 = vmatprep.subr.mxu0 0.0
          %2848 = vmatpush1.msra.mxu0 0.0
          %2849 = vmatprep.subr.mxu0 0.0
          %2850 = vmatpush1.msra.mxu0 0.0
          %2851 = vmatprep.subr.mxu0 0.0
          %2852 = vmatpush1.msra.mxu0 0.0
          %2853 = vmatprep.subr.mxu0 0.0
          %2854 = vmatpush1.msra.mxu0 0.0
          %2855 = vmatprep.subr.mxu0 0.0
          %2856 = vmatpush1.msra.mxu0 0.0
          %2857 = vmatprep.subr.mxu0 0.0
          %2858 = vmatpush1.msra.mxu0 0.0
          %2859 = vmatprep.subr.mxu0 0.0
          %2860 = vmatpush1.msra.mxu0 0.0
          %2861 = vmatprep.subr.mxu0 0.0
          %2862 = vmatpush1.msra.mxu0 0.0
          %2863 = vmatprep.subr.mxu0 0.0
          %2864 = vmatpush1.msra.mxu0 0.0
          %2865 = vmatprep.subr.mxu0 0.0
          %2866 = vmatpush1.msra.mxu0 0.0
          %2867 = vmatprep.subr.mxu0 0.0
          %2868 = vmatpush1.msra.mxu0 0.0
          %2869 = vmatprep.subr.mxu0 0.0
          %2870 = vmatpush1.msra.mxu0 0.0
          %2871 = vmatprep.subr.mxu0 0.0
          %2872 = vmatpush1.msra.mxu0 0.0
          %2873 = vmatprep.mubr.f32.mxu0 0.0
          %2874 = vmatmul.mubr.f32.gmra.mrb[0].mxu0 %v2807
          %v2875 = vpop.f32.mrb[0].mxu0
          %v2876 = vadd.f32 %v2804, %v2875
          %v2877 = vpop.f32.mrb[0].mxu0
          %2878 = vdwg.mxu0
          %vm2879 = vcmask 9216
          %2880 = vst.msk [vmem:[#allocation3] sm:$0x3] %vm2879, %v2876
          %v2883 = vrot.slane %v2122, 7
          %v2884 = vsel %vm2720, %v2883, %v2121
          %vm2886 = vcmask 58368
          %2887 = vst.msk [vmem:[#allocation5] sm:$0x3] %vm2886, %v2884
        $region104: #{bert_rel_simple_forward.1} parent=95 // pred_fallthru
          _
        // Predicated region
        $region105: #{bert_rel_simple_forward.1} parent=95 // pred_check
          %p2888 = pneg %p506
        $region106: #{bert_rel_simple_forward.1} parent=95 // pred_check_branch
          %2890 = sbr.rel (%p2888) target = $region108
        $region107: #{bert_rel_simple_forward.1} parent=95 // pred_region
          %s2892 = ssub.s32 32, 32
          %2893 = vsyncadd [#allocation4], %s2892
          %s2895 = sshll.u32 [#allocation3], 4
          %s2896 = int_to_ptr.vmem [resolvable:$true] %s2895
          %2898 = dma.vmem_to_hbm [thread:$0]  %s2896, 32, %s19, [#allocation4]
        $region108: #{bert_rel_simple_forward.1} parent=95 // pred_fallthru
          _
        // Predicated region
        $region109: #{bert_rel_simple_forward.1} parent=95 // pred_check
          %p2899 = pneg %p527
        $region110: #{bert_rel_simple_forward.1} parent=95 // pred_check_branch
          %2901 = sbr.rel (%p2899) target = $region112
        $region111: #{bert_rel_simple_forward.1} parent=95 // pred_region
          %s2903 = ssub.s32 32, 32
          %2904 = vsyncadd [#allocation6], %s2903
          %s2906 = sshll.u32 [#allocation5], 4
          %s2907 = int_to_ptr.vmem [resolvable:$true] %s2906
          %2909 = dma.vmem_to_hbm [thread:$0]  %s2907, 32, %s20, [#allocation6]
        $region112: #{bert_rel_simple_forward.1} parent=95 // pred_fallthru
          _
        // Predicated region
        $region113: #{bert_rel_simple_forward.1} parent=95 // pred_check
          %p2910 = pneg %p506
        $region114: #{bert_rel_simple_forward.1} parent=95 // pred_check_branch
          %2912 = sbr.rel (%p2910) target = $region116
        $region115: #{bert_rel_simple_forward.1} parent=95 // pred_region
          %2913 = dma.done [#allocation4], 32
        $region116: #{bert_rel_simple_forward.1} parent=95 // pred_fallthru
          _
        // Predicated region
        $region117: #{bert_rel_simple_forward.1} parent=95 // pred_check
          %p2914 = pneg %p527
        $region118: #{bert_rel_simple_forward.1} parent=95 // pred_check_branch
          %2916 = sbr.rel (%p2914) target = $region120
        $region119: #{bert_rel_simple_forward.1} parent=95 // pred_region
          %2917 = dma.done [#allocation6], 32
        $region120: #{bert_rel_simple_forward.1} parent=95 // pred_fallthru
          _
      $region96: #{bert_rel_simple_forward.1} parent=5 // pred_fallthru
        _
      %p2918 = scmp.le.s32.totalorder 2, %s29
      // Predicated region
      $region121: #{bert_rel_simple_forward.1} parent=5 // pred_check
        %p2919 = pneg %p2918
      $region122: #{bert_rel_simple_forward.1} parent=5 // pred_check_branch
        %2921 = sbr.rel (%p2919) target = $region124
      $region123: #{bert_rel_simple_forward.1} parent=5 // pred_region
        %s2922 = ssub.s32 %s29, 2
      $region124: #{bert_rel_simple_forward.1} parent=5 // pred_fallthru
        _
    $region6: #{bert_rel_simple_forward.1} parent=1 // loop_footer
      %s33 = sadd.s32 1, %s29
    $region7: #{bert_rel_simple_forward.1} parent=1 // loop_footer_branch
      %28 = sbr.rel target = $region3
    $region8: #{bert_rel_simple_forward.1} parent=1 // loop_exit
      _
    %2923 = vsyncpa [#allocation4], 1
    %s2924 = scalar_lea.sflag [#allocation4], 1
    %2925 = vsyncpa %s2924, 1
    %2926 = vsyncpa [#allocation6], 1

</llo_original>
